<compile_context>
chip_gen: v5e
topology: v5e:2x2
jax: 0.10.0
libtpu: 0.0.40
codegen_flags: <defaults>
</compile_context>

<pallas_src>
import functools

import jax
import jax.numpy as jnp
from jax.experimental import pallas as pl
from jax.experimental.pallas import tpu as pltpu


def _head_kernel(x_ref, w_ref, b_ref, anc_ref, o_ref, *, n_anchors):
    # x_ref:   (C_in, thw)       activation dtype, lane axis = spatial
    # w_ref:   (na, C_in, os)    activation dtype (per-anchor 1x1 conv weight)
    # b_ref:   (na, 1, os)       f32
    # anc_ref: (na, 1, 4)        f32, row a = [1, 1, anchor_w, anchor_h]
    # o_ref:   (na, thw, os)     output dtype
    x = x_ref[...]
    for a in range(n_anchors):                      # static unroll, na is tiny
        # 1x1 conv for anchor a as a transposed-LHS matmul: spatial stays the
        # long MXU dim and lands on the sublane axis of the (thw, os) result,
        # which is exactly the channel-last output layout -> no post transpose.
        out = jax.lax.dot_general(
            x, w_ref[a],
            dimension_numbers=(((0,), (0,)), ((), ())),
            preferred_element_type=jnp.float32)     # (thw, os) f32
        out = out + b_ref[a]                        # (1, os) broadcast bias
        # Raw logits for every channel (objectness / class logits stay raw,
        # exactly like the torch module); box channels are overwritten below.
        o_ref[a] = out.astype(o_ref.dtype)
        # Decode xy/wh: sigmoid only on the 4 box channels.
        sig = jax.nn.sigmoid(out[:, :4])            # (thw, 4) f32, EUP on 4 lanes
        two_sig = 2.0 * sig
        col = jax.lax.broadcasted_iota(jnp.int32, two_sig.shape, 1)
        dec = jnp.where(col < 2,
                        two_sig - 0.5,                       # xy
                        two_sig * two_sig * anc_ref[a])      # wh * anchor
        o_ref[a, :, :4] = dec.astype(o_ref.dtype)


# Double-buffered working-set budget for the x / out blocks.  Kept conservative
# (well under v5e's 16 MiB scoped-VMEM default, v6e/v7x 32 MiB) so there is
# headroom for the resident weights and the compiler's matmul intermediates.
_VMEM_BUDGET = 8 << 20


def _round_up(x, m):
    return (x + m - 1) // m * m


def _pick_thw(hw, batch, c_in, c_out, x_bytes, out_bytes):
    """Pick the lane tile (hw columns per block)."""
    if hw <= 128:
        # Tiny level: one full-extent block (legal even when < 128 lanes).
        return hw
    resident = 2 * c_in * c_out * 4 + (1 << 16)          # weights (dbl-buffered) + misc
    per_col = 2 * (c_in * x_bytes + c_out * out_bytes)   # dbl-buffered x + out blocks
    max_cols = max(128, ((_VMEM_BUDGET - resident) // per_col) // 128 * 128)
    thw = min(max_cols, max(128, hw // 128 * 128))
    # v7x megacore: keep >= 2 total grid steps so both TensorCores get work.
    if batch * pl.cdiv(hw, thw) < 2 and hw >= 256:
        thw = min(thw, max(128, _round_up(pl.cdiv(hw, 2), 128)))
    return thw


def head_level_forward(x_nchw, weight, bias, anchors_level, n_anchors, n_classes,
                       out_dtype=None):
    """One detection level.

    x_nchw:        (B, C_in, H, W)  float32 or bfloat16
    weight:        (C_out, C_in)    float32  (1x1 conv weight, squeezed)
    bias:          (C_out,)         float32
    anchors_level: (n_anchors, 2)   float32  (already divided by stride)
    returns:       (B, n_anchors, H, W, n_classes + 5) in out_dtype
                   (defaults to x dtype: bf16 in -> bf16 out, f32 in -> f32 out)
    """
    out_size = n_classes + 5
    c_out = n_anchors * out_size
    B, c_in, H, W = x_nchw.shape
    HW = H * W
    act_dt = x_nchw.dtype
    out_dt = act_dt if out_dtype is None else out_dtype

    # Free reshape: NCHW is already (B, C_in, H*W) contiguous.  No transpose,
    # no spatial pad: the hw tail block is handled by Pallas edge masking.
    x3 = x_nchw.reshape(B, c_in, HW)

    # Keep the contraction dim sublane-aligned for the transposed matmul.
    # Real YOLO channel counts (128/256/512) are already multiples of 8, so
    # this zero-pad only fires for toy configs and does not change the result.
    c_in_pad = _round_up(c_in, 8)
    if c_in_pad != c_in:
        x3 = jnp.pad(x3, ((0, 0), (0, c_in_pad - c_in), (0, 0)))

    # (C_out, C_in) -> per-anchor RHS (na, C_in_pad, os), activation dtype.
    w_k = weight.reshape(n_anchors, out_size, c_in).transpose(0, 2, 1)
    if c_in_pad != c_in:
        w_k = jnp.pad(w_k, ((0, 0), (0, c_in_pad - c_in), (0, 0)))
    w_k = w_k.astype(act_dt)
    b_k = bias.reshape(n_anchors, 1, out_size).astype(jnp.float32)
    # Per-anchor scale for the 4 box channels [x, y, w, h] -> [1, 1, aw, ah].
    anc = jnp.concatenate(
        [jnp.ones((n_anchors, 2), jnp.float32),
         anchors_level.astype(jnp.float32).reshape(n_anchors, 2)],
        axis=1).reshape(n_anchors, 1, 4)

    thw = _pick_thw(HW, B, c_in_pad, c_out,
                    x_bytes=jnp.dtype(act_dt).itemsize,
                    out_bytes=jnp.dtype(out_dt).itemsize)
    grid = (B, pl.cdiv(HW, thw))

    out4 = pl.pallas_call(
        functools.partial(_head_kernel, n_anchors=n_anchors),
        out_shape=jax.ShapeDtypeStruct((B, n_anchors, HW, out_size), out_dt),
        grid_spec=pltpu.PrefetchScalarGridSpec(
            num_scalar_prefetch=0,
            grid=grid,
            in_specs=[
                pl.BlockSpec((None, c_in_pad, thw), lambda b, i: (b, 0, i)),
                pl.BlockSpec((n_anchors, c_in_pad, out_size),
                             lambda b, i: (0, 0, 0)),
                pl.BlockSpec((n_anchors, 1, out_size), lambda b, i: (0, 0, 0)),
                pl.BlockSpec((n_anchors, 1, 4), lambda b, i: (0, 0, 0)),
            ],
            out_specs=pl.BlockSpec((None, n_anchors, thw, out_size),
                                   lambda b, i: (b, 0, i, 0)),
        ),
        compiler_params=pltpu.CompilerParams(
            dimension_semantics=("parallel", "parallel")),
    )(x3, w_k, b_k, anc)

    # (B, na, H*W, os) -> (B, na, H, W, os): metadata-only, no data movement.
    # This is exactly the module's view(b, na, os, h, w).permute(0, 1, 3, 4, 2).
    return out4.reshape(B, n_anchors, H, W, out_size)


@functools.partial(jax.jit, static_argnames=("n_anchors", "n_classes"))
def head_forward(features, weights, biases, anchors, *, n_anchors, n_classes):
    """Whole head in one jit so the small per-level kernels share one launch."""
    return [
        head_level_forward(f, w, b, anchors[i], n_anchors, n_classes)
        for i, (f, w, b) in enumerate(zip(features, weights, biases))
    ]


def head_level_reference(x_nchw, weight, bias, anchors_level, n_anchors, n_classes):
    """Pure-JAX reference matching the PyTorch forward semantics (f32)."""
    out_size = n_classes + 5
    B, c_in, H, W = x_nchw.shape
    f = jnp.einsum('bchw,oc->bohw', x_nchw, weight) + bias[None, :, None, None]
    f = f.reshape(B, n_anchors, out_size, H, W).transpose(0, 1, 3, 4, 2)
    xy = 2.0 * jax.nn.sigmoid(f[..., :2]) - 0.5
    wh = (2.0 * jax.nn.sigmoid(f[..., 2:4])) ** 2 \
        * anchors_level[None, :, None, None, :]
    return jnp.concatenate([xy, wh, f[..., 4:]], axis=-1)


if __name__ == "__main__":
    key = jax.random.PRNGKey(0)

    # Small synthetic Head config.
    n_classes = 3
    stride = (8, 16, 32)
    anchors_px = [
        [(10, 13), (16, 30), (33, 23)],
        [(30, 61), (62, 45), (59, 119)],
        [(116, 90), (156, 198), (373, 326)],
    ]
    n_anchors = len(anchors_px[0])
    out_size = n_classes + 5
    c_out = n_anchors * out_size
    in_ches = (4, 8, 16)
    spatial = (16, 8, 4)
    B = 2

    # anchors buffer: anchors / stride  (as in the module __init__)
    anchors = (jnp.asarray(anchors_px, dtype=jnp.float32)
               / jnp.asarray(stride, dtype=jnp.float32)[:, None, None])

    # Deterministic synthetic inputs + 1x1 conv parameters per level.
    features, weights, biases = [], [], []
    for c_in, s in zip(in_ches, spatial):
        key, kx, kw, kb = jax.random.split(key, 4)
        features.append(jax.random.normal(kx, (B, c_in, s, s), jnp.float32))
        weights.append(0.1 * jax.random.normal(kw, (c_out, c_in), jnp.float32))
        biases.append(0.1 * jax.random.normal(kb, (c_out,), jnp.float32))

    # TODO(synk): training-time loss() (target assignment / IoU / BCE) is
    # data-dependent gather/scatter and not a kernel hot path; this script
    # implements the inference forward only.

    # f32 path (tight check against the pure-JAX reference).
    outs = head_forward(features, weights, biases, anchors,
                        n_anchors=n_anchors, n_classes=n_classes)
    outs = jax.block_until_ready(outs)
    for i in range(len(features)):
        ref = head_level_reference(features[i], weights[i], biases[i],
                                   anchors[i], n_anchors, n_classes)
        assert outs[i].shape == (B, n_anchors, spatial[i], spatial[i], out_size)
        assert outs[i].dtype == jnp.float32
        assert jnp.allclose(outs[i], ref, rtol=1e-4, atol=1e-5), f"level {i} f32 mismatch"

    # bf16 inference path: bf16 activations + weights in, bf16 out (halves the
    # x read and the output writeback); decode math stays f32 in-kernel, so
    # only matmul / storage rounding differs -> loose check.
    feats_bf16 = [f.astype(jnp.bfloat16) for f in features]
    outs_bf16 = head_forward(feats_bf16, weights, biases, anchors,
                             n_anchors=n_anchors, n_classes=n_classes)
    outs_bf16 = jax.block_until_ready(outs_bf16)
    for i in range(len(features)):
        ref = head_level_reference(features[i], weights[i], biases[i],
                                   anchors[i], n_anchors, n_classes)
        assert outs_bf16[i].dtype == jnp.bfloat16
        assert jnp.allclose(outs_bf16[i].astype(jnp.float32), ref,
                            rtol=1e-1, atol=1e-1), f"level {i} bf16 mismatch"

    print("KERNEL_OK")
</pallas_src>

<mosaic_0001>
module attributes {stable_mosaic.version = 11 : i64} {
  func.func @_head_kernel(%arg0: i32, %arg1: i32, %arg2: memref<1x8x256xf32, #tpu.memory_space<vmem>>, %arg3: memref<3x8x8xf32, #tpu.memory_space<vmem>>, %arg4: memref<3x1x8xf32, #tpu.memory_space<vmem>>, %arg5: memref<3x1x4xf32, #tpu.memory_space<vmem>>, %arg6: memref<1x3x256x8xf32, #tpu.memory_space<vmem>>) attributes {dimension_semantics = [#tpu.dimension_semantics<parallel>, #tpu.dimension_semantics<parallel>], iteration_bounds = array<i64: 2, 1>, scalar_prefetch = 0 : i64, scratch_operands = 0 : i64, tpu.core_type = #tpu.core_type<tc>, window_params = [{transform_indices = @transform_0, window_bounds = array<i64: 1, 8, 256>}, {pipeline_mode = #tpu.pipeline_mode<synchronous>, transform_indices = @transform_1, window_bounds = array<i64: 3, 8, 8>}, {pipeline_mode = #tpu.pipeline_mode<synchronous>, transform_indices = @transform_2, window_bounds = array<i64: 3, 1, 8>}, {pipeline_mode = #tpu.pipeline_mode<synchronous>, transform_indices = @transform_3, window_bounds = array<i64: 3, 1, 4>}, {transform_indices = @transform_4, window_bounds = array<i64: 1, 3, 256, 8>}]} {
    %c0 = arith.constant 0 : index
    %c0_0 = arith.constant 0 : index
    %c0_1 = arith.constant 0 : index
    %0 = vector.load %arg2[%c0, %c0_0, %c0_1] : memref<1x8x256xf32, #tpu.memory_space<vmem>>, vector<1x8x256xf32>
    %1 = vector.shape_cast %0 : vector<1x8x256xf32> to vector<8x256xf32>
    %c0_2 = arith.constant 0 : index
    %c0_3 = arith.constant 0 : index
    %c0_4 = arith.constant 0 : index
    %2 = vector.load %arg3[%c0_2, %c0_3, %c0_4] : memref<3x8x8xf32, #tpu.memory_space<vmem>>, vector<1x8x8xf32>
    %3 = vector.shape_cast %2 : vector<1x8x8xf32> to vector<8x8xf32>
    %cst = arith.constant dense<0.000000e+00> : vector<256x8xf32>
    %4 = tpu.matmul %1, %3, %cst {dimension_numbers = #tpu.dot_dimension_numbers<[0], [0], [1], [1], [0, 1, 1, 1], [], []>} : vector<8x256xf32>, vector<8x8xf32>, vector<256x8xf32> -> vector<256x8xf32>
    %c0_5 = arith.constant 0 : index
    %c0_6 = arith.constant 0 : index
    %c0_7 = arith.constant 0 : index
    %5 = vector.load %arg4[%c0_5, %c0_6, %c0_7] : memref<3x1x8xf32, #tpu.memory_space<vmem>>, vector<1x1x8xf32>
    %6 = vector.shape_cast %5 : vector<1x1x8xf32> to vector<1x8xf32>
    %7 = vector.broadcast %6 : vector<1x8xf32> to vector<256x8xf32>
    %8 = arith.addf %4, %7 : vector<256x8xf32>
    %c0_8 = arith.constant 0 : index
    %c0_9 = arith.constant 0 : index
    %c0_10 = arith.constant 0 : index
    %c0_11 = arith.constant 0 : index
    %9 = vector.load %arg6[%c0_8, %c0_9, %c0_10, %c0_11] : memref<1x3x256x8xf32, #tpu.memory_space<vmem>>, vector<1x1x256x8xf32>
    %10 = vector.shape_cast %9 : vector<1x1x256x8xf32> to vector<256x8xf32>
    %11 = vector.shape_cast %8 : vector<256x8xf32> to vector<1x1x256x8xf32>
    tpu.vector_store %arg6[%c0_8, %c0_9, %c0_10, %c0_11], %11 {strides = array<i32>} : memref<1x3x256x8xf32, #tpu.memory_space<vmem>>, vector<1x1x256x8xf32>,
    %12 = vector.extract_strided_slice %8 {offsets = [0, 0], sizes = [256, 4], strides = [1, 1]} : vector<256x8xf32> to vector<256x4xf32>
    %13 = arith.negf %12 : vector<256x4xf32>
    %14 = math.exp %13 : vector<256x4xf32>
    %cst_12 = arith.constant 1.000000e+00 : f32
    %15 = vector.broadcast %cst_12 : f32 to vector<256x4xf32>
    %16 = arith.addf %15, %14 : vector<256x4xf32>
    %17 = arith.divf %15, %16 : vector<256x4xf32>
    %cst_13 = arith.constant 2.000000e+00 : f32
    %18 = vector.broadcast %cst_13 : f32 to vector<256x4xf32>
    %19 = arith.mulf %18, %17 : vector<256x4xf32>
    %20 = tpu.iota {dimensions = array<i32: 1>} : vector<256x4xi32>
    %c2_i32 = arith.constant 2 : i32
    %21 = vector.broadcast %c2_i32 : i32 to vector<256x4xi32>
    %22 = arith.cmpi slt, %20, %21 : vector<256x4xi32>
    %cst_14 = arith.constant 5.000000e-01 : f32
    %23 = vector.broadcast %cst_14 : f32 to vector<256x4xf32>
    %24 = arith.subf %19, %23 : vector<256x4xf32>
    %25 = arith.mulf %19, %19 : vector<256x4xf32>
    %c0_15 = arith.constant 0 : index
    %c0_16 = arith.constant 0 : index
    %c0_17 = arith.constant 0 : index
    %26 = vector.load %arg5[%c0_15, %c0_16, %c0_17] : memref<3x1x4xf32, #tpu.memory_space<vmem>>, vector<1x1x4xf32>
    %27 = vector.shape_cast %26 : vector<1x1x4xf32> to vector<1x4xf32>
    %28 = vector.broadcast %27 : vector<1x4xf32> to vector<256x4xf32>
    %29 = arith.mulf %25, %28 : vector<256x4xf32>
    %30 = arith.select %22, %24, %29 : vector<256x4xi1>, vector<256x4xf32>
    %c0_18 = arith.constant 0 : index
    %c0_19 = arith.constant 0 : index
    %c0_20 = arith.constant 0 : index
    %c0_21 = arith.constant 0 : index
    %31 = vector.load %arg6[%c0_18, %c0_19, %c0_20, %c0_21] : memref<1x3x256x8xf32, #tpu.memory_space<vmem>>, vector<1x1x256x4xf32>
    %32 = vector.shape_cast %31 : vector<1x1x256x4xf32> to vector<256x4xf32>
    %33 = vector.shape_cast %30 : vector<256x4xf32> to vector<1x1x256x4xf32>
    tpu.vector_store %arg6[%c0_18, %c0_19, %c0_20, %c0_21], %33 {strides = array<i32>} : memref<1x3x256x8xf32, #tpu.memory_space<vmem>>, vector<1x1x256x4xf32>,
    %c1 = arith.constant 1 : index
    %c0_22 = arith.constant 0 : index
    %c0_23 = arith.constant 0 : index
    %34 = vector.load %arg3[%c1, %c0_22, %c0_23] : memref<3x8x8xf32, #tpu.memory_space<vmem>>, vector<1x8x8xf32>
    %35 = vector.shape_cast %34 : vector<1x8x8xf32> to vector<8x8xf32>
    %cst_24 = arith.constant dense<0.000000e+00> : vector<256x8xf32>
    %36 = tpu.matmul %1, %35, %cst_24 {dimension_numbers = #tpu.dot_dimension_numbers<[0], [0], [1], [1], [0, 1, 1, 1], [], []>} : vector<8x256xf32>, vector<8x8xf32>, vector<256x8xf32> -> vector<256x8xf32>
    %c1_25 = arith.constant 1 : index
    %c0_26 = arith.constant 0 : index
    %c0_27 = arith.constant 0 : index
    %37 = vector.load %arg4[%c1_25, %c0_26, %c0_27] : memref<3x1x8xf32, #tpu.memory_space<vmem>>, vector<1x1x8xf32>
    %38 = vector.shape_cast %37 : vector<1x1x8xf32> to vector<1x8xf32>
    %39 = vector.broadcast %38 : vector<1x8xf32> to vector<256x8xf32>
    %40 = arith.addf %36, %39 : vector<256x8xf32>
    %c0_28 = arith.constant 0 : index
    %c1_29 = arith.constant 1 : index
    %c0_30 = arith.constant 0 : index
    %c0_31 = arith.constant 0 : index
    %41 = vector.load %arg6[%c0_28, %c1_29, %c0_30, %c0_31] : memref<1x3x256x8xf32, #tpu.memory_space<vmem>>, vector<1x1x256x8xf32>
    %42 = vector.shape_cast %41 : vector<1x1x256x8xf32> to vector<256x8xf32>
    %43 = vector.shape_cast %40 : vector<256x8xf32> to vector<1x1x256x8xf32>
    tpu.vector_store %arg6[%c0_28, %c1_29, %c0_30, %c0_31], %43 {strides = array<i32>} : memref<1x3x256x8xf32, #tpu.memory_space<vmem>>, vector<1x1x256x8xf32>,
    %44 = vector.extract_strided_slice %40 {offsets = [0, 0], sizes = [256, 4], strides = [1, 1]} : vector<256x8xf32> to vector<256x4xf32>
    %45 = arith.negf %44 : vector<256x4xf32>
    %46 = math.exp %45 : vector<256x4xf32>
    %cst_32 = arith.constant 1.000000e+00 : f32
    %47 = vector.broadcast %cst_32 : f32 to vector<256x4xf32>
    %48 = arith.addf %47, %46 : vector<256x4xf32>
    %49 = arith.divf %47, %48 : vector<256x4xf32>
    %cst_33 = arith.constant 2.000000e+00 : f32
    %50 = vector.broadcast %cst_33 : f32 to vector<256x4xf32>
    %51 = arith.mulf %50, %49 : vector<256x4xf32>
    %52 = tpu.iota {dimensions = array<i32: 1>} : vector<256x4xi32>
    %c2_i32_34 = arith.constant 2 : i32
    %53 = vector.broadcast %c2_i32_34 : i32 to vector<256x4xi32>
    %54 = arith.cmpi slt, %52, %53 : vector<256x4xi32>
    %cst_35 = arith.constant 5.000000e-01 : f32
    %55 = vector.broadcast %cst_35 : f32 to vector<256x4xf32>
    %56 = arith.subf %51, %55 : vector<256x4xf32>
    %57 = arith.mulf %51, %51 : vector<256x4xf32>
    %c1_36 = arith.constant 1 : index
    %c0_37 = arith.constant 0 : index
    %c0_38 = arith.constant 0 : index
    %58 = vector.load %arg5[%c1_36, %c0_37, %c0_38] : memref<3x1x4xf32, #tpu.memory_space<vmem>>, vector<1x1x4xf32>
    %59 = vector.shape_cast %58 : vector<1x1x4xf32> to vector<1x4xf32>
    %60 = vector.broadcast %59 : vector<1x4xf32> to vector<256x4xf32>
    %61 = arith.mulf %57, %60 : vector<256x4xf32>
    %62 = arith.select %54, %56, %61 : vector<256x4xi1>, vector<256x4xf32>
    %c0_39 = arith.constant 0 : index
    %c1_40 = arith.constant 1 : index
    %c0_41 = arith.constant 0 : index
    %c0_42 = arith.constant 0 : index
    %63 = vector.load %arg6[%c0_39, %c1_40, %c0_41, %c0_42] : memref<1x3x256x8xf32, #tpu.memory_space<vmem>>, vector<1x1x256x4xf32>
    %64 = vector.shape_cast %63 : vector<1x1x256x4xf32> to vector<256x4xf32>
    %65 = vector.shape_cast %62 : vector<256x4xf32> to vector<1x1x256x4xf32>
    tpu.vector_store %arg6[%c0_39, %c1_40, %c0_41, %c0_42], %65 {strides = array<i32>} : memref<1x3x256x8xf32, #tpu.memory_space<vmem>>, vector<1x1x256x4xf32>,
    %c2 = arith.constant 2 : index
    %c0_43 = arith.constant 0 : index
    %c0_44 = arith.constant 0 : index
    %66 = vector.load %arg3[%c2, %c0_43, %c0_44] : memref<3x8x8xf32, #tpu.memory_space<vmem>>, vector<1x8x8xf32>
    %67 = vector.shape_cast %66 : vector<1x8x8xf32> to vector<8x8xf32>
    %cst_45 = arith.constant dense<0.000000e+00> : vector<256x8xf32>
    %68 = tpu.matmul %1, %67, %cst_45 {dimension_numbers = #tpu.dot_dimension_numbers<[0], [0], [1], [1], [0, 1, 1, 1], [], []>} : vector<8x256xf32>, vector<8x8xf32>, vector<256x8xf32> -> vector<256x8xf32>
    %c2_46 = arith.constant 2 : index
    %c0_47 = arith.constant 0 : index
    %c0_48 = arith.constant 0 : index
    %69 = vector.load %arg4[%c2_46, %c0_47, %c0_48] : memref<3x1x8xf32, #tpu.memory_space<vmem>>, vector<1x1x8xf32>
    %70 = vector.shape_cast %69 : vector<1x1x8xf32> to vector<1x8xf32>
    %71 = vector.broadcast %70 : vector<1x8xf32> to vector<256x8xf32>
    %72 = arith.addf %68, %71 : vector<256x8xf32>
    %c0_49 = arith.constant 0 : index
    %c2_50 = arith.constant 2 : index
    %c0_51 = arith.constant 0 : index
    %c0_52 = arith.constant 0 : index
    %73 = vector.load %arg6[%c0_49, %c2_50, %c0_51, %c0_52] : memref<1x3x256x8xf32, #tpu.memory_space<vmem>>, vector<1x1x256x8xf32>
    %74 = vector.shape_cast %73 : vector<1x1x256x8xf32> to vector<256x8xf32>
    %75 = vector.shape_cast %72 : vector<256x8xf32> to vector<1x1x256x8xf32>
    tpu.vector_store %arg6[%c0_49, %c2_50, %c0_51, %c0_52], %75 {strides = array<i32>} : memref<1x3x256x8xf32, #tpu.memory_space<vmem>>, vector<1x1x256x8xf32>,
    %76 = vector.extract_strided_slice %72 {offsets = [0, 0], sizes = [256, 4], strides = [1, 1]} : vector<256x8xf32> to vector<256x4xf32>
    %77 = arith.negf %76 : vector<256x4xf32>
    %78 = math.exp %77 : vector<256x4xf32>
    %cst_53 = arith.constant 1.000000e+00 : f32
    %79 = vector.broadcast %cst_53 : f32 to vector<256x4xf32>
    %80 = arith.addf %79, %78 : vector<256x4xf32>
    %81 = arith.divf %79, %80 : vector<256x4xf32>
    %cst_54 = arith.constant 2.000000e+00 : f32
    %82 = vector.broadcast %cst_54 : f32 to vector<256x4xf32>
    %83 = arith.mulf %82, %81 : vector<256x4xf32>
    %84 = tpu.iota {dimensions = array<i32: 1>} : vector<256x4xi32>
    %c2_i32_55 = arith.constant 2 : i32
    %85 = vector.broadcast %c2_i32_55 : i32 to vector<256x4xi32>
    %86 = arith.cmpi slt, %84, %85 : vector<256x4xi32>
    %cst_56 = arith.constant 5.000000e-01 : f32
    %87 = vector.broadcast %cst_56 : f32 to vector<256x4xf32>
    %88 = arith.subf %83, %87 : vector<256x4xf32>
    %89 = arith.mulf %83, %83 : vector<256x4xf32>
    %c2_57 = arith.constant 2 : index
    %c0_58 = arith.constant 0 : index
    %c0_59 = arith.constant 0 : index
    %90 = vector.load %arg5[%c2_57, %c0_58, %c0_59] : memref<3x1x4xf32, #tpu.memory_space<vmem>>, vector<1x1x4xf32>
    %91 = vector.shape_cast %90 : vector<1x1x4xf32> to vector<1x4xf32>
    %92 = vector.broadcast %91 : vector<1x4xf32> to vector<256x4xf32>
    %93 = arith.mulf %89, %92 : vector<256x4xf32>
    %94 = arith.select %86, %88, %93 : vector<256x4xi1>, vector<256x4xf32>
    %c0_60 = arith.constant 0 : index
    %c2_61 = arith.constant 2 : index
    %c0_62 = arith.constant 0 : index
    %c0_63 = arith.constant 0 : index
    %95 = vector.load %arg6[%c0_60, %c2_61, %c0_62, %c0_63] : memref<1x3x256x8xf32, #tpu.memory_space<vmem>>, vector<1x1x256x4xf32>
    %96 = vector.shape_cast %95 : vector<1x1x256x4xf32> to vector<256x4xf32>
    %97 = vector.shape_cast %94 : vector<256x4xf32> to vector<1x1x256x4xf32>
    tpu.vector_store %arg6[%c0_60, %c2_61, %c0_62, %c0_63], %97 {strides = array<i32>} : memref<1x3x256x8xf32, #tpu.memory_space<vmem>>, vector<1x1x256x4xf32>,
    return
  }
  func.func @transform_0(%arg0: i32, %arg1: i32) -> (i32, i32, i32) {
    %c0_i32 = arith.constant 0 : i32
    %c0_i32_0 = arith.constant 0 : i32
    return %arg0, %c0_i32, %arg1 : i32, i32, i32
  }
  func.func @transform_1(%arg0: i32, %arg1: i32) -> (i32, i32, i32) {
    %c0_i32 = arith.constant 0 : i32
    %c0_i32_0 = arith.constant 0 : i32
    %c0_i32_1 = arith.constant 0 : i32
    %c0_i32_2 = arith.constant 0 : i32
    return %c0_i32, %c0_i32_0, %c0_i32_1 : i32, i32, i32
  }
  func.func @transform_2(%arg0: i32, %arg1: i32) -> (i32, i32, i32) {
    %c0_i32 = arith.constant 0 : i32
    %c0_i32_0 = arith.constant 0 : i32
    %c0_i32_1 = arith.constant 0 : i32
    %c0_i32_2 = arith.constant 0 : i32
    return %c0_i32, %c0_i32_0, %c0_i32_1 : i32, i32, i32
  }
  func.func @transform_3(%arg0: i32, %arg1: i32) -> (i32, i32, i32) {
    %c0_i32 = arith.constant 0 : i32
    %c0_i32_0 = arith.constant 0 : i32
    %c0_i32_1 = arith.constant 0 : i32
    %c0_i32_2 = arith.constant 0 : i32
    return %c0_i32, %c0_i32_0, %c0_i32_1 : i32, i32, i32
  }
  func.func @transform_4(%arg0: i32, %arg1: i32) -> (i32, i32, i32, i32) {
    %c0_i32 = arith.constant 0 : i32
    %c0_i32_0 = arith.constant 0 : i32
    %c0_i32_1 = arith.constant 0 : i32
    return %arg0, %c0_i32, %arg1, %c0_i32_0 : i32, i32, i32, i32
  }
}

module attributes {stable_mosaic.version = 11 : i64} {
  func.func @_head_kernel(%arg0: i32, %arg1: i32, %arg2: memref<1x8x64xf32, #tpu.memory_space<vmem>>, %arg3: memref<3x8x8xf32, #tpu.memory_space<vmem>>, %arg4: memref<3x1x8xf32, #tpu.memory_space<vmem>>, %arg5: memref<3x1x4xf32, #tpu.memory_space<vmem>>, %arg6: memref<1x3x64x8xf32, #tpu.memory_space<vmem>>) attributes {dimension_semantics = [#tpu.dimension_semantics<parallel>, #tpu.dimension_semantics<parallel>], iteration_bounds = array<i64: 2, 1>, scalar_prefetch = 0 : i64, scratch_operands = 0 : i64, tpu.core_type = #tpu.core_type<tc>, window_params = [{transform_indices = @transform_0, window_bounds = array<i64: 1, 8, 64>}, {pipeline_mode = #tpu.pipeline_mode<synchronous>, transform_indices = @transform_1, window_bounds = array<i64: 3, 8, 8>}, {pipeline_mode = #tpu.pipeline_mode<synchronous>, transform_indices = @transform_2, window_bounds = array<i64: 3, 1, 8>}, {pipeline_mode = #tpu.pipeline_mode<synchronous>, transform_indices = @transform_3, window_bounds = array<i64: 3, 1, 4>}, {transform_indices = @transform_4, window_bounds = array<i64: 1, 3, 64, 8>}]} {
    %c0 = arith.constant 0 : index
    %c0_0 = arith.constant 0 : index
    %c0_1 = arith.constant 0 : index
    %0 = vector.load %arg2[%c0, %c0_0, %c0_1] : memref<1x8x64xf32, #tpu.memory_space<vmem>>, vector<1x8x64xf32>
    %1 = vector.shape_cast %0 : vector<1x8x64xf32> to vector<8x64xf32>
    %c0_2 = arith.constant 0 : index
    %c0_3 = arith.constant 0 : index
    %c0_4 = arith.constant 0 : index
    %2 = vector.load %arg3[%c0_2, %c0_3, %c0_4] : memref<3x8x8xf32, #tpu.memory_space<vmem>>, vector<1x8x8xf32>
    %3 = vector.shape_cast %2 : vector<1x8x8xf32> to vector<8x8xf32>
    %cst = arith.constant dense<0.000000e+00> : vector<64x8xf32>
    %4 = tpu.matmul %1, %3, %cst {dimension_numbers = #tpu.dot_dimension_numbers<[0], [0], [1], [1], [0, 1, 1, 1], [], []>} : vector<8x64xf32>, vector<8x8xf32>, vector<64x8xf32> -> vector<64x8xf32>
    %c0_5 = arith.constant 0 : index
    %c0_6 = arith.constant 0 : index
    %c0_7 = arith.constant 0 : index
    %5 = vector.load %arg4[%c0_5, %c0_6, %c0_7] : memref<3x1x8xf32, #tpu.memory_space<vmem>>, vector<1x1x8xf32>
    %6 = vector.shape_cast %5 : vector<1x1x8xf32> to vector<1x8xf32>
    %7 = vector.broadcast %6 : vector<1x8xf32> to vector<64x8xf32>
    %8 = arith.addf %4, %7 : vector<64x8xf32>
    %c0_8 = arith.constant 0 : index
    %c0_9 = arith.constant 0 : index
    %c0_10 = arith.constant 0 : index
    %c0_11 = arith.constant 0 : index
    %9 = vector.load %arg6[%c0_8, %c0_9, %c0_10, %c0_11] : memref<1x3x64x8xf32, #tpu.memory_space<vmem>>, vector<1x1x64x8xf32>
    %10 = vector.shape_cast %9 : vector<1x1x64x8xf32> to vector<64x8xf32>
    %11 = vector.shape_cast %8 : vector<64x8xf32> to vector<1x1x64x8xf32>
    tpu.vector_store %arg6[%c0_8, %c0_9, %c0_10, %c0_11], %11 {strides = array<i32>} : memref<1x3x64x8xf32, #tpu.memory_space<vmem>>, vector<1x1x64x8xf32>,
    %12 = vector.extract_strided_slice %8 {offsets = [0, 0], sizes = [64, 4], strides = [1, 1]} : vector<64x8xf32> to vector<64x4xf32>
    %13 = arith.negf %12 : vector<64x4xf32>
    %14 = math.exp %13 : vector<64x4xf32>
    %cst_12 = arith.constant 1.000000e+00 : f32
    %15 = vector.broadcast %cst_12 : f32 to vector<64x4xf32>
    %16 = arith.addf %15, %14 : vector<64x4xf32>
    %17 = arith.divf %15, %16 : vector<64x4xf32>
    %cst_13 = arith.constant 2.000000e+00 : f32
    %18 = vector.broadcast %cst_13 : f32 to vector<64x4xf32>
    %19 = arith.mulf %18, %17 : vector<64x4xf32>
    %20 = tpu.iota {dimensions = array<i32: 1>} : vector<64x4xi32>
    %c2_i32 = arith.constant 2 : i32
    %21 = vector.broadcast %c2_i32 : i32 to vector<64x4xi32>
    %22 = arith.cmpi slt, %20, %21 : vector<64x4xi32>
    %cst_14 = arith.constant 5.000000e-01 : f32
    %23 = vector.broadcast %cst_14 : f32 to vector<64x4xf32>
    %24 = arith.subf %19, %23 : vector<64x4xf32>
    %25 = arith.mulf %19, %19 : vector<64x4xf32>
    %c0_15 = arith.constant 0 : index
    %c0_16 = arith.constant 0 : index
    %c0_17 = arith.constant 0 : index
    %26 = vector.load %arg5[%c0_15, %c0_16, %c0_17] : memref<3x1x4xf32, #tpu.memory_space<vmem>>, vector<1x1x4xf32>
    %27 = vector.shape_cast %26 : vector<1x1x4xf32> to vector<1x4xf32>
    %28 = vector.broadcast %27 : vector<1x4xf32> to vector<64x4xf32>
    %29 = arith.mulf %25, %28 : vector<64x4xf32>
    %30 = arith.select %22, %24, %29 : vector<64x4xi1>, vector<64x4xf32>
    %c0_18 = arith.constant 0 : index
    %c0_19 = arith.constant 0 : index
    %c0_20 = arith.constant 0 : index
    %c0_21 = arith.constant 0 : index
    %31 = vector.load %arg6[%c0_18, %c0_19, %c0_20, %c0_21] : memref<1x3x64x8xf32, #tpu.memory_space<vmem>>, vector<1x1x64x4xf32>
    %32 = vector.shape_cast %31 : vector<1x1x64x4xf32> to vector<64x4xf32>
    %33 = vector.shape_cast %30 : vector<64x4xf32> to vector<1x1x64x4xf32>
    tpu.vector_store %arg6[%c0_18, %c0_19, %c0_20, %c0_21], %33 {strides = array<i32>} : memref<1x3x64x8xf32, #tpu.memory_space<vmem>>, vector<1x1x64x4xf32>,
    %c1 = arith.constant 1 : index
    %c0_22 = arith.constant 0 : index
    %c0_23 = arith.constant 0 : index
    %34 = vector.load %arg3[%c1, %c0_22, %c0_23] : memref<3x8x8xf32, #tpu.memory_space<vmem>>, vector<1x8x8xf32>
    %35 = vector.shape_cast %34 : vector<1x8x8xf32> to vector<8x8xf32>
    %cst_24 = arith.constant dense<0.000000e+00> : vector<64x8xf32>
    %36 = tpu.matmul %1, %35, %cst_24 {dimension_numbers = #tpu.dot_dimension_numbers<[0], [0], [1], [1], [0, 1, 1, 1], [], []>} : vector<8x64xf32>, vector<8x8xf32>, vector<64x8xf32> -> vector<64x8xf32>
    %c1_25 = arith.constant 1 : index
    %c0_26 = arith.constant 0 : index
    %c0_27 = arith.constant 0 : index
    %37 = vector.load %arg4[%c1_25, %c0_26, %c0_27] : memref<3x1x8xf32, #tpu.memory_space<vmem>>, vector<1x1x8xf32>
    %38 = vector.shape_cast %37 : vector<1x1x8xf32> to vector<1x8xf32>
    %39 = vector.broadcast %38 : vector<1x8xf32> to vector<64x8xf32>
    %40 = arith.addf %36, %39 : vector<64x8xf32>
    %c0_28 = arith.constant 0 : index
    %c1_29 = arith.constant 1 : index
    %c0_30 = arith.constant 0 : index
    %c0_31 = arith.constant 0 : index
    %41 = vector.load %arg6[%c0_28, %c1_29, %c0_30, %c0_31] : memref<1x3x64x8xf32, #tpu.memory_space<vmem>>, vector<1x1x64x8xf32>
    %42 = vector.shape_cast %41 : vector<1x1x64x8xf32> to vector<64x8xf32>
    %43 = vector.shape_cast %40 : vector<64x8xf32> to vector<1x1x64x8xf32>
    tpu.vector_store %arg6[%c0_28, %c1_29, %c0_30, %c0_31], %43 {strides = array<i32>} : memref<1x3x64x8xf32, #tpu.memory_space<vmem>>, vector<1x1x64x8xf32>,
    %44 = vector.extract_strided_slice %40 {offsets = [0, 0], sizes = [64, 4], strides = [1, 1]} : vector<64x8xf32> to vector<64x4xf32>
    %45 = arith.negf %44 : vector<64x4xf32>
    %46 = math.exp %45 : vector<64x4xf32>
    %cst_32 = arith.constant 1.000000e+00 : f32
    %47 = vector.broadcast %cst_32 : f32 to vector<64x4xf32>
    %48 = arith.addf %47, %46 : vector<64x4xf32>
    %49 = arith.divf %47, %48 : vector<64x4xf32>
    %cst_33 = arith.constant 2.000000e+00 : f32
    %50 = vector.broadcast %cst_33 : f32 to vector<64x4xf32>
    %51 = arith.mulf %50, %49 : vector<64x4xf32>
    %52 = tpu.iota {dimensions = array<i32: 1>} : vector<64x4xi32>
    %c2_i32_34 = arith.constant 2 : i32
    %53 = vector.broadcast %c2_i32_34 : i32 to vector<64x4xi32>
    %54 = arith.cmpi slt, %52, %53 : vector<64x4xi32>
    %cst_35 = arith.constant 5.000000e-01 : f32
    %55 = vector.broadcast %cst_35 : f32 to vector<64x4xf32>
    %56 = arith.subf %51, %55 : vector<64x4xf32>
    %57 = arith.mulf %51, %51 : vector<64x4xf32>
    %c1_36 = arith.constant 1 : index
    %c0_37 = arith.constant 0 : index
    %c0_38 = arith.constant 0 : index
    %58 = vector.load %arg5[%c1_36, %c0_37, %c0_38] : memref<3x1x4xf32, #tpu.memory_space<vmem>>, vector<1x1x4xf32>
    %59 = vector.shape_cast %58 : vector<1x1x4xf32> to vector<1x4xf32>
    %60 = vector.broadcast %59 : vector<1x4xf32> to vector<64x4xf32>
    %61 = arith.mulf %57, %60 : vector<64x4xf32>
    %62 = arith.select %54, %56, %61 : vector<64x4xi1>, vector<64x4xf32>
    %c0_39 = arith.constant 0 : index
    %c1_40 = arith.constant 1 : index
    %c0_41 = arith.constant 0 : index
    %c0_42 = arith.constant 0 : index
    %63 = vector.load %arg6[%c0_39, %c1_40, %c0_41, %c0_42] : memref<1x3x64x8xf32, #tpu.memory_space<vmem>>, vector<1x1x64x4xf32>
    %64 = vector.shape_cast %63 : vector<1x1x64x4xf32> to vector<64x4xf32>
    %65 = vector.shape_cast %62 : vector<64x4xf32> to vector<1x1x64x4xf32>
    tpu.vector_store %arg6[%c0_39, %c1_40, %c0_41, %c0_42], %65 {strides = array<i32>} : memref<1x3x64x8xf32, #tpu.memory_space<vmem>>, vector<1x1x64x4xf32>,
    %c2 = arith.constant 2 : index
    %c0_43 = arith.constant 0 : index
    %c0_44 = arith.constant 0 : index
    %66 = vector.load %arg3[%c2, %c0_43, %c0_44] : memref<3x8x8xf32, #tpu.memory_space<vmem>>, vector<1x8x8xf32>
    %67 = vector.shape_cast %66 : vector<1x8x8xf32> to vector<8x8xf32>
    %cst_45 = arith.constant dense<0.000000e+00> : vector<64x8xf32>
    %68 = tpu.matmul %1, %67, %cst_45 {dimension_numbers = #tpu.dot_dimension_numbers<[0], [0], [1], [1], [0, 1, 1, 1], [], []>} : vector<8x64xf32>, vector<8x8xf32>, vector<64x8xf32> -> vector<64x8xf32>
    %c2_46 = arith.constant 2 : index
    %c0_47 = arith.constant 0 : index
    %c0_48 = arith.constant 0 : index
    %69 = vector.load %arg4[%c2_46, %c0_47, %c0_48] : memref<3x1x8xf32, #tpu.memory_space<vmem>>, vector<1x1x8xf32>
    %70 = vector.shape_cast %69 : vector<1x1x8xf32> to vector<1x8xf32>
    %71 = vector.broadcast %70 : vector<1x8xf32> to vector<64x8xf32>
    %72 = arith.addf %68, %71 : vector<64x8xf32>
    %c0_49 = arith.constant 0 : index
    %c2_50 = arith.constant 2 : index
    %c0_51 = arith.constant 0 : index
    %c0_52 = arith.constant 0 : index
    %73 = vector.load %arg6[%c0_49, %c2_50, %c0_51, %c0_52] : memref<1x3x64x8xf32, #tpu.memory_space<vmem>>, vector<1x1x64x8xf32>
    %74 = vector.shape_cast %73 : vector<1x1x64x8xf32> to vector<64x8xf32>
    %75 = vector.shape_cast %72 : vector<64x8xf32> to vector<1x1x64x8xf32>
    tpu.vector_store %arg6[%c0_49, %c2_50, %c0_51, %c0_52], %75 {strides = array<i32>} : memref<1x3x64x8xf32, #tpu.memory_space<vmem>>, vector<1x1x64x8xf32>,
    %76 = vector.extract_strided_slice %72 {offsets = [0, 0], sizes = [64, 4], strides = [1, 1]} : vector<64x8xf32> to vector<64x4xf32>
    %77 = arith.negf %76 : vector<64x4xf32>
    %78 = math.exp %77 : vector<64x4xf32>
    %cst_53 = arith.constant 1.000000e+00 : f32
    %79 = vector.broadcast %cst_53 : f32 to vector<64x4xf32>
    %80 = arith.addf %79, %78 : vector<64x4xf32>
    %81 = arith.divf %79, %80 : vector<64x4xf32>
    %cst_54 = arith.constant 2.000000e+00 : f32
    %82 = vector.broadcast %cst_54 : f32 to vector<64x4xf32>
    %83 = arith.mulf %82, %81 : vector<64x4xf32>
    %84 = tpu.iota {dimensions = array<i32: 1>} : vector<64x4xi32>
    %c2_i32_55 = arith.constant 2 : i32
    %85 = vector.broadcast %c2_i32_55 : i32 to vector<64x4xi32>
    %86 = arith.cmpi slt, %84, %85 : vector<64x4xi32>
    %cst_56 = arith.constant 5.000000e-01 : f32
    %87 = vector.broadcast %cst_56 : f32 to vector<64x4xf32>
    %88 = arith.subf %83, %87 : vector<64x4xf32>
    %89 = arith.mulf %83, %83 : vector<64x4xf32>
    %c2_57 = arith.constant 2 : index
    %c0_58 = arith.constant 0 : index
    %c0_59 = arith.constant 0 : index
    %90 = vector.load %arg5[%c2_57, %c0_58, %c0_59] : memref<3x1x4xf32, #tpu.memory_space<vmem>>, vector<1x1x4xf32>
    %91 = vector.shape_cast %90 : vector<1x1x4xf32> to vector<1x4xf32>
    %92 = vector.broadcast %91 : vector<1x4xf32> to vector<64x4xf32>
    %93 = arith.mulf %89, %92 : vector<64x4xf32>
    %94 = arith.select %86, %88, %93 : vector<64x4xi1>, vector<64x4xf32>
    %c0_60 = arith.constant 0 : index
    %c2_61 = arith.constant 2 : index
    %c0_62 = arith.constant 0 : index
    %c0_63 = arith.constant 0 : index
    %95 = vector.load %arg6[%c0_60, %c2_61, %c0_62, %c0_63] : memref<1x3x64x8xf32, #tpu.memory_space<vmem>>, vector<1x1x64x4xf32>
    %96 = vector.shape_cast %95 : vector<1x1x64x4xf32> to vector<64x4xf32>
    %97 = vector.shape_cast %94 : vector<64x4xf32> to vector<1x1x64x4xf32>
    tpu.vector_store %arg6[%c0_60, %c2_61, %c0_62, %c0_63], %97 {strides = array<i32>} : memref<1x3x64x8xf32, #tpu.memory_space<vmem>>, vector<1x1x64x4xf32>,
    return
  }
  func.func @transform_0(%arg0: i32, %arg1: i32) -> (i32, i32, i32) {
    %c0_i32 = arith.constant 0 : i32
    %c0_i32_0 = arith.constant 0 : i32
    return %arg0, %c0_i32, %arg1 : i32, i32, i32
  }
  func.func @transform_1(%arg0: i32, %arg1: i32) -> (i32, i32, i32) {
    %c0_i32 = arith.constant 0 : i32
    %c0_i32_0 = arith.constant 0 : i32
    %c0_i32_1 = arith.constant 0 : i32
    %c0_i32_2 = arith.constant 0 : i32
    return %c0_i32, %c0_i32_0, %c0_i32_1 : i32, i32, i32
  }
  func.func @transform_2(%arg0: i32, %arg1: i32) -> (i32, i32, i32) {
    %c0_i32 = arith.constant 0 : i32
    %c0_i32_0 = arith.constant 0 : i32
    %c0_i32_1 = arith.constant 0 : i32
    %c0_i32_2 = arith.constant 0 : i32
    return %c0_i32, %c0_i32_0, %c0_i32_1 : i32, i32, i32
  }
  func.func @transform_3(%arg0: i32, %arg1: i32) -> (i32, i32, i32) {
    %c0_i32 = arith.constant 0 : i32
    %c0_i32_0 = arith.constant 0 : i32
    %c0_i32_1 = arith.constant 0 : i32
    %c0_i32_2 = arith.constant 0 : i32
    return %c0_i32, %c0_i32_0, %c0_i32_1 : i32, i32, i32
  }
  func.func @transform_4(%arg0: i32, %arg1: i32) -> (i32, i32, i32, i32) {
    %c0_i32 = arith.constant 0 : i32
    %c0_i32_0 = arith.constant 0 : i32
    %c0_i32_1 = arith.constant 0 : i32
    return %arg0, %c0_i32, %arg1, %c0_i32_0 : i32, i32, i32, i32
  }
}

module attributes {stable_mosaic.version = 11 : i64} {
  func.func @_head_kernel(%arg0: i32, %arg1: i32, %arg2: memref<1x16x16xf32, #tpu.memory_space<vmem>>, %arg3: memref<3x16x8xf32, #tpu.memory_space<vmem>>, %arg4: memref<3x1x8xf32, #tpu.memory_space<vmem>>, %arg5: memref<3x1x4xf32, #tpu.memory_space<vmem>>, %arg6: memref<1x3x16x8xf32, #tpu.memory_space<vmem>>) attributes {dimension_semantics = [#tpu.dimension_semantics<parallel>, #tpu.dimension_semantics<parallel>], iteration_bounds = array<i64: 2, 1>, scalar_prefetch = 0 : i64, scratch_operands = 0 : i64, tpu.core_type = #tpu.core_type<tc>, window_params = [{transform_indices = @transform_0, window_bounds = array<i64: 1, 16, 16>}, {pipeline_mode = #tpu.pipeline_mode<synchronous>, transform_indices = @transform_1, window_bounds = array<i64: 3, 16, 8>}, {pipeline_mode = #tpu.pipeline_mode<synchronous>, transform_indices = @transform_2, window_bounds = array<i64: 3, 1, 8>}, {pipeline_mode = #tpu.pipeline_mode<synchronous>, transform_indices = @transform_3, window_bounds = array<i64: 3, 1, 4>}, {transform_indices = @transform_4, window_bounds = array<i64: 1, 3, 16, 8>}]} {
    %c0 = arith.constant 0 : index
    %c0_0 = arith.constant 0 : index
    %c0_1 = arith.constant 0 : index
    %0 = vector.load %arg2[%c0, %c0_0, %c0_1] : memref<1x16x16xf32, #tpu.memory_space<vmem>>, vector<1x16x16xf32>
    %1 = vector.shape_cast %0 : vector<1x16x16xf32> to vector<16x16xf32>
    %c0_2 = arith.constant 0 : index
    %c0_3 = arith.constant 0 : index
    %c0_4 = arith.constant 0 : index
    %2 = vector.load %arg3[%c0_2, %c0_3, %c0_4] : memref<3x16x8xf32, #tpu.memory_space<vmem>>, vector<1x16x8xf32>
    %3 = vector.shape_cast %2 : vector<1x16x8xf32> to vector<16x8xf32>
    %cst = arith.constant dense<0.000000e+00> : vector<16x8xf32>
    %4 = tpu.matmul %1, %3, %cst {dimension_numbers = #tpu.dot_dimension_numbers<[0], [0], [1], [1], [0, 1, 1, 1], [], []>} : vector<16x16xf32>, vector<16x8xf32>, vector<16x8xf32> -> vector<16x8xf32>
    %c0_5 = arith.constant 0 : index
    %c0_6 = arith.constant 0 : index
    %c0_7 = arith.constant 0 : index
    %5 = vector.load %arg4[%c0_5, %c0_6, %c0_7] : memref<3x1x8xf32, #tpu.memory_space<vmem>>, vector<1x1x8xf32>
    %6 = vector.shape_cast %5 : vector<1x1x8xf32> to vector<1x8xf32>
    %7 = vector.broadcast %6 : vector<1x8xf32> to vector<16x8xf32>
    %8 = arith.addf %4, %7 : vector<16x8xf32>
    %c0_8 = arith.constant 0 : index
    %c0_9 = arith.constant 0 : index
    %c0_10 = arith.constant 0 : index
    %c0_11 = arith.constant 0 : index
    %9 = vector.load %arg6[%c0_8, %c0_9, %c0_10, %c0_11] : memref<1x3x16x8xf32, #tpu.memory_space<vmem>>, vector<1x1x16x8xf32>
    %10 = vector.shape_cast %9 : vector<1x1x16x8xf32> to vector<16x8xf32>
    %11 = vector.shape_cast %8 : vector<16x8xf32> to vector<1x1x16x8xf32>
    tpu.vector_store %arg6[%c0_8, %c0_9, %c0_10, %c0_11], %11 {strides = array<i32>} : memref<1x3x16x8xf32, #tpu.memory_space<vmem>>, vector<1x1x16x8xf32>,
    %12 = vector.extract_strided_slice %8 {offsets = [0, 0], sizes = [16, 4], strides = [1, 1]} : vector<16x8xf32> to vector<16x4xf32>
    %13 = arith.negf %12 : vector<16x4xf32>
    %14 = math.exp %13 : vector<16x4xf32>
    %cst_12 = arith.constant 1.000000e+00 : f32
    %15 = vector.broadcast %cst_12 : f32 to vector<16x4xf32>
    %16 = arith.addf %15, %14 : vector<16x4xf32>
    %17 = arith.divf %15, %16 : vector<16x4xf32>
    %cst_13 = arith.constant 2.000000e+00 : f32
    %18 = vector.broadcast %cst_13 : f32 to vector<16x4xf32>
    %19 = arith.mulf %18, %17 : vector<16x4xf32>
    %20 = tpu.iota {dimensions = array<i32: 1>} : vector<16x4xi32>
    %c2_i32 = arith.constant 2 : i32
    %21 = vector.broadcast %c2_i32 : i32 to vector<16x4xi32>
    %22 = arith.cmpi slt, %20, %21 : vector<16x4xi32>
    %cst_14 = arith.constant 5.000000e-01 : f32
    %23 = vector.broadcast %cst_14 : f32 to vector<16x4xf32>
    %24 = arith.subf %19, %23 : vector<16x4xf32>
    %25 = arith.mulf %19, %19 : vector<16x4xf32>
    %c0_15 = arith.constant 0 : index
    %c0_16 = arith.constant 0 : index
    %c0_17 = arith.constant 0 : index
    %26 = vector.load %arg5[%c0_15, %c0_16, %c0_17] : memref<3x1x4xf32, #tpu.memory_space<vmem>>, vector<1x1x4xf32>
    %27 = vector.shape_cast %26 : vector<1x1x4xf32> to vector<1x4xf32>
    %28 = vector.broadcast %27 : vector<1x4xf32> to vector<16x4xf32>
    %29 = arith.mulf %25, %28 : vector<16x4xf32>
    %30 = arith.select %22, %24, %29 : vector<16x4xi1>, vector<16x4xf32>
    %c0_18 = arith.constant 0 : index
    %c0_19 = arith.constant 0 : index
    %c0_20 = arith.constant 0 : index
    %c0_21 = arith.constant 0 : index
    %31 = vector.load %arg6[%c0_18, %c0_19, %c0_20, %c0_21] : memref<1x3x16x8xf32, #tpu.memory_space<vmem>>, vector<1x1x16x4xf32>
    %32 = vector.shape_cast %31 : vector<1x1x16x4xf32> to vector<16x4xf32>
    %33 = vector.shape_cast %30 : vector<16x4xf32> to vector<1x1x16x4xf32>
    tpu.vector_store %arg6[%c0_18, %c0_19, %c0_20, %c0_21], %33 {strides = array<i32>} : memref<1x3x16x8xf32, #tpu.memory_space<vmem>>, vector<1x1x16x4xf32>,
    %c1 = arith.constant 1 : index
    %c0_22 = arith.constant 0 : index
    %c0_23 = arith.constant 0 : index
    %34 = vector.load %arg3[%c1, %c0_22, %c0_23] : memref<3x16x8xf32, #tpu.memory_space<vmem>>, vector<1x16x8xf32>
    %35 = vector.shape_cast %34 : vector<1x16x8xf32> to vector<16x8xf32>
    %cst_24 = arith.constant dense<0.000000e+00> : vector<16x8xf32>
    %36 = tpu.matmul %1, %35, %cst_24 {dimension_numbers = #tpu.dot_dimension_numbers<[0], [0], [1], [1], [0, 1, 1, 1], [], []>} : vector<16x16xf32>, vector<16x8xf32>, vector<16x8xf32> -> vector<16x8xf32>
    %c1_25 = arith.constant 1 : index
    %c0_26 = arith.constant 0 : index
    %c0_27 = arith.constant 0 : index
    %37 = vector.load %arg4[%c1_25, %c0_26, %c0_27] : memref<3x1x8xf32, #tpu.memory_space<vmem>>, vector<1x1x8xf32>
    %38 = vector.shape_cast %37 : vector<1x1x8xf32> to vector<1x8xf32>
    %39 = vector.broadcast %38 : vector<1x8xf32> to vector<16x8xf32>
    %40 = arith.addf %36, %39 : vector<16x8xf32>
    %c0_28 = arith.constant 0 : index
    %c1_29 = arith.constant 1 : index
    %c0_30 = arith.constant 0 : index
    %c0_31 = arith.constant 0 : index
    %41 = vector.load %arg6[%c0_28, %c1_29, %c0_30, %c0_31] : memref<1x3x16x8xf32, #tpu.memory_space<vmem>>, vector<1x1x16x8xf32>
    %42 = vector.shape_cast %41 : vector<1x1x16x8xf32> to vector<16x8xf32>
    %43 = vector.shape_cast %40 : vector<16x8xf32> to vector<1x1x16x8xf32>
    tpu.vector_store %arg6[%c0_28, %c1_29, %c0_30, %c0_31], %43 {strides = array<i32>} : memref<1x3x16x8xf32, #tpu.memory_space<vmem>>, vector<1x1x16x8xf32>,
    %44 = vector.extract_strided_slice %40 {offsets = [0, 0], sizes = [16, 4], strides = [1, 1]} : vector<16x8xf32> to vector<16x4xf32>
    %45 = arith.negf %44 : vector<16x4xf32>
    %46 = math.exp %45 : vector<16x4xf32>
    %cst_32 = arith.constant 1.000000e+00 : f32
    %47 = vector.broadcast %cst_32 : f32 to vector<16x4xf32>
    %48 = arith.addf %47, %46 : vector<16x4xf32>
    %49 = arith.divf %47, %48 : vector<16x4xf32>
    %cst_33 = arith.constant 2.000000e+00 : f32
    %50 = vector.broadcast %cst_33 : f32 to vector<16x4xf32>
    %51 = arith.mulf %50, %49 : vector<16x4xf32>
    %52 = tpu.iota {dimensions = array<i32: 1>} : vector<16x4xi32>
    %c2_i32_34 = arith.constant 2 : i32
    %53 = vector.broadcast %c2_i32_34 : i32 to vector<16x4xi32>
    %54 = arith.cmpi slt, %52, %53 : vector<16x4xi32>
    %cst_35 = arith.constant 5.000000e-01 : f32
    %55 = vector.broadcast %cst_35 : f32 to vector<16x4xf32>
    %56 = arith.subf %51, %55 : vector<16x4xf32>
    %57 = arith.mulf %51, %51 : vector<16x4xf32>
    %c1_36 = arith.constant 1 : index
    %c0_37 = arith.constant 0 : index
    %c0_38 = arith.constant 0 : index
    %58 = vector.load %arg5[%c1_36, %c0_37, %c0_38] : memref<3x1x4xf32, #tpu.memory_space<vmem>>, vector<1x1x4xf32>
    %59 = vector.shape_cast %58 : vector<1x1x4xf32> to vector<1x4xf32>
    %60 = vector.broadcast %59 : vector<1x4xf32> to vector<16x4xf32>
    %61 = arith.mulf %57, %60 : vector<16x4xf32>
    %62 = arith.select %54, %56, %61 : vector<16x4xi1>, vector<16x4xf32>
    %c0_39 = arith.constant 0 : index
    %c1_40 = arith.constant 1 : index
    %c0_41 = arith.constant 0 : index
    %c0_42 = arith.constant 0 : index
    %63 = vector.load %arg6[%c0_39, %c1_40, %c0_41, %c0_42] : memref<1x3x16x8xf32, #tpu.memory_space<vmem>>, vector<1x1x16x4xf32>
    %64 = vector.shape_cast %63 : vector<1x1x16x4xf32> to vector<16x4xf32>
    %65 = vector.shape_cast %62 : vector<16x4xf32> to vector<1x1x16x4xf32>
    tpu.vector_store %arg6[%c0_39, %c1_40, %c0_41, %c0_42], %65 {strides = array<i32>} : memref<1x3x16x8xf32, #tpu.memory_space<vmem>>, vector<1x1x16x4xf32>,
    %c2 = arith.constant 2 : index
    %c0_43 = arith.constant 0 : index
    %c0_44 = arith.constant 0 : index
    %66 = vector.load %arg3[%c2, %c0_43, %c0_44] : memref<3x16x8xf32, #tpu.memory_space<vmem>>, vector<1x16x8xf32>
    %67 = vector.shape_cast %66 : vector<1x16x8xf32> to vector<16x8xf32>
    %cst_45 = arith.constant dense<0.000000e+00> : vector<16x8xf32>
    %68 = tpu.matmul %1, %67, %cst_45 {dimension_numbers = #tpu.dot_dimension_numbers<[0], [0], [1], [1], [0, 1, 1, 1], [], []>} : vector<16x16xf32>, vector<16x8xf32>, vector<16x8xf32> -> vector<16x8xf32>
    %c2_46 = arith.constant 2 : index
    %c0_47 = arith.constant 0 : index
    %c0_48 = arith.constant 0 : index
    %69 = vector.load %arg4[%c2_46, %c0_47, %c0_48] : memref<3x1x8xf32, #tpu.memory_space<vmem>>, vector<1x1x8xf32>
    %70 = vector.shape_cast %69 : vector<1x1x8xf32> to vector<1x8xf32>
    %71 = vector.broadcast %70 : vector<1x8xf32> to vector<16x8xf32>
    %72 = arith.addf %68, %71 : vector<16x8xf32>
    %c0_49 = arith.constant 0 : index
    %c2_50 = arith.constant 2 : index
    %c0_51 = arith.constant 0 : index
    %c0_52 = arith.constant 0 : index
    %73 = vector.load %arg6[%c0_49, %c2_50, %c0_51, %c0_52] : memref<1x3x16x8xf32, #tpu.memory_space<vmem>>, vector<1x1x16x8xf32>
    %74 = vector.shape_cast %73 : vector<1x1x16x8xf32> to vector<16x8xf32>
    %75 = vector.shape_cast %72 : vector<16x8xf32> to vector<1x1x16x8xf32>
    tpu.vector_store %arg6[%c0_49, %c2_50, %c0_51, %c0_52], %75 {strides = array<i32>} : memref<1x3x16x8xf32, #tpu.memory_space<vmem>>, vector<1x1x16x8xf32>,
    %76 = vector.extract_strided_slice %72 {offsets = [0, 0], sizes = [16, 4], strides = [1, 1]} : vector<16x8xf32> to vector<16x4xf32>
    %77 = arith.negf %76 : vector<16x4xf32>
    %78 = math.exp %77 : vector<16x4xf32>
    %cst_53 = arith.constant 1.000000e+00 : f32
    %79 = vector.broadcast %cst_53 : f32 to vector<16x4xf32>
    %80 = arith.addf %79, %78 : vector<16x4xf32>
    %81 = arith.divf %79, %80 : vector<16x4xf32>
    %cst_54 = arith.constant 2.000000e+00 : f32
    %82 = vector.broadcast %cst_54 : f32 to vector<16x4xf32>
    %83 = arith.mulf %82, %81 : vector<16x4xf32>
    %84 = tpu.iota {dimensions = array<i32: 1>} : vector<16x4xi32>
    %c2_i32_55 = arith.constant 2 : i32
    %85 = vector.broadcast %c2_i32_55 : i32 to vector<16x4xi32>
    %86 = arith.cmpi slt, %84, %85 : vector<16x4xi32>
    %cst_56 = arith.constant 5.000000e-01 : f32
    %87 = vector.broadcast %cst_56 : f32 to vector<16x4xf32>
    %88 = arith.subf %83, %87 : vector<16x4xf32>
    %89 = arith.mulf %83, %83 : vector<16x4xf32>
    %c2_57 = arith.constant 2 : index
    %c0_58 = arith.constant 0 : index
    %c0_59 = arith.constant 0 : index
    %90 = vector.load %arg5[%c2_57, %c0_58, %c0_59] : memref<3x1x4xf32, #tpu.memory_space<vmem>>, vector<1x1x4xf32>
    %91 = vector.shape_cast %90 : vector<1x1x4xf32> to vector<1x4xf32>
    %92 = vector.broadcast %91 : vector<1x4xf32> to vector<16x4xf32>
    %93 = arith.mulf %89, %92 : vector<16x4xf32>
    %94 = arith.select %86, %88, %93 : vector<16x4xi1>, vector<16x4xf32>
    %c0_60 = arith.constant 0 : index
    %c2_61 = arith.constant 2 : index
    %c0_62 = arith.constant 0 : index
    %c0_63 = arith.constant 0 : index
    %95 = vector.load %arg6[%c0_60, %c2_61, %c0_62, %c0_63] : memref<1x3x16x8xf32, #tpu.memory_space<vmem>>, vector<1x1x16x4xf32>
    %96 = vector.shape_cast %95 : vector<1x1x16x4xf32> to vector<16x4xf32>
    %97 = vector.shape_cast %94 : vector<16x4xf32> to vector<1x1x16x4xf32>
    tpu.vector_store %arg6[%c0_60, %c2_61, %c0_62, %c0_63], %97 {strides = array<i32>} : memref<1x3x16x8xf32, #tpu.memory_space<vmem>>, vector<1x1x16x4xf32>,
    return
  }
  func.func @transform_0(%arg0: i32, %arg1: i32) -> (i32, i32, i32) {
    %c0_i32 = arith.constant 0 : i32
    %c0_i32_0 = arith.constant 0 : i32
    return %arg0, %c0_i32, %arg1 : i32, i32, i32
  }
  func.func @transform_1(%arg0: i32, %arg1: i32) -> (i32, i32, i32) {
    %c0_i32 = arith.constant 0 : i32
    %c0_i32_0 = arith.constant 0 : i32
    %c0_i32_1 = arith.constant 0 : i32
    %c0_i32_2 = arith.constant 0 : i32
    return %c0_i32, %c0_i32_0, %c0_i32_1 : i32, i32, i32
  }
  func.func @transform_2(%arg0: i32, %arg1: i32) -> (i32, i32, i32) {
    %c0_i32 = arith.constant 0 : i32
    %c0_i32_0 = arith.constant 0 : i32
    %c0_i32_1 = arith.constant 0 : i32
    %c0_i32_2 = arith.constant 0 : i32
    return %c0_i32, %c0_i32_0, %c0_i32_1 : i32, i32, i32
  }
  func.func @transform_3(%arg0: i32, %arg1: i32) -> (i32, i32, i32) {
    %c0_i32 = arith.constant 0 : i32
    %c0_i32_0 = arith.constant 0 : i32
    %c0_i32_1 = arith.constant 0 : i32
    %c0_i32_2 = arith.constant 0 : i32
    return %c0_i32, %c0_i32_0, %c0_i32_1 : i32, i32, i32
  }
  func.func @transform_4(%arg0: i32, %arg1: i32) -> (i32, i32, i32, i32) {
    %c0_i32 = arith.constant 0 : i32
    %c0_i32_0 = arith.constant 0 : i32
    %c0_i32_1 = arith.constant 0 : i32
    return %arg0, %c0_i32, %arg1, %c0_i32_0 : i32, i32, i32, i32
  }
}

</mosaic_0001>

<llo_original>
// kernel: head_forward.4
$region0: #{head_forward.4}
  #allocation0 [shape = 'u32[]', space=smem, size = 0x4, offset = 0x4, fixed_abs, tag = 'smem constant byte address 0x4 - core index']
  #allocation1 [shape = 'u32[72,128]{1,0:T(1,128)}', space=vmem, size = 0x9000, scoped, tag = 'internal scratch']
  %s0 = inlined_call_operand.vmem [shape: f32[2,8,64], index: 0, kind: input, shape index: {}]
  %s1 = inlined_call_operand.vmem [shape: f32[3,8,8], index: 1, kind: input, shape index: {}]
  %s2 = inlined_call_operand.vmem [shape: f32[3,1,8], index: 2, kind: input, shape index: {}]
  %s3 = inlined_call_operand.vmem [shape: f32[3,1,4], index: 3, kind: input, shape index: {}]
  %s4 = inlined_call_operand.hbm [shape: f32[2,3,64,8], index: 4, kind: output, shape index: {}]
  %s5 = sld [smem:[#allocation0]]
  $region49: #{head_forward.4} parent=0
    _
  %s7 = ssub.s32 1, %s5
  %s8 = scalar_select 0, %s7, %s5
  $region1: #{head_forward.4} parent=0
    #allocation2 [shape = 'u8[196608]{0}', space=vmem, size = 0x30000, scoped, tag = 'output window, operand 0']
    #allocation3 [shape = 's32[2]{0}', space=sflag, size = 0x8, scoped, tag = 'scoped memory for head_forward.4']
    %9 = vsyncpa [#allocation3], 0
    %s10 = scalar_lea.sflag [#allocation3], 1
    %11 = vsyncpa %s10, 0
    loop: start=0, step=1, limit=4
    $region2: #{head_forward.4} parent=1 // loop_pre_header
      _
    $region3: #{head_forward.4} parent=1 // loop_header
      %s13 = sphi 0, %s17
      %p14 = scmp.ge.s32.totalorder %s13, 4
      %s20 = sphi 0, %s32
      %s21 = sphi 0, %s28
      %s22 = sphi 0, %s20
      %s23 = sphi 0, %s21
      %s24 = sphi 0, %s22
      %s25 = sphi 0, %s23
      %s37 = sphi 0, %s39
      %s40 = sphi 0, %s37
      %s41 = sphi 0, %s40
      %s57 = sphi 0, %s41
      %s61 = sphi 0, %s61
      %s63 = sphi 0, %s61
      %s64 = sphi 0, %s63
      %s78 = sphi 0, %s64
      %s82 = sphi 0, %s82
      %s84 = sphi 0, %s82
      %s85 = sphi 0, %s84
      %s99 = sphi 0, %s85
      %s103 = sphi 0, %s103
      %s105 = sphi 0, %s103
      %s106 = sphi 0, %s105
      %s120 = sphi 0, %s106
      %s128 = sphi 0, %s130
      %s131 = sphi 0, %s128
      %s132 = sphi 0, %s131
      %s148 = sphi 0, %s132
    $region4: #{head_forward.4} parent=1 // loop_header_branch
      %16 = sbr.rel (%p14) target = $region8
    $region5: #{head_forward.4} parent=1 // loop_body
      %s18 = ssub.s32 %s13, 1
      %s19 = ssub.s32 %s13, 2
      %s26 = sadd.s32 1, %s21
      %p27 = scmp.ge.s32.totalorder %s26, 1
      %s28 = scalar_select %p27, 0, %s26
      %s29 = sadd.s32 1, %s20
      %s30 = scalar_select %p27, %s29, %s20
      %p31 = scmp.ge.s32.totalorder %s30, 2
      %s32 = scalar_select %p31, 0, %s30
      %s33 = ssub.s32 %s20, %s32
      %s34 = ssub.s32 %s21, %s28
      %s35 = sor.u32 %s33, %s34
      %p36 = scmp.eq.s32.totalorder %s35, 0
      %s38 = sadd.s32 %s37, 1
      %s39 = scalar_select %p36, %s37, %s38
      %p42 = pneg %p36
      %p43 = scmp.eq.s32.totalorder %s13, 1
      %p44 = por %p42, %p43
      %p45 = scmp.ne.s32.totalorder %s37, %s40
      %p46 = scmp.eq.s32.totalorder %s13, 0
      %p47 = por %p45, %p46
      %p48 = scmp.ne.s32.totalorder %s37, %s40
      %p49 = scmp.eq.s32.totalorder %s18, 1
      %p50 = por %p48, %p49
      %p51 = scmp.ne.s32.totalorder %s40, %s41
      %p52 = scmp.eq.s32.totalorder %s18, 0
      %p53 = por %p51, %p52
      %p54 = scmp.ne.s32.totalorder %s40, %s41
      %p55 = scmp.eq.s32.totalorder %s19, 1
      %p56 = por %p54, %p55
      %p58 = scmp.ne.s32.totalorder %s41, %s57
      %p59 = scmp.eq.s32.totalorder %s19, 0
      %p60 = por %p58, %p59
      %s62 = sadd.s32 %s61, 1
      %p65 = scmp.eq.s32.totalorder %s13, 1
      %p66 = scmp.ne.s32.totalorder %s61, %s63
      %p67 = scmp.eq.s32.totalorder %s13, 0
      %p68 = por %p66, %p67
      %p69 = scmp.ne.s32.totalorder %s61, %s63
      %p70 = scmp.eq.s32.totalorder %s18, 1
      %p71 = por %p69, %p70
      %p72 = scmp.ne.s32.totalorder %s63, %s64
      %p73 = scmp.eq.s32.totalorder %s18, 0
      %p74 = por %p72, %p73
      %p75 = scmp.ne.s32.totalorder %s63, %s64
      %p76 = scmp.eq.s32.totalorder %s19, 1
      %p77 = por %p75, %p76
      %p79 = scmp.ne.s32.totalorder %s64, %s78
      %p80 = scmp.eq.s32.totalorder %s19, 0
      %p81 = por %p79, %p80
      %s83 = sadd.s32 %s82, 1
      %p86 = scmp.eq.s32.totalorder %s13, 1
      %p87 = scmp.ne.s32.totalorder %s82, %s84
      %p88 = scmp.eq.s32.totalorder %s13, 0
      %p89 = por %p87, %p88
      %p90 = scmp.ne.s32.totalorder %s82, %s84
      %p91 = scmp.eq.s32.totalorder %s18, 1
      %p92 = por %p90, %p91
      %p93 = scmp.ne.s32.totalorder %s84, %s85
      %p94 = scmp.eq.s32.totalorder %s18, 0
      %p95 = por %p93, %p94
      %p96 = scmp.ne.s32.totalorder %s84, %s85
      %p97 = scmp.eq.s32.totalorder %s19, 1
      %p98 = por %p96, %p97
      %p100 = scmp.ne.s32.totalorder %s85, %s99
      %p101 = scmp.eq.s32.totalorder %s19, 0
      %p102 = por %p100, %p101
      %s104 = sadd.s32 %s103, 1
      %p107 = scmp.eq.s32.totalorder %s13, 1
      %p108 = scmp.ne.s32.totalorder %s103, %s105
      %p109 = scmp.eq.s32.totalorder %s13, 0
      %p110 = por %p108, %p109
      %p111 = scmp.ne.s32.totalorder %s103, %s105
      %p112 = scmp.eq.s32.totalorder %s18, 1
      %p113 = por %p111, %p112
      %p114 = scmp.ne.s32.totalorder %s105, %s106
      %p115 = scmp.eq.s32.totalorder %s18, 0
      %p116 = por %p114, %p115
      %p117 = scmp.ne.s32.totalorder %s105, %s106
      %p118 = scmp.eq.s32.totalorder %s19, 1
      %p119 = por %p117, %p118
      %p121 = scmp.ne.s32.totalorder %s106, %s120
      %p122 = scmp.eq.s32.totalorder %s19, 0
      %p123 = por %p121, %p122
      %s124 = ssub.s32 %s20, %s32
      %s125 = ssub.s32 %s21, %s28
      %s126 = sor.u32 %s124, %s125
      %p127 = scmp.eq.s32.totalorder %s126, 0
      %s129 = sadd.s32 %s128, 1
      %s130 = scalar_select %p127, %s128, %s129
      %p133 = pneg %p127
      %p134 = scmp.eq.s32.totalorder %s13, 1
      %p135 = por %p133, %p134
      %p136 = scmp.ne.s32.totalorder %s128, %s131
      %p137 = scmp.eq.s32.totalorder %s13, 0
      %p138 = por %p136, %p137
      %p139 = scmp.ne.s32.totalorder %s128, %s131
      %p140 = scmp.eq.s32.totalorder %s18, 1
      %p141 = por %p139, %p140
      %p142 = scmp.ne.s32.totalorder %s131, %s132
      %p143 = scmp.eq.s32.totalorder %s18, 0
      %p144 = por %p142, %p143
      %p145 = scmp.ne.s32.totalorder %s131, %s132
      %p146 = scmp.eq.s32.totalorder %s19, 1
      %p147 = por %p145, %p146
      %p149 = scmp.ne.s32.totalorder %s132, %s148
      %p150 = scmp.eq.s32.totalorder %s19, 0
      %p151 = por %p149, %p150
      %p152 = scmp.le.s32.totalorder 1, %s13
      %p153 = scmp.lt.s32.totalorder %s13, 3
      %p154 = pnand %p152, %p153
      %p155 = pneg %p154
      // Predicated region
      $region9: #{head_forward.4} parent=5 // pred_check
        _
      $region10: #{head_forward.4} parent=5 // pred_check_branch
        %157 = sbr.rel (%p154) target = $region12
      $region11: #{head_forward.4} parent=5 // pred_region
        %s158 = ssub.s32 %s13, 1
        // Predicated region
        $region13: #{head_forward.4} parent=11 // pred_check
          %p159 = pneg %p74
        $region14: #{head_forward.4} parent=11 // pred_check_branch
          %161 = sbr.rel (%p159) target = $region16
        $region15: #{head_forward.4} parent=11 // pred_region
          _
        $region16: #{head_forward.4} parent=11 // pred_fallthru
          _
        // Predicated region
        $region17: #{head_forward.4} parent=11 // pred_check
          %p162 = pneg %p95
        $region18: #{head_forward.4} parent=11 // pred_check_branch
          %164 = sbr.rel (%p162) target = $region20
        $region19: #{head_forward.4} parent=11 // pred_region
          _
        $region20: #{head_forward.4} parent=11 // pred_fallthru
          _
        // Predicated region
        $region21: #{head_forward.4} parent=11 // pred_check
          %p165 = pneg %p116
        $region22: #{head_forward.4} parent=11 // pred_check_branch
          %167 = sbr.rel (%p165) target = $region24
        $region23: #{head_forward.4} parent=11 // pred_region
          _
        $region24: #{head_forward.4} parent=11 // pred_fallthru
          _
      $region12: #{head_forward.4} parent=5 // pred_fallthru
        _
      %p168 = scmp.lt.s32.totalorder %s13, 2
      // Predicated region
      $region25: #{head_forward.4} parent=5 // pred_check
        %p169 = pneg %p168
      $region26: #{head_forward.4} parent=5 // pred_check_branch
        %171 = sbr.rel (%p169) target = $region28
      $region27: #{head_forward.4} parent=5 // pred_region
        // Predicated region
        $region29: #{head_forward.4} parent=27 // pred_check
          %p172 = pneg %p47
        $region30: #{head_forward.4} parent=27 // pred_check_branch
          %174 = sbr.rel (%p172) target = $region32
        $region31: #{head_forward.4} parent=27 // pred_region
          %p175 = scmp.lt.s32.totalorder %s20, 1
          %s176 = scalar_select %p175, %s20, 1
          %p177 = scmp.lt.s32.totalorder %s21, 0
          %s178 = scalar_select %p177, %s21, 0
          %s179 = sadd.s32 %s178, %s176
          %s180 = smul.addr %s179, 8
          %s181 = scalar_lea.vmem %s0, %s180
        $region32: #{head_forward.4} parent=27 // pred_fallthru
          _
      $region28: #{head_forward.4} parent=5 // pred_fallthru
        _
      %p182 = scmp.le.s32.totalorder 1, %s13
      %p183 = scmp.lt.s32.totalorder %s13, 3
      %p184 = pnand %p182, %p183
      %p185 = pneg %p184
      // Predicated region
      $region33: #{head_forward.4} parent=5 // pred_check
        _
      $region34: #{head_forward.4} parent=5 // pred_check_branch
        %187 = sbr.rel (%p184) target = $region36
      $region35: #{head_forward.4} parent=5 // pred_region
        %s188 = ssub.s32 %s13, 1
        %p189 = scmp.lt.s32.totalorder %s22, 1
        %s190 = scalar_select %p189, %s22, 1
        %p191 = scmp.lt.s32.totalorder %s23, 0
        %s192 = scalar_select %p191, %s23, 0
        %s193 = sadd.s32 %s192, %s190
        %s194 = smul.addr %s193, 8
        %s195 = scalar_lea.vmem %s0, %s194
        %p196 = pneg %p53
        %p197 = pneg %p50
        %p198 = pneg %p74
        %p199 = pneg %p71
        %p200 = pneg %p95
        %p201 = pneg %p92
        %p202 = pneg %p116
        %p203 = pneg %p113
        %p204 = pneg %p144
        %p205 = pneg %p141
        %s206 = sand.u32 %s131, 1
        %s207 = scalar_lea.sflag [#allocation3], %s206
        %s208 = sand.u32 %s131, 1
        %s209 = smul.addr %s208, 192
        %s210 = scalar_lea.vmem [#allocation2], %s209
        %p211 = scmp.lt.s32.totalorder %s22, 1
        %s212 = scalar_select %p211, %s22, 1
        %p213 = scmp.lt.s32.totalorder %s23, 0
        %s214 = scalar_select %p213, %s23, 0
        %s215 = sadd.s32 %s214, %s212
        %s216 = smul.addr %s215, 8
        %s217 = scalar_lea.vmem %s0, %s216
        %s218 = smul.u32 8, %s23
        %v219 = vld [vmem:[%s217] sm:$0xff]
        %v220 = vld [vmem:[%s1] sm:$0xff]
        %v221 = vld [vmem:[%s2] sm:$0x1]
        %v223 = vperm.slane %v221, 0
        %225 = vxpose.xlu0.b32.start [1/16] %v219, 128
        %226 = vxpose.xlu0.b32.cont [2/16] 0.0, 128
        %227 = vxpose.xlu0.b32.cont [3/16] 0.0, 128
        %228 = vxpose.xlu0.b32.cont [4/16] 0.0, 128
        %229 = vxpose.xlu0.b32.cont [5/16] 0.0, 128
        %230 = vxpose.xlu0.b32.cont [6/16] 0.0, 128
        %231 = vxpose.xlu0.b32.cont [7/16] 0.0, 128
        %232 = vxpose.xlu0.b32.cont [8/16] 0.0, 128
        %233 = vxpose.xlu0.b32.cont [9/16] 0.0, 128
        %234 = vxpose.xlu0.b32.cont [10/16] 0.0, 128
        %235 = vxpose.xlu0.b32.cont [11/16] 0.0, 128
        %236 = vxpose.xlu0.b32.cont [12/16] 0.0, 128
        %237 = vxpose.xlu0.b32.cont [13/16] 0.0, 128
        %238 = vxpose.xlu0.b32.cont [14/16] 0.0, 128
        %239 = vxpose.xlu0.b32.cont [15/16] 0.0, 128
        %240 = vxpose.xlu0.b32.end [16/16] 0.0, 128
        %v241 = vpop.trf.xlu0
        %v242 = vpop.trf.xlu0
        %v243 = vpop.trf.xlu0
        %v244 = vpop.trf.xlu0
        %v245 = vpop.trf.xlu0
        %v246 = vpop.trf.xlu0
        %v247 = vpop.trf.xlu0
        %v248 = vpop.trf.xlu0
        %v249 = vpop.trf.xlu0
        %v250 = vpop.trf.xlu0
        %v251 = vpop.trf.xlu0
        %v252 = vpop.trf.xlu0
        %v253 = vpop.trf.xlu0
        %v254 = vpop.trf.xlu0
        %v255 = vpop.trf.xlu0
        %v256 = vpop.trf.xlu0
        %vm257 = vcmask 64512
        %v259 = vsel %vm257, %v241, 0
        %v262 = vsel %vm257, %v242, 0
        %v265 = vsel %vm257, %v243, 0
        %v268 = vsel %vm257, %v244, 0
        %v271 = vsel %vm257, %v245, 0
        %v274 = vsel %vm257, %v246, 0
        %v277 = vsel %vm257, %v247, 0
        %v280 = vsel %vm257, %v248, 0
        %282 = vmatpush.msra.mxu0 0.0
        %283 = vmatpush.msra.mxu0 0.0
        %284 = vmatpush.msra.mxu0 0.0
        %285 = vmatpush.msra.mxu0 0.0
        %286 = vmatpush.msra.mxu0 0.0
        %287 = vmatpush.msra.mxu0 0.0
        %288 = vmatpush.msra.mxu0 0.0
        %289 = vmatpush.msra.mxu0 0.0
        %290 = vmatpush.msra.mxu0 0.0
        %291 = vmatpush.msra.mxu0 0.0
        %292 = vmatpush.msra.mxu0 0.0
        %293 = vmatpush.msra.mxu0 0.0
        %294 = vmatpush.msra.mxu0 0.0
        %295 = vmatpush.msra.mxu0 0.0
        %296 = vmatpush.msra.mxu0 0.0
        %297 = vmatpush.msra.mxu0 %v220
        %298 = vmatmul.f32.gmra.mxu0 %v259
        %v299 = vpop.f32.mrf.mxu0
        %v300 = vadd.f32 %v223, %v299
        %301 = vmatmul.f32.gmra.mxu0 %v262
        %v302 = vpop.f32.mrf.mxu0
        %v303 = vadd.f32 %v223, %v302
        %304 = vmatmul.f32.gmra.mxu0 %v265
        %v305 = vpop.f32.mrf.mxu0
        %v306 = vadd.f32 %v223, %v305
        %307 = vmatmul.f32.gmra.mxu0 %v268
        %v308 = vpop.f32.mrf.mxu0
        %v309 = vadd.f32 %v223, %v308
        %310 = vmatmul.f32.gmra.mxu0 %v271
        %v311 = vpop.f32.mrf.mxu0
        %v312 = vadd.f32 %v223, %v311
        %313 = vmatmul.f32.gmra.mxu0 %v274
        %v314 = vpop.f32.mrf.mxu0
        %v315 = vadd.f32 %v223, %v314
        %316 = vmatmul.f32.gmra.mxu0 %v277
        %v317 = vpop.f32.mrf.mxu0
        %v318 = vadd.f32 %v223, %v317
        %319 = vmatmul.f32.gmra.mxu0 %v280
        %v320 = vpop.f32.mrf.mxu0
        %v321 = vadd.f32 %v223, %v320
        %322 = vdwg.mxu0
        %323 = vst.msk [vmem:[%s210] sm:$0xff] %vm257, %v300
        %324 = vst.msk [vmem:[%s210 + $0x8] sm:$0xff] %vm257, %v303
        %325 = vst.msk [vmem:[%s210 + $0x10] sm:$0xff] %vm257, %v306
        %326 = vst.msk [vmem:[%s210 + $0x18] sm:$0xff] %vm257, %v309
        %327 = vst.msk [vmem:[%s210 + $0x20] sm:$0xff] %vm257, %v312
        %328 = vst.msk [vmem:[%s210 + $0x28] sm:$0xff] %vm257, %v315
        %329 = vst.msk [vmem:[%s210 + $0x30] sm:$0xff] %vm257, %v318
        %330 = vst.msk [vmem:[%s210 + $0x38] sm:$0xff] %vm257, %v321
        %v331 = vxor.u32 %v300, 2147483648
        %v332 = vxor.u32 %v303, 2147483648
        %v333 = vxor.u32 %v306, 2147483648
        %v334 = vxor.u32 %v309, 2147483648
        %v335 = vxor.u32 %v312, 2147483648
        %v336 = vxor.u32 %v315, 2147483648
        %v337 = vxor.u32 %v318, 2147483648
        %v338 = vxor.u32 %v321, 2147483648
        %v339 = vmul.f32 %v331, 1.442695
        %v340 = vpow.pop %v339
        %v341 = vmul.f32 %v332, 1.442695
        %v342 = vpow.pop %v341
        %v343 = vmul.f32 %v333, 1.442695
        %v344 = vpow.pop %v343
        %v345 = vmul.f32 %v334, 1.442695
        %v346 = vpow.pop %v345
        %v347 = vmul.f32 %v335, 1.442695
        %v348 = vpow.pop %v347
        %v349 = vmul.f32 %v336, 1.442695
        %v350 = vpow.pop %v349
        %v351 = vmul.f32 %v337, 1.442695
        %v352 = vpow.pop %v351
        %v353 = vmul.f32 %v338, 1.442695
        %v354 = vpow.pop %v353
        %v355 = vadd.f32 %v340, 1.0
        %v356 = vadd.f32 %v342, 1.0
        %v357 = vadd.f32 %v344, 1.0
        %v358 = vadd.f32 %v346, 1.0
        %v359 = vadd.f32 %v348, 1.0
        %v360 = vadd.f32 %v350, 1.0
        %v361 = vadd.f32 %v352, 1.0
        %v362 = vadd.f32 %v354, 1.0
        %v363 = vrcp.pop %v355
        %v364 = vmul.f32 %v355, %v363
        %v365 = vsub.f32 1.0, %v364
        %v366 = vmul.f32 %v363, %v365
        %v367 = vadd.f32 %v363, %v366
        %vm368 = vweird.f32 %v355
        %vm369 = vweird.f32 %v363
        %vm370 = vmor %vm368, %vm369
        %v371 = vsel %vm370, %v363, %v367
        %v372 = vand.u32 2147483647, %v355
        %vm373 = vcmp.eq.f32.partialorder %v372, 8.507059e+37
        %v374 = vand.u32 %v355, 2147483648
        %v375 = vor.u32 1.1754944e-38, %v374
        %v376 = vsel %vm373, %v375, %v371
        %v377 = vmul.f32 1.0, %v376
        %v378 = vrcp.pop %v356
        %v379 = vmul.f32 %v356, %v378
        %v380 = vsub.f32 1.0, %v379
        %v381 = vmul.f32 %v378, %v380
        %v382 = vadd.f32 %v378, %v381
        %vm383 = vweird.f32 %v356
        %vm384 = vweird.f32 %v378
        %vm385 = vmor %vm383, %vm384
        %v386 = vsel %vm385, %v378, %v382
        %v387 = vand.u32 2147483647, %v356
        %vm388 = vcmp.eq.f32.partialorder %v387, 8.507059e+37
        %v389 = vand.u32 %v356, 2147483648
        %v390 = vor.u32 1.1754944e-38, %v389
        %v391 = vsel %vm388, %v390, %v386
        %v392 = vmul.f32 1.0, %v391
        %v393 = vrcp.pop %v357
        %v394 = vmul.f32 %v357, %v393
        %v395 = vsub.f32 1.0, %v394
        %v396 = vmul.f32 %v393, %v395
        %v397 = vadd.f32 %v393, %v396
        %vm398 = vweird.f32 %v357
        %vm399 = vweird.f32 %v393
        %vm400 = vmor %vm398, %vm399
        %v401 = vsel %vm400, %v393, %v397
        %v402 = vand.u32 2147483647, %v357
        %vm403 = vcmp.eq.f32.partialorder %v402, 8.507059e+37
        %v404 = vand.u32 %v357, 2147483648
        %v405 = vor.u32 1.1754944e-38, %v404
        %v406 = vsel %vm403, %v405, %v401
        %v407 = vmul.f32 1.0, %v406
        %v408 = vrcp.pop %v358
        %v409 = vmul.f32 %v358, %v408
        %v410 = vsub.f32 1.0, %v409
        %v411 = vmul.f32 %v408, %v410
        %v412 = vadd.f32 %v408, %v411
        %vm413 = vweird.f32 %v358
        %vm414 = vweird.f32 %v408
        %vm415 = vmor %vm413, %vm414
        %v416 = vsel %vm415, %v408, %v412
        %v417 = vand.u32 2147483647, %v358
        %vm418 = vcmp.eq.f32.partialorder %v417, 8.507059e+37
        %v419 = vand.u32 %v358, 2147483648
        %v420 = vor.u32 1.1754944e-38, %v419
        %v421 = vsel %vm418, %v420, %v416
        %v422 = vmul.f32 1.0, %v421
        %v423 = vrcp.pop %v359
        %v424 = vmul.f32 %v359, %v423
        %v425 = vsub.f32 1.0, %v424
        %v426 = vmul.f32 %v423, %v425
        %v427 = vadd.f32 %v423, %v426
        %vm428 = vweird.f32 %v359
        %vm429 = vweird.f32 %v423
        %vm430 = vmor %vm428, %vm429
        %v431 = vsel %vm430, %v423, %v427
        %v432 = vand.u32 2147483647, %v359
        %vm433 = vcmp.eq.f32.partialorder %v432, 8.507059e+37
        %v434 = vand.u32 %v359, 2147483648
        %v435 = vor.u32 1.1754944e-38, %v434
        %v436 = vsel %vm433, %v435, %v431
        %v437 = vmul.f32 1.0, %v436
        %v438 = vrcp.pop %v360
        %v439 = vmul.f32 %v360, %v438
        %v440 = vsub.f32 1.0, %v439
        %v441 = vmul.f32 %v438, %v440
        %v442 = vadd.f32 %v438, %v441
        %vm443 = vweird.f32 %v360
        %vm444 = vweird.f32 %v438
        %vm445 = vmor %vm443, %vm444
        %v446 = vsel %vm445, %v438, %v442
        %v447 = vand.u32 2147483647, %v360
        %vm448 = vcmp.eq.f32.partialorder %v447, 8.507059e+37
        %v449 = vand.u32 %v360, 2147483648
        %v450 = vor.u32 1.1754944e-38, %v449
        %v451 = vsel %vm448, %v450, %v446
        %v452 = vmul.f32 1.0, %v451
        %v453 = vrcp.pop %v361
        %v454 = vmul.f32 %v361, %v453
        %v455 = vsub.f32 1.0, %v454
        %v456 = vmul.f32 %v453, %v455
        %v457 = vadd.f32 %v453, %v456
        %vm458 = vweird.f32 %v361
        %vm459 = vweird.f32 %v453
        %vm460 = vmor %vm458, %vm459
        %v461 = vsel %vm460, %v453, %v457
        %v462 = vand.u32 2147483647, %v361
        %vm463 = vcmp.eq.f32.partialorder %v462, 8.507059e+37
        %v464 = vand.u32 %v361, 2147483648
        %v465 = vor.u32 1.1754944e-38, %v464
        %v466 = vsel %vm463, %v465, %v461
        %v467 = vmul.f32 1.0, %v466
        %v468 = vrcp.pop %v362
        %v469 = vmul.f32 %v362, %v468
        %v470 = vsub.f32 1.0, %v469
        %v471 = vmul.f32 %v468, %v470
        %v472 = vadd.f32 %v468, %v471
        %vm473 = vweird.f32 %v362
        %vm474 = vweird.f32 %v468
        %vm475 = vmor %vm473, %vm474
        %v476 = vsel %vm475, %v468, %v472
        %v477 = vand.u32 2147483647, %v362
        %vm478 = vcmp.eq.f32.partialorder %v477, 8.507059e+37
        %v479 = vand.u32 %v362, 2147483648
        %v480 = vor.u32 1.1754944e-38, %v479
        %v481 = vsel %vm478, %v480, %v476
        %v482 = vmul.f32 1.0, %v481
        %v483 = vmul.f32 %v377, 2.0
        %v484 = vmul.f32 %v392, 2.0
        %v485 = vmul.f32 %v407, 2.0
        %v486 = vmul.f32 %v422, 2.0
        %v487 = vmul.f32 %v437, 2.0
        %v488 = vmul.f32 %v452, 2.0
        %v489 = vmul.f32 %v467, 2.0
        %v490 = vmul.f32 %v482, 2.0
        %v491 = vlaneseq
        %v492 = vand.u32 %v491, 127
        %vm493 = vcmp.lt.s32.totalorder %v492, 2
        %v494 = vsub.f32 %v483, 0.5
        %v495 = vsub.f32 %v484, 0.5
        %v496 = vsub.f32 %v485, 0.5
        %v497 = vsub.f32 %v486, 0.5
        %v498 = vsub.f32 %v487, 0.5
        %v499 = vsub.f32 %v488, 0.5
        %v500 = vsub.f32 %v489, 0.5
        %v501 = vsub.f32 %v490, 0.5
        %v502 = vmul.f32 %v483, %v483
        %v503 = vmul.f32 %v484, %v484
        %v504 = vmul.f32 %v485, %v485
        %v505 = vmul.f32 %v486, %v486
        %v506 = vmul.f32 %v487, %v487
        %v507 = vmul.f32 %v488, %v488
        %v508 = vmul.f32 %v489, %v489
        %v509 = vmul.f32 %v490, %v490
        %v510 = vld [vmem:[%s3] sm:$0x1]
        %v512 = vperm.slane %v510, 0
        %v514 = vmul.f32 %v502, %v512
        %v515 = vmul.f32 %v503, %v512
        %v516 = vmul.f32 %v504, %v512
        %v517 = vmul.f32 %v505, %v512
        %v518 = vmul.f32 %v506, %v512
        %v519 = vmul.f32 %v507, %v512
        %v520 = vmul.f32 %v508, %v512
        %v521 = vmul.f32 %v509, %v512
        %v522 = vsel %vm493, %v494, %v514
        %v523 = vsel %vm493, %v495, %v515
        %v524 = vsel %vm493, %v496, %v516
        %v525 = vsel %vm493, %v497, %v517
        %v526 = vsel %vm493, %v498, %v518
        %v527 = vsel %vm493, %v499, %v519
        %v528 = vsel %vm493, %v500, %v520
        %v529 = vsel %vm493, %v501, %v521
        %vm530 = vcmask 31744
        %531 = vst.msk [vmem:[%s210] sm:$0xff] %vm530, %v522
        %532 = vst.msk [vmem:[%s210 + $0x8] sm:$0xff] %vm530, %v523
        %533 = vst.msk [vmem:[%s210 + $0x10] sm:$0xff] %vm530, %v524
        %534 = vst.msk [vmem:[%s210 + $0x18] sm:$0xff] %vm530, %v525
        %535 = vst.msk [vmem:[%s210 + $0x20] sm:$0xff] %vm530, %v526
        %536 = vst.msk [vmem:[%s210 + $0x28] sm:$0xff] %vm530, %v527
        %537 = vst.msk [vmem:[%s210 + $0x30] sm:$0xff] %vm530, %v528
        %538 = vst.msk [vmem:[%s210 + $0x38] sm:$0xff] %vm530, %v529
        %s539 = scalar_lea.vmem %s1, 8
        %v540 = vld [vmem:[%s539] sm:$0xff]
        %s541 = scalar_lea.vmem %s2, 1
        %v542 = vld [vmem:[%s541] sm:$0x1]
        %v544 = vperm.slane %v542, 0
        %546 = vmatpush.msra.mxu0 0.0
        %547 = vmatpush.msra.mxu0 0.0
        %548 = vmatpush.msra.mxu0 0.0
        %549 = vmatpush.msra.mxu0 0.0
        %550 = vmatpush.msra.mxu0 0.0
        %551 = vmatpush.msra.mxu0 0.0
        %552 = vmatpush.msra.mxu0 0.0
        %553 = vmatpush.msra.mxu0 0.0
        %554 = vmatpush.msra.mxu0 0.0
        %555 = vmatpush.msra.mxu0 0.0
        %556 = vmatpush.msra.mxu0 0.0
        %557 = vmatpush.msra.mxu0 0.0
        %558 = vmatpush.msra.mxu0 0.0
        %559 = vmatpush.msra.mxu0 0.0
        %560 = vmatpush.msra.mxu0 0.0
        %561 = vmatpush.msra.mxu0 %v540
        %562 = vmatmul.f32.gmra.mxu0 %v259
        %v563 = vpop.f32.mrf.mxu0
        %v564 = vadd.f32 %v544, %v563
        %565 = vmatmul.f32.gmra.mxu0 %v262
        %v566 = vpop.f32.mrf.mxu0
        %v567 = vadd.f32 %v544, %v566
        %568 = vmatmul.f32.gmra.mxu0 %v265
        %v569 = vpop.f32.mrf.mxu0
        %v570 = vadd.f32 %v544, %v569
        %571 = vmatmul.f32.gmra.mxu0 %v268
        %v572 = vpop.f32.mrf.mxu0
        %v573 = vadd.f32 %v544, %v572
        %574 = vmatmul.f32.gmra.mxu0 %v271
        %v575 = vpop.f32.mrf.mxu0
        %v576 = vadd.f32 %v544, %v575
        %577 = vmatmul.f32.gmra.mxu0 %v274
        %v578 = vpop.f32.mrf.mxu0
        %v579 = vadd.f32 %v544, %v578
        %580 = vmatmul.f32.gmra.mxu0 %v277
        %v581 = vpop.f32.mrf.mxu0
        %v582 = vadd.f32 %v544, %v581
        %583 = vmatmul.f32.gmra.mxu0 %v280
        %v584 = vpop.f32.mrf.mxu0
        %v585 = vadd.f32 %v544, %v584
        %586 = vdwg.mxu0
        %s587 = scalar_lea.vmem %s210, 64 [#allocation2]
        %588 = vst.msk [vmem:[%s587] sm:$0xff] %vm257, %v564
        %589 = vst.msk [vmem:[%s587 + $0x8] sm:$0xff] %vm257, %v567
        %590 = vst.msk [vmem:[%s587 + $0x10] sm:$0xff] %vm257, %v570
        %591 = vst.msk [vmem:[%s587 + $0x18] sm:$0xff] %vm257, %v573
        %592 = vst.msk [vmem:[%s587 + $0x20] sm:$0xff] %vm257, %v576
        %593 = vst.msk [vmem:[%s587 + $0x28] sm:$0xff] %vm257, %v579
        %594 = vst.msk [vmem:[%s587 + $0x30] sm:$0xff] %vm257, %v582
        %595 = vst.msk [vmem:[%s587 + $0x38] sm:$0xff] %vm257, %v585
        %v596 = vxor.u32 %v564, 2147483648
        %v597 = vxor.u32 %v567, 2147483648
        %v598 = vxor.u32 %v570, 2147483648
        %v599 = vxor.u32 %v573, 2147483648
        %v600 = vxor.u32 %v576, 2147483648
        %v601 = vxor.u32 %v579, 2147483648
        %v602 = vxor.u32 %v582, 2147483648
        %v603 = vxor.u32 %v585, 2147483648
        %v604 = vmul.f32 %v596, 1.442695
        %v605 = vpow.pop %v604
        %v606 = vmul.f32 %v597, 1.442695
        %v607 = vpow.pop %v606
        %v608 = vmul.f32 %v598, 1.442695
        %v609 = vpow.pop %v608
        %v610 = vmul.f32 %v599, 1.442695
        %v611 = vpow.pop %v610
        %v612 = vmul.f32 %v600, 1.442695
        %v613 = vpow.pop %v612
        %v614 = vmul.f32 %v601, 1.442695
        %v615 = vpow.pop %v614
        %v616 = vmul.f32 %v602, 1.442695
        %v617 = vpow.pop %v616
        %v618 = vmul.f32 %v603, 1.442695
        %v619 = vpow.pop %v618
        %v620 = vadd.f32 %v605, 1.0
        %v621 = vadd.f32 %v607, 1.0
        %v622 = vadd.f32 %v609, 1.0
        %v623 = vadd.f32 %v611, 1.0
        %v624 = vadd.f32 %v613, 1.0
        %v625 = vadd.f32 %v615, 1.0
        %v626 = vadd.f32 %v617, 1.0
        %v627 = vadd.f32 %v619, 1.0
        %v628 = vrcp.pop %v620
        %v629 = vmul.f32 %v620, %v628
        %v630 = vsub.f32 1.0, %v629
        %v631 = vmul.f32 %v628, %v630
        %v632 = vadd.f32 %v628, %v631
        %vm633 = vweird.f32 %v620
        %vm634 = vweird.f32 %v628
        %vm635 = vmor %vm633, %vm634
        %v636 = vsel %vm635, %v628, %v632
        %v637 = vand.u32 2147483647, %v620
        %vm638 = vcmp.eq.f32.partialorder %v637, 8.507059e+37
        %v639 = vand.u32 %v620, 2147483648
        %v640 = vor.u32 1.1754944e-38, %v639
        %v641 = vsel %vm638, %v640, %v636
        %v642 = vmul.f32 1.0, %v641
        %v643 = vrcp.pop %v621
        %v644 = vmul.f32 %v621, %v643
        %v645 = vsub.f32 1.0, %v644
        %v646 = vmul.f32 %v643, %v645
        %v647 = vadd.f32 %v643, %v646
        %vm648 = vweird.f32 %v621
        %vm649 = vweird.f32 %v643
        %vm650 = vmor %vm648, %vm649
        %v651 = vsel %vm650, %v643, %v647
        %v652 = vand.u32 2147483647, %v621
        %vm653 = vcmp.eq.f32.partialorder %v652, 8.507059e+37
        %v654 = vand.u32 %v621, 2147483648
        %v655 = vor.u32 1.1754944e-38, %v654
        %v656 = vsel %vm653, %v655, %v651
        %v657 = vmul.f32 1.0, %v656
        %v658 = vrcp.pop %v622
        %v659 = vmul.f32 %v622, %v658
        %v660 = vsub.f32 1.0, %v659
        %v661 = vmul.f32 %v658, %v660
        %v662 = vadd.f32 %v658, %v661
        %vm663 = vweird.f32 %v622
        %vm664 = vweird.f32 %v658
        %vm665 = vmor %vm663, %vm664
        %v666 = vsel %vm665, %v658, %v662
        %v667 = vand.u32 2147483647, %v622
        %vm668 = vcmp.eq.f32.partialorder %v667, 8.507059e+37
        %v669 = vand.u32 %v622, 2147483648
        %v670 = vor.u32 1.1754944e-38, %v669
        %v671 = vsel %vm668, %v670, %v666
        %v672 = vmul.f32 1.0, %v671
        %v673 = vrcp.pop %v623
        %v674 = vmul.f32 %v623, %v673
        %v675 = vsub.f32 1.0, %v674
        %v676 = vmul.f32 %v673, %v675
        %v677 = vadd.f32 %v673, %v676
        %vm678 = vweird.f32 %v623
        %vm679 = vweird.f32 %v673
        %vm680 = vmor %vm678, %vm679
        %v681 = vsel %vm680, %v673, %v677
        %v682 = vand.u32 2147483647, %v623
        %vm683 = vcmp.eq.f32.partialorder %v682, 8.507059e+37
        %v684 = vand.u32 %v623, 2147483648
        %v685 = vor.u32 1.1754944e-38, %v684
        %v686 = vsel %vm683, %v685, %v681
        %v687 = vmul.f32 1.0, %v686
        %v688 = vrcp.pop %v624
        %v689 = vmul.f32 %v624, %v688
        %v690 = vsub.f32 1.0, %v689
        %v691 = vmul.f32 %v688, %v690
        %v692 = vadd.f32 %v688, %v691
        %vm693 = vweird.f32 %v624
        %vm694 = vweird.f32 %v688
        %vm695 = vmor %vm693, %vm694
        %v696 = vsel %vm695, %v688, %v692
        %v697 = vand.u32 2147483647, %v624
        %vm698 = vcmp.eq.f32.partialorder %v697, 8.507059e+37
        %v699 = vand.u32 %v624, 2147483648
        %v700 = vor.u32 1.1754944e-38, %v699
        %v701 = vsel %vm698, %v700, %v696
        %v702 = vmul.f32 1.0, %v701
        %v703 = vrcp.pop %v625
        %v704 = vmul.f32 %v625, %v703
        %v705 = vsub.f32 1.0, %v704
        %v706 = vmul.f32 %v703, %v705
        %v707 = vadd.f32 %v703, %v706
        %vm708 = vweird.f32 %v625
        %vm709 = vweird.f32 %v703
        %vm710 = vmor %vm708, %vm709
        %v711 = vsel %vm710, %v703, %v707
        %v712 = vand.u32 2147483647, %v625
        %vm713 = vcmp.eq.f32.partialorder %v712, 8.507059e+37
        %v714 = vand.u32 %v625, 2147483648
        %v715 = vor.u32 1.1754944e-38, %v714
        %v716 = vsel %vm713, %v715, %v711
        %v717 = vmul.f32 1.0, %v716
        %v718 = vrcp.pop %v626
        %v719 = vmul.f32 %v626, %v718
        %v720 = vsub.f32 1.0, %v719
        %v721 = vmul.f32 %v718, %v720
        %v722 = vadd.f32 %v718, %v721
        %vm723 = vweird.f32 %v626
        %vm724 = vweird.f32 %v718
        %vm725 = vmor %vm723, %vm724
        %v726 = vsel %vm725, %v718, %v722
        %v727 = vand.u32 2147483647, %v626
        %vm728 = vcmp.eq.f32.partialorder %v727, 8.507059e+37
        %v729 = vand.u32 %v626, 2147483648
        %v730 = vor.u32 1.1754944e-38, %v729
        %v731 = vsel %vm728, %v730, %v726
        %v732 = vmul.f32 1.0, %v731
        %v733 = vrcp.pop %v627
        %v734 = vmul.f32 %v627, %v733
        %v735 = vsub.f32 1.0, %v734
        %v736 = vmul.f32 %v733, %v735
        %v737 = vadd.f32 %v733, %v736
        %vm738 = vweird.f32 %v627
        %vm739 = vweird.f32 %v733
        %vm740 = vmor %vm738, %vm739
        %v741 = vsel %vm740, %v733, %v737
        %v742 = vand.u32 2147483647, %v627
        %vm743 = vcmp.eq.f32.partialorder %v742, 8.507059e+37
        %v744 = vand.u32 %v627, 2147483648
        %v745 = vor.u32 1.1754944e-38, %v744
        %v746 = vsel %vm743, %v745, %v741
        %v747 = vmul.f32 1.0, %v746
        %v748 = vmul.f32 %v642, 2.0
        %v749 = vmul.f32 %v657, 2.0
        %v750 = vmul.f32 %v672, 2.0
        %v751 = vmul.f32 %v687, 2.0
        %v752 = vmul.f32 %v702, 2.0
        %v753 = vmul.f32 %v717, 2.0
        %v754 = vmul.f32 %v732, 2.0
        %v755 = vmul.f32 %v747, 2.0
        %v756 = vsub.f32 %v748, 0.5
        %v757 = vsub.f32 %v749, 0.5
        %v758 = vsub.f32 %v750, 0.5
        %v759 = vsub.f32 %v751, 0.5
        %v760 = vsub.f32 %v752, 0.5
        %v761 = vsub.f32 %v753, 0.5
        %v762 = vsub.f32 %v754, 0.5
        %v763 = vsub.f32 %v755, 0.5
        %v764 = vmul.f32 %v748, %v748
        %v765 = vmul.f32 %v749, %v749
        %v766 = vmul.f32 %v750, %v750
        %v767 = vmul.f32 %v751, %v751
        %v768 = vmul.f32 %v752, %v752
        %v769 = vmul.f32 %v753, %v753
        %v770 = vmul.f32 %v754, %v754
        %v771 = vmul.f32 %v755, %v755
        %s772 = scalar_lea.vmem %s3, 1
        %v773 = vld [vmem:[%s772] sm:$0x1]
        %v775 = vperm.slane %v773, 0
        %v777 = vmul.f32 %v764, %v775
        %v778 = vmul.f32 %v765, %v775
        %v779 = vmul.f32 %v766, %v775
        %v780 = vmul.f32 %v767, %v775
        %v781 = vmul.f32 %v768, %v775
        %v782 = vmul.f32 %v769, %v775
        %v783 = vmul.f32 %v770, %v775
        %v784 = vmul.f32 %v771, %v775
        %v785 = vsel %vm493, %v756, %v777
        %v786 = vsel %vm493, %v757, %v778
        %v787 = vsel %vm493, %v758, %v779
        %v788 = vsel %vm493, %v759, %v780
        %v789 = vsel %vm493, %v760, %v781
        %v790 = vsel %vm493, %v761, %v782
        %v791 = vsel %vm493, %v762, %v783
        %v792 = vsel %vm493, %v763, %v784
        %793 = vst.msk [vmem:[%s587] sm:$0xff] %vm530, %v785
        %794 = vst.msk [vmem:[%s587 + $0x8] sm:$0xff] %vm530, %v786
        %795 = vst.msk [vmem:[%s587 + $0x10] sm:$0xff] %vm530, %v787
        %796 = vst.msk [vmem:[%s587 + $0x18] sm:$0xff] %vm530, %v788
        %797 = vst.msk [vmem:[%s587 + $0x20] sm:$0xff] %vm530, %v789
        %798 = vst.msk [vmem:[%s587 + $0x28] sm:$0xff] %vm530, %v790
        %799 = vst.msk [vmem:[%s587 + $0x30] sm:$0xff] %vm530, %v791
        %800 = vst.msk [vmem:[%s587 + $0x38] sm:$0xff] %vm530, %v792
        %s801 = scalar_lea.vmem %s1, 16
        %v802 = vld [vmem:[%s801] sm:$0xff]
        %s803 = scalar_lea.vmem %s2, 2
        %v804 = vld [vmem:[%s803] sm:$0x1]
        %v806 = vperm.slane %v804, 0
        %808 = vmatpush.msra.mxu0 0.0
        %809 = vmatpush.msra.mxu0 0.0
        %810 = vmatpush.msra.mxu0 0.0
        %811 = vmatpush.msra.mxu0 0.0
        %812 = vmatpush.msra.mxu0 0.0
        %813 = vmatpush.msra.mxu0 0.0
        %814 = vmatpush.msra.mxu0 0.0
        %815 = vmatpush.msra.mxu0 0.0
        %816 = vmatpush.msra.mxu0 0.0
        %817 = vmatpush.msra.mxu0 0.0
        %818 = vmatpush.msra.mxu0 0.0
        %819 = vmatpush.msra.mxu0 0.0
        %820 = vmatpush.msra.mxu0 0.0
        %821 = vmatpush.msra.mxu0 0.0
        %822 = vmatpush.msra.mxu0 0.0
        %823 = vmatpush.msra.mxu0 %v802
        %824 = vmatmul.f32.gmra.mxu0 %v259
        %v825 = vpop.f32.mrf.mxu0
        %v826 = vadd.f32 %v806, %v825
        %827 = vmatmul.f32.gmra.mxu0 %v262
        %v828 = vpop.f32.mrf.mxu0
        %v829 = vadd.f32 %v806, %v828
        %830 = vmatmul.f32.gmra.mxu0 %v265
        %v831 = vpop.f32.mrf.mxu0
        %v832 = vadd.f32 %v806, %v831
        %833 = vmatmul.f32.gmra.mxu0 %v268
        %v834 = vpop.f32.mrf.mxu0
        %v835 = vadd.f32 %v806, %v834
        %836 = vmatmul.f32.gmra.mxu0 %v271
        %v837 = vpop.f32.mrf.mxu0
        %v838 = vadd.f32 %v806, %v837
        %839 = vmatmul.f32.gmra.mxu0 %v274
        %v840 = vpop.f32.mrf.mxu0
        %v841 = vadd.f32 %v806, %v840
        %842 = vmatmul.f32.gmra.mxu0 %v277
        %v843 = vpop.f32.mrf.mxu0
        %v844 = vadd.f32 %v806, %v843
        %845 = vmatmul.f32.gmra.mxu0 %v280
        %v846 = vpop.f32.mrf.mxu0
        %v847 = vadd.f32 %v806, %v846
        %848 = vdwg.mxu0
        %s849 = scalar_lea.vmem %s210, 128 [#allocation2]
        %850 = vst.msk [vmem:[%s849] sm:$0xff] %vm257, %v826
        %851 = vst.msk [vmem:[%s849 + $0x8] sm:$0xff] %vm257, %v829
        %852 = vst.msk [vmem:[%s849 + $0x10] sm:$0xff] %vm257, %v832
        %853 = vst.msk [vmem:[%s849 + $0x18] sm:$0xff] %vm257, %v835
        %854 = vst.msk [vmem:[%s849 + $0x20] sm:$0xff] %vm257, %v838
        %855 = vst.msk [vmem:[%s849 + $0x28] sm:$0xff] %vm257, %v841
        %856 = vst.msk [vmem:[%s849 + $0x30] sm:$0xff] %vm257, %v844
        %857 = vst.msk [vmem:[%s849 + $0x38] sm:$0xff] %vm257, %v847
        %v858 = vxor.u32 %v826, 2147483648
        %v859 = vxor.u32 %v829, 2147483648
        %v860 = vxor.u32 %v832, 2147483648
        %v861 = vxor.u32 %v835, 2147483648
        %v862 = vxor.u32 %v838, 2147483648
        %v863 = vxor.u32 %v841, 2147483648
        %v864 = vxor.u32 %v844, 2147483648
        %v865 = vxor.u32 %v847, 2147483648
        %v866 = vmul.f32 %v858, 1.442695
        %v867 = vpow.pop %v866
        %v868 = vmul.f32 %v859, 1.442695
        %v869 = vpow.pop %v868
        %v870 = vmul.f32 %v860, 1.442695
        %v871 = vpow.pop %v870
        %v872 = vmul.f32 %v861, 1.442695
        %v873 = vpow.pop %v872
        %v874 = vmul.f32 %v862, 1.442695
        %v875 = vpow.pop %v874
        %v876 = vmul.f32 %v863, 1.442695
        %v877 = vpow.pop %v876
        %v878 = vmul.f32 %v864, 1.442695
        %v879 = vpow.pop %v878
        %v880 = vmul.f32 %v865, 1.442695
        %v881 = vpow.pop %v880
        %v882 = vadd.f32 %v867, 1.0
        %v883 = vadd.f32 %v869, 1.0
        %v884 = vadd.f32 %v871, 1.0
        %v885 = vadd.f32 %v873, 1.0
        %v886 = vadd.f32 %v875, 1.0
        %v887 = vadd.f32 %v877, 1.0
        %v888 = vadd.f32 %v879, 1.0
        %v889 = vadd.f32 %v881, 1.0
        %v890 = vrcp.pop %v882
        %v891 = vmul.f32 %v882, %v890
        %v892 = vsub.f32 1.0, %v891
        %v893 = vmul.f32 %v890, %v892
        %v894 = vadd.f32 %v890, %v893
        %vm895 = vweird.f32 %v882
        %vm896 = vweird.f32 %v890
        %vm897 = vmor %vm895, %vm896
        %v898 = vsel %vm897, %v890, %v894
        %v899 = vand.u32 2147483647, %v882
        %vm900 = vcmp.eq.f32.partialorder %v899, 8.507059e+37
        %v901 = vand.u32 %v882, 2147483648
        %v902 = vor.u32 1.1754944e-38, %v901
        %v903 = vsel %vm900, %v902, %v898
        %v904 = vmul.f32 1.0, %v903
        %v905 = vrcp.pop %v883
        %v906 = vmul.f32 %v883, %v905
        %v907 = vsub.f32 1.0, %v906
        %v908 = vmul.f32 %v905, %v907
        %v909 = vadd.f32 %v905, %v908
        %vm910 = vweird.f32 %v883
        %vm911 = vweird.f32 %v905
        %vm912 = vmor %vm910, %vm911
        %v913 = vsel %vm912, %v905, %v909
        %v914 = vand.u32 2147483647, %v883
        %vm915 = vcmp.eq.f32.partialorder %v914, 8.507059e+37
        %v916 = vand.u32 %v883, 2147483648
        %v917 = vor.u32 1.1754944e-38, %v916
        %v918 = vsel %vm915, %v917, %v913
        %v919 = vmul.f32 1.0, %v918
        %v920 = vrcp.pop %v884
        %v921 = vmul.f32 %v884, %v920
        %v922 = vsub.f32 1.0, %v921
        %v923 = vmul.f32 %v920, %v922
        %v924 = vadd.f32 %v920, %v923
        %vm925 = vweird.f32 %v884
        %vm926 = vweird.f32 %v920
        %vm927 = vmor %vm925, %vm926
        %v928 = vsel %vm927, %v920, %v924
        %v929 = vand.u32 2147483647, %v884
        %vm930 = vcmp.eq.f32.partialorder %v929, 8.507059e+37
        %v931 = vand.u32 %v884, 2147483648
        %v932 = vor.u32 1.1754944e-38, %v931
        %v933 = vsel %vm930, %v932, %v928
        %v934 = vmul.f32 1.0, %v933
        %v935 = vrcp.pop %v885
        %v936 = vmul.f32 %v885, %v935
        %v937 = vsub.f32 1.0, %v936
        %v938 = vmul.f32 %v935, %v937
        %v939 = vadd.f32 %v935, %v938
        %vm940 = vweird.f32 %v885
        %vm941 = vweird.f32 %v935
        %vm942 = vmor %vm940, %vm941
        %v943 = vsel %vm942, %v935, %v939
        %v944 = vand.u32 2147483647, %v885
        %vm945 = vcmp.eq.f32.partialorder %v944, 8.507059e+37
        %v946 = vand.u32 %v885, 2147483648
        %v947 = vor.u32 1.1754944e-38, %v946
        %v948 = vsel %vm945, %v947, %v943
        %v949 = vmul.f32 1.0, %v948
        %v950 = vrcp.pop %v886
        %v951 = vmul.f32 %v886, %v950
        %v952 = vsub.f32 1.0, %v951
        %v953 = vmul.f32 %v950, %v952
        %v954 = vadd.f32 %v950, %v953
        %vm955 = vweird.f32 %v886
        %vm956 = vweird.f32 %v950
        %vm957 = vmor %vm955, %vm956
        %v958 = vsel %vm957, %v950, %v954
        %v959 = vand.u32 2147483647, %v886
        %vm960 = vcmp.eq.f32.partialorder %v959, 8.507059e+37
        %v961 = vand.u32 %v886, 2147483648
        %v962 = vor.u32 1.1754944e-38, %v961
        %v963 = vsel %vm960, %v962, %v958
        %v964 = vmul.f32 1.0, %v963
        %v965 = vrcp.pop %v887
        %v966 = vmul.f32 %v887, %v965
        %v967 = vsub.f32 1.0, %v966
        %v968 = vmul.f32 %v965, %v967
        %v969 = vadd.f32 %v965, %v968
        %vm970 = vweird.f32 %v887
        %vm971 = vweird.f32 %v965
        %vm972 = vmor %vm970, %vm971
        %v973 = vsel %vm972, %v965, %v969
        %v974 = vand.u32 2147483647, %v887
        %vm975 = vcmp.eq.f32.partialorder %v974, 8.507059e+37
        %v976 = vand.u32 %v887, 2147483648
        %v977 = vor.u32 1.1754944e-38, %v976
        %v978 = vsel %vm975, %v977, %v973
        %v979 = vmul.f32 1.0, %v978
        %v980 = vrcp.pop %v888
        %v981 = vmul.f32 %v888, %v980
        %v982 = vsub.f32 1.0, %v981
        %v983 = vmul.f32 %v980, %v982
        %v984 = vadd.f32 %v980, %v983
        %vm985 = vweird.f32 %v888
        %vm986 = vweird.f32 %v980
        %vm987 = vmor %vm985, %vm986
        %v988 = vsel %vm987, %v980, %v984
        %v989 = vand.u32 2147483647, %v888
        %vm990 = vcmp.eq.f32.partialorder %v989, 8.507059e+37
        %v991 = vand.u32 %v888, 2147483648
        %v992 = vor.u32 1.1754944e-38, %v991
        %v993 = vsel %vm990, %v992, %v988
        %v994 = vmul.f32 1.0, %v993
        %v995 = vrcp.pop %v889
        %v996 = vmul.f32 %v889, %v995
        %v997 = vsub.f32 1.0, %v996
        %v998 = vmul.f32 %v995, %v997
        %v999 = vadd.f32 %v995, %v998
        %vm1000 = vweird.f32 %v889
        %vm1001 = vweird.f32 %v995
        %vm1002 = vmor %vm1000, %vm1001
        %v1003 = vsel %vm1002, %v995, %v999
        %v1004 = vand.u32 2147483647, %v889
        %vm1005 = vcmp.eq.f32.partialorder %v1004, 8.507059e+37
        %v1006 = vand.u32 %v889, 2147483648
        %v1007 = vor.u32 1.1754944e-38, %v1006
        %v1008 = vsel %vm1005, %v1007, %v1003
        %v1009 = vmul.f32 1.0, %v1008
        %v1010 = vmul.f32 %v904, 2.0
        %v1011 = vmul.f32 %v919, 2.0
        %v1012 = vmul.f32 %v934, 2.0
        %v1013 = vmul.f32 %v949, 2.0
        %v1014 = vmul.f32 %v964, 2.0
        %v1015 = vmul.f32 %v979, 2.0
        %v1016 = vmul.f32 %v994, 2.0
        %v1017 = vmul.f32 %v1009, 2.0
        %v1018 = vsub.f32 %v1010, 0.5
        %v1019 = vsub.f32 %v1011, 0.5
        %v1020 = vsub.f32 %v1012, 0.5
        %v1021 = vsub.f32 %v1013, 0.5
        %v1022 = vsub.f32 %v1014, 0.5
        %v1023 = vsub.f32 %v1015, 0.5
        %v1024 = vsub.f32 %v1016, 0.5
        %v1025 = vsub.f32 %v1017, 0.5
        %v1026 = vmul.f32 %v1010, %v1010
        %v1027 = vmul.f32 %v1011, %v1011
        %v1028 = vmul.f32 %v1012, %v1012
        %v1029 = vmul.f32 %v1013, %v1013
        %v1030 = vmul.f32 %v1014, %v1014
        %v1031 = vmul.f32 %v1015, %v1015
        %v1032 = vmul.f32 %v1016, %v1016
        %v1033 = vmul.f32 %v1017, %v1017
        %s1034 = scalar_lea.vmem %s3, 2
        %v1035 = vld [vmem:[%s1034] sm:$0x1]
        %v1037 = vperm.slane %v1035, 0
        %v1039 = vmul.f32 %v1026, %v1037
        %v1040 = vmul.f32 %v1027, %v1037
        %v1041 = vmul.f32 %v1028, %v1037
        %v1042 = vmul.f32 %v1029, %v1037
        %v1043 = vmul.f32 %v1030, %v1037
        %v1044 = vmul.f32 %v1031, %v1037
        %v1045 = vmul.f32 %v1032, %v1037
        %v1046 = vmul.f32 %v1033, %v1037
        %v1047 = vsel %vm493, %v1018, %v1039
        %v1048 = vsel %vm493, %v1019, %v1040
        %v1049 = vsel %vm493, %v1020, %v1041
        %v1050 = vsel %vm493, %v1021, %v1042
        %v1051 = vsel %vm493, %v1022, %v1043
        %v1052 = vsel %vm493, %v1023, %v1044
        %v1053 = vsel %vm493, %v1024, %v1045
        %v1054 = vsel %vm493, %v1025, %v1046
        %1055 = vst.msk [vmem:[%s849] sm:$0xff] %vm530, %v1047
        %1056 = vst.msk [vmem:[%s849 + $0x8] sm:$0xff] %vm530, %v1048
        %1057 = vst.msk [vmem:[%s849 + $0x10] sm:$0xff] %vm530, %v1049
        %1058 = vst.msk [vmem:[%s849 + $0x18] sm:$0xff] %vm530, %v1050
        %1059 = vst.msk [vmem:[%s849 + $0x20] sm:$0xff] %vm530, %v1051
        %1060 = vst.msk [vmem:[%s849 + $0x28] sm:$0xff] %vm530, %v1052
        %1061 = vst.msk [vmem:[%s849 + $0x30] sm:$0xff] %vm530, %v1053
        %1062 = vst.msk [vmem:[%s849 + $0x38] sm:$0xff] %vm530, %v1054
        %s1063 = sand.u32 %s131, 1
        %s1064 = scalar_lea.sflag [#allocation3], %s1063
        %s1065 = sand.u32 %s131, 1
        %s1066 = smul.addr %s1065, 192
        %s1067 = scalar_lea.vmem [#allocation2], %s1066
        // Predicated region
        $region37: #{head_forward.4} parent=35 // pred_check
          %p1068 = pneg %p141
        $region38: #{head_forward.4} parent=35 // pred_check_branch
          %1070 = sbr.rel (%p1068) target = $region40
        $region39: #{head_forward.4} parent=35 // pred_region
          %s1071 = smul.u32 8, %s23
          %1073 = vsyncadd %s1064, 0
          %s1074 = smul.addr %s22, 24
          %s1075 = sadd.s32 %s1071, %s1074
          %s1076 = smul.addr %s1075, 8
          %s1077 = scalar_lea.hbm %s4, %s1076
          %s1078 = sshll.u32 %s1067, 4
          %s1079 = int_to_ptr.vmem [resolvable:$true] %s1078
          %s1080 = sshll.u32 %s1077, 4
          %s1081 = int_to_ptr.hbm [resolvable:$true] %s1080
          %1086 = dma.vmem_to_hbm [thread:$0]  %s1079, 3072, %s1081, %s1064, 128, 128, 8
        $region40: #{head_forward.4} parent=35 // pred_fallthru
          _
      $region36: #{head_forward.4} parent=5 // pred_fallthru
        _
      %p1087 = scmp.le.s32.totalorder 2, %s13
      // Predicated region
      $region41: #{head_forward.4} parent=5 // pred_check
        %p1088 = pneg %p1087
      $region42: #{head_forward.4} parent=5 // pred_check_branch
        %1090 = sbr.rel (%p1088) target = $region44
      $region43: #{head_forward.4} parent=5 // pred_region
        %s1091 = ssub.s32 %s13, 2
        // Predicated region
        $region45: #{head_forward.4} parent=43 // pred_check
          %p1092 = pneg %p147
        $region46: #{head_forward.4} parent=43 // pred_check_branch
          %1094 = sbr.rel (%p1092) target = $region48
        $region47: #{head_forward.4} parent=43 // pred_region
          %s1095 = sand.u32 %s132, 1
          %s1096 = scalar_lea.sflag [#allocation3], %s1095
          %s1097 = sand.u32 %s132, 1
          %s1098 = smul.addr %s1097, 192
          %s1099 = scalar_lea.vmem [#allocation2], %s1098
          %1101 = dma.done %s1096, 3072
        $region48: #{head_forward.4} parent=43 // pred_fallthru
          _
      $region44: #{head_forward.4} parent=5 // pred_fallthru
        _
    $region6: #{head_forward.4} parent=1 // loop_footer
      %s17 = sadd.s32 1, %s13
    $region7: #{head_forward.4} parent=1 // loop_footer_branch
      %12 = sbr.rel target = $region3
    $region8: #{head_forward.4} parent=1 // loop_exit
      _
    %1102 = vsyncpa [#allocation3], 1
    %s1103 = scalar_lea.sflag [#allocation3], 1
    %1104 = vsyncpa %s1103, 1

// kernel: head_forward.5
$region0: #{head_forward.5}
  #allocation0 [shape = 'u32[]', space=smem, size = 0x4, offset = 0x4, fixed_abs, tag = 'smem constant byte address 0x4 - core index']
  #allocation1 [shape = 'u32[72,128]{1,0:T(1,128)}', space=vmem, size = 0x9000, scoped, tag = 'internal scratch']
  %s0 = inlined_call_operand.vmem [shape: f32[2,16,16], index: 0, kind: input, shape index: {}]
  %s1 = inlined_call_operand.vmem [shape: f32[3,16,8], index: 1, kind: input, shape index: {}]
  %s2 = inlined_call_operand.vmem [shape: f32[3,1,8], index: 2, kind: input, shape index: {}]
  %s3 = inlined_call_operand.vmem [shape: f32[3,1,4], index: 3, kind: input, shape index: {}]
  %s4 = inlined_call_operand.hbm [shape: f32[2,3,16,8], index: 4, kind: output, shape index: {}]
  %s5 = sld [smem:[#allocation0]]
  $region49: #{head_forward.5} parent=0
    _
  %s7 = ssub.s32 1, %s5
  %s8 = scalar_select 0, %s7, %s5
  $region1: #{head_forward.5} parent=0
    #allocation2 [shape = 'u8[49152]{0}', space=vmem, size = 0xc000, scoped, tag = 'output window, operand 0']
    #allocation3 [shape = 's32[2]{0}', space=sflag, size = 0x8, scoped, tag = 'scoped memory for head_forward.5']
    %9 = vsyncpa [#allocation3], 0
    %s10 = scalar_lea.sflag [#allocation3], 1
    %11 = vsyncpa %s10, 0
    loop: start=0, step=1, limit=4
    $region2: #{head_forward.5} parent=1 // loop_pre_header
      _
    $region3: #{head_forward.5} parent=1 // loop_header
      %s13 = sphi 0, %s17
      %p14 = scmp.ge.s32.totalorder %s13, 4
      %s20 = sphi 0, %s32
      %s21 = sphi 0, %s28
      %s22 = sphi 0, %s20
      %s23 = sphi 0, %s21
      %s24 = sphi 0, %s22
      %s25 = sphi 0, %s23
      %s37 = sphi 0, %s39
      %s40 = sphi 0, %s37
      %s41 = sphi 0, %s40
      %s57 = sphi 0, %s41
      %s61 = sphi 0, %s61
      %s63 = sphi 0, %s61
      %s64 = sphi 0, %s63
      %s78 = sphi 0, %s64
      %s82 = sphi 0, %s82
      %s84 = sphi 0, %s82
      %s85 = sphi 0, %s84
      %s99 = sphi 0, %s85
      %s103 = sphi 0, %s103
      %s105 = sphi 0, %s103
      %s106 = sphi 0, %s105
      %s120 = sphi 0, %s106
      %s128 = sphi 0, %s130
      %s131 = sphi 0, %s128
      %s132 = sphi 0, %s131
      %s148 = sphi 0, %s132
    $region4: #{head_forward.5} parent=1 // loop_header_branch
      %16 = sbr.rel (%p14) target = $region8
    $region5: #{head_forward.5} parent=1 // loop_body
      %s18 = ssub.s32 %s13, 1
      %s19 = ssub.s32 %s13, 2
      %s26 = sadd.s32 1, %s21
      %p27 = scmp.ge.s32.totalorder %s26, 1
      %s28 = scalar_select %p27, 0, %s26
      %s29 = sadd.s32 1, %s20
      %s30 = scalar_select %p27, %s29, %s20
      %p31 = scmp.ge.s32.totalorder %s30, 2
      %s32 = scalar_select %p31, 0, %s30
      %s33 = ssub.s32 %s20, %s32
      %s34 = ssub.s32 %s21, %s28
      %s35 = sor.u32 %s33, %s34
      %p36 = scmp.eq.s32.totalorder %s35, 0
      %s38 = sadd.s32 %s37, 1
      %s39 = scalar_select %p36, %s37, %s38
      %p42 = pneg %p36
      %p43 = scmp.eq.s32.totalorder %s13, 1
      %p44 = por %p42, %p43
      %p45 = scmp.ne.s32.totalorder %s37, %s40
      %p46 = scmp.eq.s32.totalorder %s13, 0
      %p47 = por %p45, %p46
      %p48 = scmp.ne.s32.totalorder %s37, %s40
      %p49 = scmp.eq.s32.totalorder %s18, 1
      %p50 = por %p48, %p49
      %p51 = scmp.ne.s32.totalorder %s40, %s41
      %p52 = scmp.eq.s32.totalorder %s18, 0
      %p53 = por %p51, %p52
      %p54 = scmp.ne.s32.totalorder %s40, %s41
      %p55 = scmp.eq.s32.totalorder %s19, 1
      %p56 = por %p54, %p55
      %p58 = scmp.ne.s32.totalorder %s41, %s57
      %p59 = scmp.eq.s32.totalorder %s19, 0
      %p60 = por %p58, %p59
      %s62 = sadd.s32 %s61, 1
      %p65 = scmp.eq.s32.totalorder %s13, 1
      %p66 = scmp.ne.s32.totalorder %s61, %s63
      %p67 = scmp.eq.s32.totalorder %s13, 0
      %p68 = por %p66, %p67
      %p69 = scmp.ne.s32.totalorder %s61, %s63
      %p70 = scmp.eq.s32.totalorder %s18, 1
      %p71 = por %p69, %p70
      %p72 = scmp.ne.s32.totalorder %s63, %s64
      %p73 = scmp.eq.s32.totalorder %s18, 0
      %p74 = por %p72, %p73
      %p75 = scmp.ne.s32.totalorder %s63, %s64
      %p76 = scmp.eq.s32.totalorder %s19, 1
      %p77 = por %p75, %p76
      %p79 = scmp.ne.s32.totalorder %s64, %s78
      %p80 = scmp.eq.s32.totalorder %s19, 0
      %p81 = por %p79, %p80
      %s83 = sadd.s32 %s82, 1
      %p86 = scmp.eq.s32.totalorder %s13, 1
      %p87 = scmp.ne.s32.totalorder %s82, %s84
      %p88 = scmp.eq.s32.totalorder %s13, 0
      %p89 = por %p87, %p88
      %p90 = scmp.ne.s32.totalorder %s82, %s84
      %p91 = scmp.eq.s32.totalorder %s18, 1
      %p92 = por %p90, %p91
      %p93 = scmp.ne.s32.totalorder %s84, %s85
      %p94 = scmp.eq.s32.totalorder %s18, 0
      %p95 = por %p93, %p94
      %p96 = scmp.ne.s32.totalorder %s84, %s85
      %p97 = scmp.eq.s32.totalorder %s19, 1
      %p98 = por %p96, %p97
      %p100 = scmp.ne.s32.totalorder %s85, %s99
      %p101 = scmp.eq.s32.totalorder %s19, 0
      %p102 = por %p100, %p101
      %s104 = sadd.s32 %s103, 1
      %p107 = scmp.eq.s32.totalorder %s13, 1
      %p108 = scmp.ne.s32.totalorder %s103, %s105
      %p109 = scmp.eq.s32.totalorder %s13, 0
      %p110 = por %p108, %p109
      %p111 = scmp.ne.s32.totalorder %s103, %s105
      %p112 = scmp.eq.s32.totalorder %s18, 1
      %p113 = por %p111, %p112
      %p114 = scmp.ne.s32.totalorder %s105, %s106
      %p115 = scmp.eq.s32.totalorder %s18, 0
      %p116 = por %p114, %p115
      %p117 = scmp.ne.s32.totalorder %s105, %s106
      %p118 = scmp.eq.s32.totalorder %s19, 1
      %p119 = por %p117, %p118
      %p121 = scmp.ne.s32.totalorder %s106, %s120
      %p122 = scmp.eq.s32.totalorder %s19, 0
      %p123 = por %p121, %p122
      %s124 = ssub.s32 %s20, %s32
      %s125 = ssub.s32 %s21, %s28
      %s126 = sor.u32 %s124, %s125
      %p127 = scmp.eq.s32.totalorder %s126, 0
      %s129 = sadd.s32 %s128, 1
      %s130 = scalar_select %p127, %s128, %s129
      %p133 = pneg %p127
      %p134 = scmp.eq.s32.totalorder %s13, 1
      %p135 = por %p133, %p134
      %p136 = scmp.ne.s32.totalorder %s128, %s131
      %p137 = scmp.eq.s32.totalorder %s13, 0
      %p138 = por %p136, %p137
      %p139 = scmp.ne.s32.totalorder %s128, %s131
      %p140 = scmp.eq.s32.totalorder %s18, 1
      %p141 = por %p139, %p140
      %p142 = scmp.ne.s32.totalorder %s131, %s132
      %p143 = scmp.eq.s32.totalorder %s18, 0
      %p144 = por %p142, %p143
      %p145 = scmp.ne.s32.totalorder %s131, %s132
      %p146 = scmp.eq.s32.totalorder %s19, 1
      %p147 = por %p145, %p146
      %p149 = scmp.ne.s32.totalorder %s132, %s148
      %p150 = scmp.eq.s32.totalorder %s19, 0
      %p151 = por %p149, %p150
      %p152 = scmp.le.s32.totalorder 1, %s13
      %p153 = scmp.lt.s32.totalorder %s13, 3
      %p154 = pnand %p152, %p153
      %p155 = pneg %p154
      // Predicated region
      $region9: #{head_forward.5} parent=5 // pred_check
        _
      $region10: #{head_forward.5} parent=5 // pred_check_branch
        %157 = sbr.rel (%p154) target = $region12
      $region11: #{head_forward.5} parent=5 // pred_region
        %s158 = ssub.s32 %s13, 1
        // Predicated region
        $region13: #{head_forward.5} parent=11 // pred_check
          %p159 = pneg %p74
        $region14: #{head_forward.5} parent=11 // pred_check_branch
          %161 = sbr.rel (%p159) target = $region16
        $region15: #{head_forward.5} parent=11 // pred_region
          _
        $region16: #{head_forward.5} parent=11 // pred_fallthru
          _
        // Predicated region
        $region17: #{head_forward.5} parent=11 // pred_check
          %p162 = pneg %p95
        $region18: #{head_forward.5} parent=11 // pred_check_branch
          %164 = sbr.rel (%p162) target = $region20
        $region19: #{head_forward.5} parent=11 // pred_region
          _
        $region20: #{head_forward.5} parent=11 // pred_fallthru
          _
        // Predicated region
        $region21: #{head_forward.5} parent=11 // pred_check
          %p165 = pneg %p116
        $region22: #{head_forward.5} parent=11 // pred_check_branch
          %167 = sbr.rel (%p165) target = $region24
        $region23: #{head_forward.5} parent=11 // pred_region
          _
        $region24: #{head_forward.5} parent=11 // pred_fallthru
          _
      $region12: #{head_forward.5} parent=5 // pred_fallthru
        _
      %p168 = scmp.lt.s32.totalorder %s13, 2
      // Predicated region
      $region25: #{head_forward.5} parent=5 // pred_check
        %p169 = pneg %p168
      $region26: #{head_forward.5} parent=5 // pred_check_branch
        %171 = sbr.rel (%p169) target = $region28
      $region27: #{head_forward.5} parent=5 // pred_region
        // Predicated region
        $region29: #{head_forward.5} parent=27 // pred_check
          %p172 = pneg %p47
        $region30: #{head_forward.5} parent=27 // pred_check_branch
          %174 = sbr.rel (%p172) target = $region32
        $region31: #{head_forward.5} parent=27 // pred_region
          %p175 = scmp.lt.s32.totalorder %s20, 1
          %s176 = scalar_select %p175, %s20, 1
          %p177 = scmp.lt.s32.totalorder %s21, 0
          %s178 = scalar_select %p177, %s21, 0
          %s179 = smul.addr %s176, 2
          %s180 = sadd.s32 %s178, %s179
          %s181 = smul.addr %s180, 8
          %s182 = scalar_lea.vmem %s0, %s181
        $region32: #{head_forward.5} parent=27 // pred_fallthru
          _
      $region28: #{head_forward.5} parent=5 // pred_fallthru
        _
      %p183 = scmp.le.s32.totalorder 1, %s13
      %p184 = scmp.lt.s32.totalorder %s13, 3
      %p185 = pnand %p183, %p184
      %p186 = pneg %p185
      // Predicated region
      $region33: #{head_forward.5} parent=5 // pred_check
        _
      $region34: #{head_forward.5} parent=5 // pred_check_branch
        %188 = sbr.rel (%p185) target = $region36
      $region35: #{head_forward.5} parent=5 // pred_region
        %s189 = ssub.s32 %s13, 1
        %p190 = scmp.lt.s32.totalorder %s22, 1
        %s191 = scalar_select %p190, %s22, 1
        %p192 = scmp.lt.s32.totalorder %s23, 0
        %s193 = scalar_select %p192, %s23, 0
        %s194 = smul.addr %s191, 2
        %s195 = sadd.s32 %s193, %s194
        %s196 = smul.addr %s195, 8
        %s197 = scalar_lea.vmem %s0, %s196
        %p198 = pneg %p53
        %p199 = pneg %p50
        %p200 = pneg %p74
        %p201 = pneg %p71
        %p202 = pneg %p95
        %p203 = pneg %p92
        %p204 = pneg %p116
        %p205 = pneg %p113
        %p206 = pneg %p144
        %p207 = pneg %p141
        %s208 = sand.u32 %s131, 1
        %s209 = scalar_lea.sflag [#allocation3], %s208
        %s210 = sand.u32 %s131, 1
        %s211 = smul.addr %s210, 48
        %s212 = scalar_lea.vmem [#allocation2], %s211
        %p213 = scmp.lt.s32.totalorder %s22, 1
        %s214 = scalar_select %p213, %s22, 1
        %p215 = scmp.lt.s32.totalorder %s23, 0
        %s216 = scalar_select %p215, %s23, 0
        %s217 = smul.addr %s214, 2
        %s218 = sadd.s32 %s216, %s217
        %s219 = smul.addr %s218, 8
        %s220 = scalar_lea.vmem %s0, %s219
        %s221 = smul.u32 2, %s23
        %v222 = vld [vmem:[%s220] sm:$0xff]
        %v223 = vld [vmem:[%s220 + $0x8] sm:$0xff]
        %v224 = vld [vmem:[%s1] sm:$0xff]
        %v225 = vld [vmem:[%s1 + $0x8] sm:$0xff]
        %v226 = vld [vmem:[%s2] sm:$0x1]
        %v228 = vperm.slane %v226, 0
        %230 = vxpose.xlu0.b32.start [1/16] %v222, 128
        %231 = vxpose.xlu0.b32.cont [2/16] %v223, 128
        %232 = vxpose.xlu0.b32.cont [3/16] 0.0, 128
        %233 = vxpose.xlu0.b32.cont [4/16] 0.0, 128
        %234 = vxpose.xlu0.b32.cont [5/16] 0.0, 128
        %235 = vxpose.xlu0.b32.cont [6/16] 0.0, 128
        %236 = vxpose.xlu0.b32.cont [7/16] 0.0, 128
        %237 = vxpose.xlu0.b32.cont [8/16] 0.0, 128
        %238 = vxpose.xlu0.b32.cont [9/16] 0.0, 128
        %239 = vxpose.xlu0.b32.cont [10/16] 0.0, 128
        %240 = vxpose.xlu0.b32.cont [11/16] 0.0, 128
        %241 = vxpose.xlu0.b32.cont [12/16] 0.0, 128
        %242 = vxpose.xlu0.b32.cont [13/16] 0.0, 128
        %243 = vxpose.xlu0.b32.cont [14/16] 0.0, 128
        %244 = vxpose.xlu0.b32.cont [15/16] 0.0, 128
        %245 = vxpose.xlu0.b32.end [16/16] 0.0, 128
        %v246 = vpop.trf.xlu0
        %v247 = vpop.trf.xlu0
        %v248 = vpop.trf.xlu0
        %v249 = vpop.trf.xlu0
        %v250 = vpop.trf.xlu0
        %v251 = vpop.trf.xlu0
        %v252 = vpop.trf.xlu0
        %v253 = vpop.trf.xlu0
        %v254 = vpop.trf.xlu0
        %v255 = vpop.trf.xlu0
        %v256 = vpop.trf.xlu0
        %v257 = vpop.trf.xlu0
        %v258 = vpop.trf.xlu0
        %v259 = vpop.trf.xlu0
        %v260 = vpop.trf.xlu0
        %v261 = vpop.trf.xlu0
        %vm262 = vcmask 130048
        %v264 = vsel %vm262, %v246, 0
        %v267 = vsel %vm262, %v247, 0
        %269 = vmatpush.msra.mxu0 0.0
        %270 = vmatpush.msra.mxu0 0.0
        %271 = vmatpush.msra.mxu0 0.0
        %272 = vmatpush.msra.mxu0 0.0
        %273 = vmatpush.msra.mxu0 0.0
        %274 = vmatpush.msra.mxu0 0.0
        %275 = vmatpush.msra.mxu0 0.0
        %276 = vmatpush.msra.mxu0 0.0
        %277 = vmatpush.msra.mxu0 0.0
        %278 = vmatpush.msra.mxu0 0.0
        %279 = vmatpush.msra.mxu0 0.0
        %280 = vmatpush.msra.mxu0 0.0
        %281 = vmatpush.msra.mxu0 0.0
        %282 = vmatpush.msra.mxu0 0.0
        %283 = vmatpush.msra.mxu0 %v225
        %284 = vmatpush.msra.mxu0 %v224
        %285 = vmatmul.f32.gmra.mxu0 %v264
        %v286 = vpop.f32.mrf.mxu0
        %v287 = vadd.f32 %v228, %v286
        %288 = vmatmul.f32.gmra.mxu0 %v267
        %v289 = vpop.f32.mrf.mxu0
        %v290 = vadd.f32 %v228, %v289
        %291 = vdwg.mxu0
        %vm292 = vcmask 64512
        %293 = vst.msk [vmem:[%s212] sm:$0xff] %vm292, %v287
        %294 = vst.msk [vmem:[%s212 + $0x8] sm:$0xff] %vm292, %v290
        %v295 = vxor.u32 %v287, 2147483648
        %v296 = vxor.u32 %v290, 2147483648
        %v297 = vmul.f32 %v295, 1.442695
        %v298 = vpow.pop %v297
        %v299 = vmul.f32 %v296, 1.442695
        %v300 = vpow.pop %v299
        %v301 = vadd.f32 %v298, 1.0
        %v302 = vadd.f32 %v300, 1.0
        %v303 = vrcp.pop %v301
        %v304 = vmul.f32 %v301, %v303
        %v305 = vsub.f32 1.0, %v304
        %v306 = vmul.f32 %v303, %v305
        %v307 = vadd.f32 %v303, %v306
        %vm308 = vweird.f32 %v301
        %vm309 = vweird.f32 %v303
        %vm310 = vmor %vm308, %vm309
        %v311 = vsel %vm310, %v303, %v307
        %v312 = vand.u32 2147483647, %v301
        %vm313 = vcmp.eq.f32.partialorder %v312, 8.507059e+37
        %v314 = vand.u32 %v301, 2147483648
        %v315 = vor.u32 1.1754944e-38, %v314
        %v316 = vsel %vm313, %v315, %v311
        %v317 = vmul.f32 1.0, %v316
        %v318 = vrcp.pop %v302
        %v319 = vmul.f32 %v302, %v318
        %v320 = vsub.f32 1.0, %v319
        %v321 = vmul.f32 %v318, %v320
        %v322 = vadd.f32 %v318, %v321
        %vm323 = vweird.f32 %v302
        %vm324 = vweird.f32 %v318
        %vm325 = vmor %vm323, %vm324
        %v326 = vsel %vm325, %v318, %v322
        %v327 = vand.u32 2147483647, %v302
        %vm328 = vcmp.eq.f32.partialorder %v327, 8.507059e+37
        %v329 = vand.u32 %v302, 2147483648
        %v330 = vor.u32 1.1754944e-38, %v329
        %v331 = vsel %vm328, %v330, %v326
        %v332 = vmul.f32 1.0, %v331
        %v333 = vmul.f32 %v317, 2.0
        %v334 = vmul.f32 %v332, 2.0
        %v335 = vlaneseq
        %v336 = vand.u32 %v335, 127
        %vm337 = vcmp.lt.s32.totalorder %v336, 2
        %v338 = vsub.f32 %v333, 0.5
        %v339 = vsub.f32 %v334, 0.5
        %v340 = vmul.f32 %v333, %v333
        %v341 = vmul.f32 %v334, %v334
        %v342 = vld [vmem:[%s3] sm:$0x1]
        %v344 = vperm.slane %v342, 0
        %v346 = vmul.f32 %v340, %v344
        %v347 = vmul.f32 %v341, %v344
        %v348 = vsel %vm337, %v338, %v346
        %v349 = vsel %vm337, %v339, %v347
        %vm350 = vcmask 31744
        %351 = vst.msk [vmem:[%s212] sm:$0xff] %vm350, %v348
        %352 = vst.msk [vmem:[%s212 + $0x8] sm:$0xff] %vm350, %v349
        %s353 = scalar_lea.vmem %s1, 16
        %v354 = vld [vmem:[%s353] sm:$0xff]
        %v355 = vld [vmem:[%s353 + $0x8] sm:$0xff]
        %s356 = scalar_lea.vmem %s2, 1
        %v357 = vld [vmem:[%s356] sm:$0x1]
        %v359 = vperm.slane %v357, 0
        %361 = vmatpush.msra.mxu0 0.0
        %362 = vmatpush.msra.mxu0 0.0
        %363 = vmatpush.msra.mxu0 0.0
        %364 = vmatpush.msra.mxu0 0.0
        %365 = vmatpush.msra.mxu0 0.0
        %366 = vmatpush.msra.mxu0 0.0
        %367 = vmatpush.msra.mxu0 0.0
        %368 = vmatpush.msra.mxu0 0.0
        %369 = vmatpush.msra.mxu0 0.0
        %370 = vmatpush.msra.mxu0 0.0
        %371 = vmatpush.msra.mxu0 0.0
        %372 = vmatpush.msra.mxu0 0.0
        %373 = vmatpush.msra.mxu0 0.0
        %374 = vmatpush.msra.mxu0 0.0
        %375 = vmatpush.msra.mxu0 %v355
        %376 = vmatpush.msra.mxu0 %v354
        %377 = vmatmul.f32.gmra.mxu0 %v264
        %v378 = vpop.f32.mrf.mxu0
        %v379 = vadd.f32 %v359, %v378
        %380 = vmatmul.f32.gmra.mxu0 %v267
        %v381 = vpop.f32.mrf.mxu0
        %v382 = vadd.f32 %v359, %v381
        %383 = vdwg.mxu0
        %s384 = scalar_lea.vmem %s212, 16 [#allocation2]
        %385 = vst.msk [vmem:[%s384] sm:$0xff] %vm292, %v379
        %386 = vst.msk [vmem:[%s384 + $0x8] sm:$0xff] %vm292, %v382
        %v387 = vxor.u32 %v379, 2147483648
        %v388 = vxor.u32 %v382, 2147483648
        %v389 = vmul.f32 %v387, 1.442695
        %v390 = vpow.pop %v389
        %v391 = vmul.f32 %v388, 1.442695
        %v392 = vpow.pop %v391
        %v393 = vadd.f32 %v390, 1.0
        %v394 = vadd.f32 %v392, 1.0
        %v395 = vrcp.pop %v393
        %v396 = vmul.f32 %v393, %v395
        %v397 = vsub.f32 1.0, %v396
        %v398 = vmul.f32 %v395, %v397
        %v399 = vadd.f32 %v395, %v398
        %vm400 = vweird.f32 %v393
        %vm401 = vweird.f32 %v395
        %vm402 = vmor %vm400, %vm401
        %v403 = vsel %vm402, %v395, %v399
        %v404 = vand.u32 2147483647, %v393
        %vm405 = vcmp.eq.f32.partialorder %v404, 8.507059e+37
        %v406 = vand.u32 %v393, 2147483648
        %v407 = vor.u32 1.1754944e-38, %v406
        %v408 = vsel %vm405, %v407, %v403
        %v409 = vmul.f32 1.0, %v408
        %v410 = vrcp.pop %v394
        %v411 = vmul.f32 %v394, %v410
        %v412 = vsub.f32 1.0, %v411
        %v413 = vmul.f32 %v410, %v412
        %v414 = vadd.f32 %v410, %v413
        %vm415 = vweird.f32 %v394
        %vm416 = vweird.f32 %v410
        %vm417 = vmor %vm415, %vm416
        %v418 = vsel %vm417, %v410, %v414
        %v419 = vand.u32 2147483647, %v394
        %vm420 = vcmp.eq.f32.partialorder %v419, 8.507059e+37
        %v421 = vand.u32 %v394, 2147483648
        %v422 = vor.u32 1.1754944e-38, %v421
        %v423 = vsel %vm420, %v422, %v418
        %v424 = vmul.f32 1.0, %v423
        %v425 = vmul.f32 %v409, 2.0
        %v426 = vmul.f32 %v424, 2.0
        %v427 = vsub.f32 %v425, 0.5
        %v428 = vsub.f32 %v426, 0.5
        %v429 = vmul.f32 %v425, %v425
        %v430 = vmul.f32 %v426, %v426
        %s431 = scalar_lea.vmem %s3, 1
        %v432 = vld [vmem:[%s431] sm:$0x1]
        %v434 = vperm.slane %v432, 0
        %v436 = vmul.f32 %v429, %v434
        %v437 = vmul.f32 %v430, %v434
        %v438 = vsel %vm337, %v427, %v436
        %v439 = vsel %vm337, %v428, %v437
        %440 = vst.msk [vmem:[%s384] sm:$0xff] %vm350, %v438
        %441 = vst.msk [vmem:[%s384 + $0x8] sm:$0xff] %vm350, %v439
        %s442 = scalar_lea.vmem %s1, 32
        %v443 = vld [vmem:[%s442] sm:$0xff]
        %v444 = vld [vmem:[%s442 + $0x8] sm:$0xff]
        %s445 = scalar_lea.vmem %s2, 2
        %v446 = vld [vmem:[%s445] sm:$0x1]
        %v448 = vperm.slane %v446, 0
        %450 = vmatpush.msra.mxu0 0.0
        %451 = vmatpush.msra.mxu0 0.0
        %452 = vmatpush.msra.mxu0 0.0
        %453 = vmatpush.msra.mxu0 0.0
        %454 = vmatpush.msra.mxu0 0.0
        %455 = vmatpush.msra.mxu0 0.0
        %456 = vmatpush.msra.mxu0 0.0
        %457 = vmatpush.msra.mxu0 0.0
        %458 = vmatpush.msra.mxu0 0.0
        %459 = vmatpush.msra.mxu0 0.0
        %460 = vmatpush.msra.mxu0 0.0
        %461 = vmatpush.msra.mxu0 0.0
        %462 = vmatpush.msra.mxu0 0.0
        %463 = vmatpush.msra.mxu0 0.0
        %464 = vmatpush.msra.mxu0 %v444
        %465 = vmatpush.msra.mxu0 %v443
        %466 = vmatmul.f32.gmra.mxu0 %v264
        %v467 = vpop.f32.mrf.mxu0
        %v468 = vadd.f32 %v448, %v467
        %469 = vmatmul.f32.gmra.mxu0 %v267
        %v470 = vpop.f32.mrf.mxu0
        %v471 = vadd.f32 %v448, %v470
        %472 = vdwg.mxu0
        %s473 = scalar_lea.vmem %s212, 32 [#allocation2]
        %474 = vst.msk [vmem:[%s473] sm:$0xff] %vm292, %v468
        %475 = vst.msk [vmem:[%s473 + $0x8] sm:$0xff] %vm292, %v471
        %v476 = vxor.u32 %v468, 2147483648
        %v477 = vxor.u32 %v471, 2147483648
        %v478 = vmul.f32 %v476, 1.442695
        %v479 = vpow.pop %v478
        %v480 = vmul.f32 %v477, 1.442695
        %v481 = vpow.pop %v480
        %v482 = vadd.f32 %v479, 1.0
        %v483 = vadd.f32 %v481, 1.0
        %v484 = vrcp.pop %v482
        %v485 = vmul.f32 %v482, %v484
        %v486 = vsub.f32 1.0, %v485
        %v487 = vmul.f32 %v484, %v486
        %v488 = vadd.f32 %v484, %v487
        %vm489 = vweird.f32 %v482
        %vm490 = vweird.f32 %v484
        %vm491 = vmor %vm489, %vm490
        %v492 = vsel %vm491, %v484, %v488
        %v493 = vand.u32 2147483647, %v482
        %vm494 = vcmp.eq.f32.partialorder %v493, 8.507059e+37
        %v495 = vand.u32 %v482, 2147483648
        %v496 = vor.u32 1.1754944e-38, %v495
        %v497 = vsel %vm494, %v496, %v492
        %v498 = vmul.f32 1.0, %v497
        %v499 = vrcp.pop %v483
        %v500 = vmul.f32 %v483, %v499
        %v501 = vsub.f32 1.0, %v500
        %v502 = vmul.f32 %v499, %v501
        %v503 = vadd.f32 %v499, %v502
        %vm504 = vweird.f32 %v483
        %vm505 = vweird.f32 %v499
        %vm506 = vmor %vm504, %vm505
        %v507 = vsel %vm506, %v499, %v503
        %v508 = vand.u32 2147483647, %v483
        %vm509 = vcmp.eq.f32.partialorder %v508, 8.507059e+37
        %v510 = vand.u32 %v483, 2147483648
        %v511 = vor.u32 1.1754944e-38, %v510
        %v512 = vsel %vm509, %v511, %v507
        %v513 = vmul.f32 1.0, %v512
        %v514 = vmul.f32 %v498, 2.0
        %v515 = vmul.f32 %v513, 2.0
        %v516 = vsub.f32 %v514, 0.5
        %v517 = vsub.f32 %v515, 0.5
        %v518 = vmul.f32 %v514, %v514
        %v519 = vmul.f32 %v515, %v515
        %s520 = scalar_lea.vmem %s3, 2
        %v521 = vld [vmem:[%s520] sm:$0x1]
        %v523 = vperm.slane %v521, 0
        %v525 = vmul.f32 %v518, %v523
        %v526 = vmul.f32 %v519, %v523
        %v527 = vsel %vm337, %v516, %v525
        %v528 = vsel %vm337, %v517, %v526
        %529 = vst.msk [vmem:[%s473] sm:$0xff] %vm350, %v527
        %530 = vst.msk [vmem:[%s473 + $0x8] sm:$0xff] %vm350, %v528
        %s531 = sand.u32 %s131, 1
        %s532 = scalar_lea.sflag [#allocation3], %s531
        %s533 = sand.u32 %s131, 1
        %s534 = smul.addr %s533, 48
        %s535 = scalar_lea.vmem [#allocation2], %s534
        // Predicated region
        $region37: #{head_forward.5} parent=35 // pred_check
          %p536 = pneg %p141
        $region38: #{head_forward.5} parent=35 // pred_check_branch
          %538 = sbr.rel (%p536) target = $region40
        $region39: #{head_forward.5} parent=35 // pred_region
          %s539 = smul.u32 2, %s23
          %541 = vsyncadd %s532, 0
          %s542 = smul.addr %s22, 6
          %s543 = sadd.s32 %s539, %s542
          %s544 = smul.addr %s543, 8
          %s545 = scalar_lea.hbm %s4, %s544
          %s546 = sshll.u32 %s535, 4
          %s547 = int_to_ptr.vmem [resolvable:$true] %s546
          %s548 = sshll.u32 %s545, 4
          %s549 = int_to_ptr.hbm [resolvable:$true] %s548
          %554 = dma.vmem_to_hbm [thread:$0]  %s547, 768, %s549, %s532, 128, 128, 8
        $region40: #{head_forward.5} parent=35 // pred_fallthru
          _
      $region36: #{head_forward.5} parent=5 // pred_fallthru
        _
      %p555 = scmp.le.s32.totalorder 2, %s13
      // Predicated region
      $region41: #{head_forward.5} parent=5 // pred_check
        %p556 = pneg %p555
      $region42: #{head_forward.5} parent=5 // pred_check_branch
        %558 = sbr.rel (%p556) target = $region44
      $region43: #{head_forward.5} parent=5 // pred_region
        %s559 = ssub.s32 %s13, 2
        // Predicated region
        $region45: #{head_forward.5} parent=43 // pred_check
          %p560 = pneg %p147
        $region46: #{head_forward.5} parent=43 // pred_check_branch
          %562 = sbr.rel (%p560) target = $region48
        $region47: #{head_forward.5} parent=43 // pred_region
          %s563 = sand.u32 %s132, 1
          %s564 = scalar_lea.sflag [#allocation3], %s563
          %s565 = sand.u32 %s132, 1
          %s566 = smul.addr %s565, 48
          %s567 = scalar_lea.vmem [#allocation2], %s566
          %569 = dma.done %s564, 768
        $region48: #{head_forward.5} parent=43 // pred_fallthru
          _
      $region44: #{head_forward.5} parent=5 // pred_fallthru
        _
    $region6: #{head_forward.5} parent=1 // loop_footer
      %s17 = sadd.s32 1, %s13
    $region7: #{head_forward.5} parent=1 // loop_footer_branch
      %12 = sbr.rel target = $region3
    $region8: #{head_forward.5} parent=1 // loop_exit
      _
    %570 = vsyncpa [#allocation3], 1
    %s571 = scalar_lea.sflag [#allocation3], 1
    %572 = vsyncpa %s571, 1

// kernel: head_forward.3
$region0: #{head_forward.3}
  #allocation0 [shape = 'u32[]', space=smem, size = 0x4, offset = 0x4, fixed_abs, tag = 'smem constant byte address 0x4 - core index']
  #allocation1 [shape = 'u32[72,128]{1,0:T(1,128)}', space=vmem, size = 0x9000, scoped, tag = 'internal scratch']
  %s0 = inlined_call_operand.vmem [shape: f32[2,8,256], index: 0, kind: input, shape index: {}]
  %s1 = inlined_call_operand.vmem [shape: f32[3,8,8], index: 1, kind: input, shape index: {}]
  %s2 = inlined_call_operand.vmem [shape: f32[3,1,8], index: 2, kind: input, shape index: {}]
  %s3 = inlined_call_operand.vmem [shape: f32[3,1,4], index: 3, kind: input, shape index: {}]
  %s4 = inlined_call_operand.vmem [shape: f32[2,3,256,8], index: 4, kind: output, shape index: {}]
  %s5 = sld [smem:[#allocation0]]
  $region49: #{head_forward.3} parent=0
    _
  %s7 = ssub.s32 1, %s5
  %s8 = scalar_select 0, %s7, %s5
  loop: start=0, step=1, limit=4
  $region2: #{head_forward.3} parent=0 // loop_pre_header
    _
  $region3: #{head_forward.3} parent=0 // loop_header
    %s10 = sphi 0, %s14
    %p11 = scmp.ge.s32.totalorder %s10, 4
    %s17 = sphi 0, %s29
    %s18 = sphi 0, %s25
    %s19 = sphi 0, %s17
    %s20 = sphi 0, %s18
    %s21 = sphi 0, %s19
    %s22 = sphi 0, %s20
    %s34 = sphi 0, %s36
    %s37 = sphi 0, %s34
    %s38 = sphi 0, %s37
    %s54 = sphi 0, %s38
    %s58 = sphi 0, %s58
    %s60 = sphi 0, %s58
    %s61 = sphi 0, %s60
    %s75 = sphi 0, %s61
    %s79 = sphi 0, %s79
    %s81 = sphi 0, %s79
    %s82 = sphi 0, %s81
    %s96 = sphi 0, %s82
    %s100 = sphi 0, %s100
    %s102 = sphi 0, %s100
    %s103 = sphi 0, %s102
    %s117 = sphi 0, %s103
    %s125 = sphi 0, %s127
    %s128 = sphi 0, %s125
    %s129 = sphi 0, %s128
    %s145 = sphi 0, %s129
  $region4: #{head_forward.3} parent=0 // loop_header_branch
    %13 = sbr.rel (%p11) target = $region8
  $region5: #{head_forward.3} parent=0 // loop_body
    %s15 = ssub.s32 %s10, 1
    %s16 = ssub.s32 %s10, 2
    %s23 = sadd.s32 1, %s18
    %p24 = scmp.ge.s32.totalorder %s23, 1
    %s25 = scalar_select %p24, 0, %s23
    %s26 = sadd.s32 1, %s17
    %s27 = scalar_select %p24, %s26, %s17
    %p28 = scmp.ge.s32.totalorder %s27, 2
    %s29 = scalar_select %p28, 0, %s27
    %s30 = ssub.s32 %s17, %s29
    %s31 = ssub.s32 %s18, %s25
    %s32 = sor.u32 %s30, %s31
    %p33 = scmp.eq.s32.totalorder %s32, 0
    %s35 = sadd.s32 %s34, 1
    %s36 = scalar_select %p33, %s34, %s35
    %p39 = pneg %p33
    %p40 = scmp.eq.s32.totalorder %s10, 1
    %p41 = por %p39, %p40
    %p42 = scmp.ne.s32.totalorder %s34, %s37
    %p43 = scmp.eq.s32.totalorder %s10, 0
    %p44 = por %p42, %p43
    %p45 = scmp.ne.s32.totalorder %s34, %s37
    %p46 = scmp.eq.s32.totalorder %s15, 1
    %p47 = por %p45, %p46
    %p48 = scmp.ne.s32.totalorder %s37, %s38
    %p49 = scmp.eq.s32.totalorder %s15, 0
    %p50 = por %p48, %p49
    %p51 = scmp.ne.s32.totalorder %s37, %s38
    %p52 = scmp.eq.s32.totalorder %s16, 1
    %p53 = por %p51, %p52
    %p55 = scmp.ne.s32.totalorder %s38, %s54
    %p56 = scmp.eq.s32.totalorder %s16, 0
    %p57 = por %p55, %p56
    %s59 = sadd.s32 %s58, 1
    %p62 = scmp.eq.s32.totalorder %s10, 1
    %p63 = scmp.ne.s32.totalorder %s58, %s60
    %p64 = scmp.eq.s32.totalorder %s10, 0
    %p65 = por %p63, %p64
    %p66 = scmp.ne.s32.totalorder %s58, %s60
    %p67 = scmp.eq.s32.totalorder %s15, 1
    %p68 = por %p66, %p67
    %p69 = scmp.ne.s32.totalorder %s60, %s61
    %p70 = scmp.eq.s32.totalorder %s15, 0
    %p71 = por %p69, %p70
    %p72 = scmp.ne.s32.totalorder %s60, %s61
    %p73 = scmp.eq.s32.totalorder %s16, 1
    %p74 = por %p72, %p73
    %p76 = scmp.ne.s32.totalorder %s61, %s75
    %p77 = scmp.eq.s32.totalorder %s16, 0
    %p78 = por %p76, %p77
    %s80 = sadd.s32 %s79, 1
    %p83 = scmp.eq.s32.totalorder %s10, 1
    %p84 = scmp.ne.s32.totalorder %s79, %s81
    %p85 = scmp.eq.s32.totalorder %s10, 0
    %p86 = por %p84, %p85
    %p87 = scmp.ne.s32.totalorder %s79, %s81
    %p88 = scmp.eq.s32.totalorder %s15, 1
    %p89 = por %p87, %p88
    %p90 = scmp.ne.s32.totalorder %s81, %s82
    %p91 = scmp.eq.s32.totalorder %s15, 0
    %p92 = por %p90, %p91
    %p93 = scmp.ne.s32.totalorder %s81, %s82
    %p94 = scmp.eq.s32.totalorder %s16, 1
    %p95 = por %p93, %p94
    %p97 = scmp.ne.s32.totalorder %s82, %s96
    %p98 = scmp.eq.s32.totalorder %s16, 0
    %p99 = por %p97, %p98
    %s101 = sadd.s32 %s100, 1
    %p104 = scmp.eq.s32.totalorder %s10, 1
    %p105 = scmp.ne.s32.totalorder %s100, %s102
    %p106 = scmp.eq.s32.totalorder %s10, 0
    %p107 = por %p105, %p106
    %p108 = scmp.ne.s32.totalorder %s100, %s102
    %p109 = scmp.eq.s32.totalorder %s15, 1
    %p110 = por %p108, %p109
    %p111 = scmp.ne.s32.totalorder %s102, %s103
    %p112 = scmp.eq.s32.totalorder %s15, 0
    %p113 = por %p111, %p112
    %p114 = scmp.ne.s32.totalorder %s102, %s103
    %p115 = scmp.eq.s32.totalorder %s16, 1
    %p116 = por %p114, %p115
    %p118 = scmp.ne.s32.totalorder %s103, %s117
    %p119 = scmp.eq.s32.totalorder %s16, 0
    %p120 = por %p118, %p119
    %s121 = ssub.s32 %s17, %s29
    %s122 = ssub.s32 %s18, %s25
    %s123 = sor.u32 %s121, %s122
    %p124 = scmp.eq.s32.totalorder %s123, 0
    %s126 = sadd.s32 %s125, 1
    %s127 = scalar_select %p124, %s125, %s126
    %p130 = pneg %p124
    %p131 = scmp.eq.s32.totalorder %s10, 1
    %p132 = por %p130, %p131
    %p133 = scmp.ne.s32.totalorder %s125, %s128
    %p134 = scmp.eq.s32.totalorder %s10, 0
    %p135 = por %p133, %p134
    %p136 = scmp.ne.s32.totalorder %s125, %s128
    %p137 = scmp.eq.s32.totalorder %s15, 1
    %p138 = por %p136, %p137
    %p139 = scmp.ne.s32.totalorder %s128, %s129
    %p140 = scmp.eq.s32.totalorder %s15, 0
    %p141 = por %p139, %p140
    %p142 = scmp.ne.s32.totalorder %s128, %s129
    %p143 = scmp.eq.s32.totalorder %s16, 1
    %p144 = por %p142, %p143
    %p146 = scmp.ne.s32.totalorder %s129, %s145
    %p147 = scmp.eq.s32.totalorder %s16, 0
    %p148 = por %p146, %p147
    %p149 = scmp.le.s32.totalorder 1, %s10
    %p150 = scmp.lt.s32.totalorder %s10, 3
    %p151 = pnand %p149, %p150
    %p152 = pneg %p151
    // Predicated region
    $region9: #{head_forward.3} parent=5 // pred_check
      _
    $region10: #{head_forward.3} parent=5 // pred_check_branch
      %154 = sbr.rel (%p151) target = $region12
    $region11: #{head_forward.3} parent=5 // pred_region
      %s155 = ssub.s32 %s10, 1
      // Predicated region
      $region13: #{head_forward.3} parent=11 // pred_check
        %p156 = pneg %p71
      $region14: #{head_forward.3} parent=11 // pred_check_branch
        %158 = sbr.rel (%p156) target = $region16
      $region15: #{head_forward.3} parent=11 // pred_region
        _
      $region16: #{head_forward.3} parent=11 // pred_fallthru
        _
      // Predicated region
      $region17: #{head_forward.3} parent=11 // pred_check
        %p159 = pneg %p92
      $region18: #{head_forward.3} parent=11 // pred_check_branch
        %161 = sbr.rel (%p159) target = $region20
      $region19: #{head_forward.3} parent=11 // pred_region
        _
      $region20: #{head_forward.3} parent=11 // pred_fallthru
        _
      // Predicated region
      $region21: #{head_forward.3} parent=11 // pred_check
        %p162 = pneg %p113
      $region22: #{head_forward.3} parent=11 // pred_check_branch
        %164 = sbr.rel (%p162) target = $region24
      $region23: #{head_forward.3} parent=11 // pred_region
        _
      $region24: #{head_forward.3} parent=11 // pred_fallthru
        _
    $region12: #{head_forward.3} parent=5 // pred_fallthru
      _
    %p165 = scmp.lt.s32.totalorder %s10, 2
    // Predicated region
    $region25: #{head_forward.3} parent=5 // pred_check
      %p166 = pneg %p165
    $region26: #{head_forward.3} parent=5 // pred_check_branch
      %168 = sbr.rel (%p166) target = $region28
    $region27: #{head_forward.3} parent=5 // pred_region
      // Predicated region
      $region29: #{head_forward.3} parent=27 // pred_check
        %p169 = pneg %p44
      $region30: #{head_forward.3} parent=27 // pred_check_branch
        %171 = sbr.rel (%p169) target = $region32
      $region31: #{head_forward.3} parent=27 // pred_region
        %s172 = smul.u32 2, %s18
        %p173 = scmp.lt.s32.totalorder %s17, 1
        %s174 = scalar_select %p173, %s17, 1
        %p175 = scmp.lt.s32.totalorder %s172, 1
        %s176 = scalar_select %p175, %s172, 1
        %s177 = smul.addr %s174, 2
        %s178 = sadd.s32 %s176, %s177
        %s179 = smul.addr %s178, 8
        %s180 = scalar_lea.vmem %s0, %s179
        %s181 = smul.u32 2, %s18
      $region32: #{head_forward.3} parent=27 // pred_fallthru
        _
    $region28: #{head_forward.3} parent=5 // pred_fallthru
      _
    %p182 = scmp.le.s32.totalorder 1, %s10
    %p183 = scmp.lt.s32.totalorder %s10, 3
    %p184 = pnand %p182, %p183
    %p185 = pneg %p184
    // Predicated region
    $region33: #{head_forward.3} parent=5 // pred_check
      _
    $region34: #{head_forward.3} parent=5 // pred_check_branch
      %187 = sbr.rel (%p184) target = $region36
    $region35: #{head_forward.3} parent=5 // pred_region
      %s188 = ssub.s32 %s10, 1
      %s189 = smul.u32 2, %s20
      %p190 = scmp.lt.s32.totalorder %s19, 1
      %s191 = scalar_select %p190, %s19, 1
      %p192 = scmp.lt.s32.totalorder %s189, 1
      %s193 = scalar_select %p192, %s189, 1
      %s194 = smul.addr %s191, 2
      %s195 = sadd.s32 %s193, %s194
      %s196 = smul.addr %s195, 8
      %s197 = scalar_lea.vmem %s0, %s196
      %p198 = pneg %p50
      %p199 = pneg %p47
      %p200 = pneg %p71
      %p201 = pneg %p68
      %p202 = pneg %p92
      %p203 = pneg %p89
      %p204 = pneg %p113
      %p205 = pneg %p110
      %p206 = pneg %p141
      %p207 = pneg %p138
      %s208 = smul.u32 32, %s20
      %p209 = scmp.lt.s32.totalorder %s19, 1
      %s210 = scalar_select %p209, %s19, 1
      %p211 = scmp.lt.s32.totalorder %s208, 31
      %s212 = scalar_select %p211, %s208, 31
      %s213 = smul.addr %s210, 96
      %s214 = sadd.s32 %s212, %s213
      %s215 = smul.addr %s214, 8
      %s216 = scalar_lea.vmem %s4, %s215
      %s217 = smul.u32 2, %s20
      %p218 = scmp.lt.s32.totalorder %s19, 1
      %s219 = scalar_select %p218, %s19, 1
      %p220 = scmp.lt.s32.totalorder %s217, 1
      %s221 = scalar_select %p220, %s217, 1
      %s222 = smul.addr %s219, 2
      %s223 = sadd.s32 %s221, %s222
      %s224 = smul.addr %s223, 8
      %s225 = scalar_lea.vmem %s0, %s224
      %s226 = smul.u32 2, %s20
      %s227 = smul.u32 32, %s20
      %p228 = scmp.lt.s32.totalorder %s19, 1
      %s229 = scalar_select %p228, %s19, 1
      %p230 = scmp.lt.s32.totalorder %s227, 31
      %s231 = scalar_select %p230, %s227, 31
      %s232 = smul.addr %s229, 96
      %s233 = sadd.s32 %s231, %s232
      %s234 = smul.addr %s233, 8
      %s235 = scalar_lea.vmem %s4, %s234
      %s236 = smul.u32 32, %s20
      %v237 = vld [vmem:[%s225] sm:$0xff]
      %v238 = vld [vmem:[%s225 + $0x8] sm:$0xff]
      %v239 = vld [vmem:[%s1] sm:$0xff]
      %v240 = vld [vmem:[%s2] sm:$0x1]
      %v242 = vperm.slane %v240, 0
      %244 = vxpose.xlu0.b32.start [1/16] %v237, 128
      %245 = vxpose.xlu0.b32.cont [2/16] 0.0, 128
      %246 = vxpose.xlu0.b32.cont [3/16] 0.0, 128
      %247 = vxpose.xlu0.b32.cont [4/16] 0.0, 128
      %248 = vxpose.xlu0.b32.cont [5/16] 0.0, 128
      %249 = vxpose.xlu0.b32.cont [6/16] 0.0, 128
      %250 = vxpose.xlu0.b32.cont [7/16] 0.0, 128
      %251 = vxpose.xlu0.b32.cont [8/16] 0.0, 128
      %252 = vxpose.xlu0.b32.cont [9/16] 0.0, 128
      %253 = vxpose.xlu0.b32.cont [10/16] 0.0, 128
      %254 = vxpose.xlu0.b32.cont [11/16] 0.0, 128
      %255 = vxpose.xlu0.b32.cont [12/16] 0.0, 128
      %256 = vxpose.xlu0.b32.cont [13/16] 0.0, 128
      %257 = vxpose.xlu0.b32.cont [14/16] 0.0, 128
      %258 = vxpose.xlu0.b32.cont [15/16] 0.0, 128
      %259 = vxpose.xlu0.b32.end [16/16] 0.0, 128
      %v260 = vpop.trf.xlu0
      %v261 = vpop.trf.xlu0
      %v262 = vpop.trf.xlu0
      %v263 = vpop.trf.xlu0
      %v264 = vpop.trf.xlu0
      %v265 = vpop.trf.xlu0
      %v266 = vpop.trf.xlu0
      %v267 = vpop.trf.xlu0
      %v268 = vpop.trf.xlu0
      %v269 = vpop.trf.xlu0
      %v270 = vpop.trf.xlu0
      %v271 = vpop.trf.xlu0
      %v272 = vpop.trf.xlu0
      %v273 = vpop.trf.xlu0
      %v274 = vpop.trf.xlu0
      %v275 = vpop.trf.xlu0
      %276 = vxpose.xlu0.b32.start [1/16] %v238, 128
      %277 = vxpose.xlu0.b32.cont [2/16] 0.0, 128
      %278 = vxpose.xlu0.b32.cont [3/16] 0.0, 128
      %279 = vxpose.xlu0.b32.cont [4/16] 0.0, 128
      %280 = vxpose.xlu0.b32.cont [5/16] 0.0, 128
      %281 = vxpose.xlu0.b32.cont [6/16] 0.0, 128
      %282 = vxpose.xlu0.b32.cont [7/16] 0.0, 128
      %283 = vxpose.xlu0.b32.cont [8/16] 0.0, 128
      %284 = vxpose.xlu0.b32.cont [9/16] 0.0, 128
      %285 = vxpose.xlu0.b32.cont [10/16] 0.0, 128
      %286 = vxpose.xlu0.b32.cont [11/16] 0.0, 128
      %287 = vxpose.xlu0.b32.cont [12/16] 0.0, 128
      %288 = vxpose.xlu0.b32.cont [13/16] 0.0, 128
      %289 = vxpose.xlu0.b32.cont [14/16] 0.0, 128
      %290 = vxpose.xlu0.b32.cont [15/16] 0.0, 128
      %291 = vxpose.xlu0.b32.end [16/16] 0.0, 128
      %v292 = vpop.trf.xlu0
      %v293 = vpop.trf.xlu0
      %v294 = vpop.trf.xlu0
      %v295 = vpop.trf.xlu0
      %v296 = vpop.trf.xlu0
      %v297 = vpop.trf.xlu0
      %v298 = vpop.trf.xlu0
      %v299 = vpop.trf.xlu0
      %v300 = vpop.trf.xlu0
      %v301 = vpop.trf.xlu0
      %v302 = vpop.trf.xlu0
      %v303 = vpop.trf.xlu0
      %v304 = vpop.trf.xlu0
      %v305 = vpop.trf.xlu0
      %v306 = vpop.trf.xlu0
      %v307 = vpop.trf.xlu0
      %vm308 = vcmask 64512
      %v310 = vsel %vm308, %v260, 0
      %v313 = vsel %vm308, %v261, 0
      %v316 = vsel %vm308, %v262, 0
      %v319 = vsel %vm308, %v263, 0
      %v322 = vsel %vm308, %v264, 0
      %v325 = vsel %vm308, %v265, 0
      %v328 = vsel %vm308, %v266, 0
      %v331 = vsel %vm308, %v267, 0
      %v334 = vsel %vm308, %v268, 0
      %v337 = vsel %vm308, %v269, 0
      %v340 = vsel %vm308, %v270, 0
      %v343 = vsel %vm308, %v271, 0
      %v346 = vsel %vm308, %v272, 0
      %v349 = vsel %vm308, %v273, 0
      %v352 = vsel %vm308, %v274, 0
      %v355 = vsel %vm308, %v275, 0
      %v358 = vsel %vm308, %v292, 0
      %v361 = vsel %vm308, %v293, 0
      %v364 = vsel %vm308, %v294, 0
      %v367 = vsel %vm308, %v295, 0
      %v370 = vsel %vm308, %v296, 0
      %v373 = vsel %vm308, %v297, 0
      %v376 = vsel %vm308, %v298, 0
      %v379 = vsel %vm308, %v299, 0
      %v382 = vsel %vm308, %v300, 0
      %v385 = vsel %vm308, %v301, 0
      %v388 = vsel %vm308, %v302, 0
      %v391 = vsel %vm308, %v303, 0
      %v394 = vsel %vm308, %v304, 0
      %v397 = vsel %vm308, %v305, 0
      %v400 = vsel %vm308, %v306, 0
      %v403 = vsel %vm308, %v307, 0
      %405 = vmatpush.msra.mxu0 0.0
      %406 = vmatpush.msra.mxu0 0.0
      %407 = vmatpush.msra.mxu0 0.0
      %408 = vmatpush.msra.mxu0 0.0
      %409 = vmatpush.msra.mxu0 0.0
      %410 = vmatpush.msra.mxu0 0.0
      %411 = vmatpush.msra.mxu0 0.0
      %412 = vmatpush.msra.mxu0 0.0
      %413 = vmatpush.msra.mxu0 0.0
      %414 = vmatpush.msra.mxu0 0.0
      %415 = vmatpush.msra.mxu0 0.0
      %416 = vmatpush.msra.mxu0 0.0
      %417 = vmatpush.msra.mxu0 0.0
      %418 = vmatpush.msra.mxu0 0.0
      %419 = vmatpush.msra.mxu0 0.0
      %420 = vmatpush.msra.mxu0 %v239
      %421 = vmatmul.f32.gmra.mxu0 %v310
      %v422 = vpop.f32.mrf.mxu0
      %v423 = vadd.f32 %v242, %v422
      %424 = vmatmul.f32.gmra.mxu0 %v313
      %v425 = vpop.f32.mrf.mxu0
      %v426 = vadd.f32 %v242, %v425
      %427 = vmatmul.f32.gmra.mxu0 %v316
      %v428 = vpop.f32.mrf.mxu0
      %v429 = vadd.f32 %v242, %v428
      %430 = vmatmul.f32.gmra.mxu0 %v319
      %v431 = vpop.f32.mrf.mxu0
      %v432 = vadd.f32 %v242, %v431
      %433 = vmatmul.f32.gmra.mxu0 %v322
      %v434 = vpop.f32.mrf.mxu0
      %v435 = vadd.f32 %v242, %v434
      %436 = vmatmul.f32.gmra.mxu0 %v325
      %v437 = vpop.f32.mrf.mxu0
      %v438 = vadd.f32 %v242, %v437
      %439 = vmatmul.f32.gmra.mxu0 %v328
      %v440 = vpop.f32.mrf.mxu0
      %v441 = vadd.f32 %v242, %v440
      %442 = vmatmul.f32.gmra.mxu0 %v331
      %v443 = vpop.f32.mrf.mxu0
      %v444 = vadd.f32 %v242, %v443
      %445 = vmatmul.f32.gmra.mxu0 %v334
      %v446 = vpop.f32.mrf.mxu0
      %v447 = vadd.f32 %v242, %v446
      %448 = vmatmul.f32.gmra.mxu0 %v337
      %v449 = vpop.f32.mrf.mxu0
      %v450 = vadd.f32 %v242, %v449
      %451 = vmatmul.f32.gmra.mxu0 %v340
      %v452 = vpop.f32.mrf.mxu0
      %v453 = vadd.f32 %v242, %v452
      %454 = vmatmul.f32.gmra.mxu0 %v343
      %v455 = vpop.f32.mrf.mxu0
      %v456 = vadd.f32 %v242, %v455
      %457 = vmatmul.f32.gmra.mxu0 %v346
      %v458 = vpop.f32.mrf.mxu0
      %v459 = vadd.f32 %v242, %v458
      %460 = vmatmul.f32.gmra.mxu0 %v349
      %v461 = vpop.f32.mrf.mxu0
      %v462 = vadd.f32 %v242, %v461
      %463 = vmatmul.f32.gmra.mxu0 %v352
      %v464 = vpop.f32.mrf.mxu0
      %v465 = vadd.f32 %v242, %v464
      %466 = vmatmul.f32.gmra.mxu0 %v355
      %v467 = vpop.f32.mrf.mxu0
      %v468 = vadd.f32 %v242, %v467
      %469 = vmatmul.f32.gmra.mxu0 %v358
      %v470 = vpop.f32.mrf.mxu0
      %v471 = vadd.f32 %v242, %v470
      %472 = vmatmul.f32.gmra.mxu0 %v361
      %v473 = vpop.f32.mrf.mxu0
      %v474 = vadd.f32 %v242, %v473
      %475 = vmatmul.f32.gmra.mxu0 %v364
      %v476 = vpop.f32.mrf.mxu0
      %v477 = vadd.f32 %v242, %v476
      %478 = vmatmul.f32.gmra.mxu0 %v367
      %v479 = vpop.f32.mrf.mxu0
      %v480 = vadd.f32 %v242, %v479
      %481 = vmatmul.f32.gmra.mxu0 %v370
      %v482 = vpop.f32.mrf.mxu0
      %v483 = vadd.f32 %v242, %v482
      %484 = vmatmul.f32.gmra.mxu0 %v373
      %v485 = vpop.f32.mrf.mxu0
      %v486 = vadd.f32 %v242, %v485
      %487 = vmatmul.f32.gmra.mxu0 %v376
      %v488 = vpop.f32.mrf.mxu0
      %v489 = vadd.f32 %v242, %v488
      %490 = vmatmul.f32.gmra.mxu0 %v379
      %v491 = vpop.f32.mrf.mxu0
      %v492 = vadd.f32 %v242, %v491
      %493 = vmatmul.f32.gmra.mxu0 %v382
      %v494 = vpop.f32.mrf.mxu0
      %v495 = vadd.f32 %v242, %v494
      %496 = vmatmul.f32.gmra.mxu0 %v385
      %v497 = vpop.f32.mrf.mxu0
      %v498 = vadd.f32 %v242, %v497
      %499 = vmatmul.f32.gmra.mxu0 %v388
      %v500 = vpop.f32.mrf.mxu0
      %v501 = vadd.f32 %v242, %v500
      %502 = vmatmul.f32.gmra.mxu0 %v391
      %v503 = vpop.f32.mrf.mxu0
      %v504 = vadd.f32 %v242, %v503
      %505 = vmatmul.f32.gmra.mxu0 %v394
      %v506 = vpop.f32.mrf.mxu0
      %v507 = vadd.f32 %v242, %v506
      %508 = vmatmul.f32.gmra.mxu0 %v397
      %v509 = vpop.f32.mrf.mxu0
      %v510 = vadd.f32 %v242, %v509
      %511 = vmatmul.f32.gmra.mxu0 %v400
      %v512 = vpop.f32.mrf.mxu0
      %v513 = vadd.f32 %v242, %v512
      %514 = vmatmul.f32.gmra.mxu0 %v403
      %v515 = vpop.f32.mrf.mxu0
      %v516 = vadd.f32 %v242, %v515
      %517 = vdwg.mxu0
      %518 = vst.msk [vmem:[%s235] sm:$0xff] %vm308, %v423
      %519 = vst.msk [vmem:[%s235 + $0x8] sm:$0xff] %vm308, %v426
      %520 = vst.msk [vmem:[%s235 + $0x10] sm:$0xff] %vm308, %v429
      %521 = vst.msk [vmem:[%s235 + $0x18] sm:$0xff] %vm308, %v432
      %522 = vst.msk [vmem:[%s235 + $0x20] sm:$0xff] %vm308, %v435
      %523 = vst.msk [vmem:[%s235 + $0x28] sm:$0xff] %vm308, %v438
      %524 = vst.msk [vmem:[%s235 + $0x30] sm:$0xff] %vm308, %v441
      %525 = vst.msk [vmem:[%s235 + $0x38] sm:$0xff] %vm308, %v444
      %526 = vst.msk [vmem:[%s235 + $0x40] sm:$0xff] %vm308, %v447
      %527 = vst.msk [vmem:[%s235 + $0x48] sm:$0xff] %vm308, %v450
      %528 = vst.msk [vmem:[%s235 + $0x50] sm:$0xff] %vm308, %v453
      %529 = vst.msk [vmem:[%s235 + $0x58] sm:$0xff] %vm308, %v456
      %530 = vst.msk [vmem:[%s235 + $0x60] sm:$0xff] %vm308, %v459
      %531 = vst.msk [vmem:[%s235 + $0x68] sm:$0xff] %vm308, %v462
      %532 = vst.msk [vmem:[%s235 + $0x70] sm:$0xff] %vm308, %v465
      %533 = vst.msk [vmem:[%s235 + $0x78] sm:$0xff] %vm308, %v468
      %534 = vst.msk [vmem:[%s235 + $0x80] sm:$0xff] %vm308, %v471
      %535 = vst.msk [vmem:[%s235 + $0x88] sm:$0xff] %vm308, %v474
      %536 = vst.msk [vmem:[%s235 + $0x90] sm:$0xff] %vm308, %v477
      %537 = vst.msk [vmem:[%s235 + $0x98] sm:$0xff] %vm308, %v480
      %538 = vst.msk [vmem:[%s235 + $0xa0] sm:$0xff] %vm308, %v483
      %539 = vst.msk [vmem:[%s235 + $0xa8] sm:$0xff] %vm308, %v486
      %540 = vst.msk [vmem:[%s235 + $0xb0] sm:$0xff] %vm308, %v489
      %541 = vst.msk [vmem:[%s235 + $0xb8] sm:$0xff] %vm308, %v492
      %542 = vst.msk [vmem:[%s235 + $0xc0] sm:$0xff] %vm308, %v495
      %543 = vst.msk [vmem:[%s235 + $0xc8] sm:$0xff] %vm308, %v498
      %544 = vst.msk [vmem:[%s235 + $0xd0] sm:$0xff] %vm308, %v501
      %545 = vst.msk [vmem:[%s235 + $0xd8] sm:$0xff] %vm308, %v504
      %546 = vst.msk [vmem:[%s235 + $0xe0] sm:$0xff] %vm308, %v507
      %547 = vst.msk [vmem:[%s235 + $0xe8] sm:$0xff] %vm308, %v510
      %548 = vst.msk [vmem:[%s235 + $0xf0] sm:$0xff] %vm308, %v513
      %549 = vst.msk [vmem:[%s235 + $0xf8] sm:$0xff] %vm308, %v516
      %v550 = vxor.u32 %v423, 2147483648
      %v551 = vxor.u32 %v426, 2147483648
      %v552 = vxor.u32 %v429, 2147483648
      %v553 = vxor.u32 %v432, 2147483648
      %v554 = vxor.u32 %v435, 2147483648
      %v555 = vxor.u32 %v438, 2147483648
      %v556 = vxor.u32 %v441, 2147483648
      %v557 = vxor.u32 %v444, 2147483648
      %v558 = vxor.u32 %v447, 2147483648
      %v559 = vxor.u32 %v450, 2147483648
      %v560 = vxor.u32 %v453, 2147483648
      %v561 = vxor.u32 %v456, 2147483648
      %v562 = vxor.u32 %v459, 2147483648
      %v563 = vxor.u32 %v462, 2147483648
      %v564 = vxor.u32 %v465, 2147483648
      %v565 = vxor.u32 %v468, 2147483648
      %v566 = vxor.u32 %v471, 2147483648
      %v567 = vxor.u32 %v474, 2147483648
      %v568 = vxor.u32 %v477, 2147483648
      %v569 = vxor.u32 %v480, 2147483648
      %v570 = vxor.u32 %v483, 2147483648
      %v571 = vxor.u32 %v486, 2147483648
      %v572 = vxor.u32 %v489, 2147483648
      %v573 = vxor.u32 %v492, 2147483648
      %v574 = vxor.u32 %v495, 2147483648
      %v575 = vxor.u32 %v498, 2147483648
      %v576 = vxor.u32 %v501, 2147483648
      %v577 = vxor.u32 %v504, 2147483648
      %v578 = vxor.u32 %v507, 2147483648
      %v579 = vxor.u32 %v510, 2147483648
      %v580 = vxor.u32 %v513, 2147483648
      %v581 = vxor.u32 %v516, 2147483648
      %v582 = vmul.f32 %v550, 1.442695
      %v583 = vpow.pop %v582
      %v584 = vmul.f32 %v551, 1.442695
      %v585 = vpow.pop %v584
      %v586 = vmul.f32 %v552, 1.442695
      %v587 = vpow.pop %v586
      %v588 = vmul.f32 %v553, 1.442695
      %v589 = vpow.pop %v588
      %v590 = vmul.f32 %v554, 1.442695
      %v591 = vpow.pop %v590
      %v592 = vmul.f32 %v555, 1.442695
      %v593 = vpow.pop %v592
      %v594 = vmul.f32 %v556, 1.442695
      %v595 = vpow.pop %v594
      %v596 = vmul.f32 %v557, 1.442695
      %v597 = vpow.pop %v596
      %v598 = vmul.f32 %v558, 1.442695
      %v599 = vpow.pop %v598
      %v600 = vmul.f32 %v559, 1.442695
      %v601 = vpow.pop %v600
      %v602 = vmul.f32 %v560, 1.442695
      %v603 = vpow.pop %v602
      %v604 = vmul.f32 %v561, 1.442695
      %v605 = vpow.pop %v604
      %v606 = vmul.f32 %v562, 1.442695
      %v607 = vpow.pop %v606
      %v608 = vmul.f32 %v563, 1.442695
      %v609 = vpow.pop %v608
      %v610 = vmul.f32 %v564, 1.442695
      %v611 = vpow.pop %v610
      %v612 = vmul.f32 %v565, 1.442695
      %v613 = vpow.pop %v612
      %v614 = vmul.f32 %v566, 1.442695
      %v615 = vpow.pop %v614
      %v616 = vmul.f32 %v567, 1.442695
      %v617 = vpow.pop %v616
      %v618 = vmul.f32 %v568, 1.442695
      %v619 = vpow.pop %v618
      %v620 = vmul.f32 %v569, 1.442695
      %v621 = vpow.pop %v620
      %v622 = vmul.f32 %v570, 1.442695
      %v623 = vpow.pop %v622
      %v624 = vmul.f32 %v571, 1.442695
      %v625 = vpow.pop %v624
      %v626 = vmul.f32 %v572, 1.442695
      %v627 = vpow.pop %v626
      %v628 = vmul.f32 %v573, 1.442695
      %v629 = vpow.pop %v628
      %v630 = vmul.f32 %v574, 1.442695
      %v631 = vpow.pop %v630
      %v632 = vmul.f32 %v575, 1.442695
      %v633 = vpow.pop %v632
      %v634 = vmul.f32 %v576, 1.442695
      %v635 = vpow.pop %v634
      %v636 = vmul.f32 %v577, 1.442695
      %v637 = vpow.pop %v636
      %v638 = vmul.f32 %v578, 1.442695
      %v639 = vpow.pop %v638
      %v640 = vmul.f32 %v579, 1.442695
      %v641 = vpow.pop %v640
      %v642 = vmul.f32 %v580, 1.442695
      %v643 = vpow.pop %v642
      %v644 = vmul.f32 %v581, 1.442695
      %v645 = vpow.pop %v644
      %v646 = vadd.f32 %v583, 1.0
      %v647 = vadd.f32 %v585, 1.0
      %v648 = vadd.f32 %v587, 1.0
      %v649 = vadd.f32 %v589, 1.0
      %v650 = vadd.f32 %v591, 1.0
      %v651 = vadd.f32 %v593, 1.0
      %v652 = vadd.f32 %v595, 1.0
      %v653 = vadd.f32 %v597, 1.0
      %v654 = vadd.f32 %v599, 1.0
      %v655 = vadd.f32 %v601, 1.0
      %v656 = vadd.f32 %v603, 1.0
      %v657 = vadd.f32 %v605, 1.0
      %v658 = vadd.f32 %v607, 1.0
      %v659 = vadd.f32 %v609, 1.0
      %v660 = vadd.f32 %v611, 1.0
      %v661 = vadd.f32 %v613, 1.0
      %v662 = vadd.f32 %v615, 1.0
      %v663 = vadd.f32 %v617, 1.0
      %v664 = vadd.f32 %v619, 1.0
      %v665 = vadd.f32 %v621, 1.0
      %v666 = vadd.f32 %v623, 1.0
      %v667 = vadd.f32 %v625, 1.0
      %v668 = vadd.f32 %v627, 1.0
      %v669 = vadd.f32 %v629, 1.0
      %v670 = vadd.f32 %v631, 1.0
      %v671 = vadd.f32 %v633, 1.0
      %v672 = vadd.f32 %v635, 1.0
      %v673 = vadd.f32 %v637, 1.0
      %v674 = vadd.f32 %v639, 1.0
      %v675 = vadd.f32 %v641, 1.0
      %v676 = vadd.f32 %v643, 1.0
      %v677 = vadd.f32 %v645, 1.0
      %v678 = vrcp.pop %v646
      %v679 = vmul.f32 %v646, %v678
      %v680 = vsub.f32 1.0, %v679
      %v681 = vmul.f32 %v678, %v680
      %v682 = vadd.f32 %v678, %v681
      %vm683 = vweird.f32 %v646
      %vm684 = vweird.f32 %v678
      %vm685 = vmor %vm683, %vm684
      %v686 = vsel %vm685, %v678, %v682
      %v687 = vand.u32 2147483647, %v646
      %vm688 = vcmp.eq.f32.partialorder %v687, 8.507059e+37
      %v689 = vand.u32 %v646, 2147483648
      %v690 = vor.u32 1.1754944e-38, %v689
      %v691 = vsel %vm688, %v690, %v686
      %v692 = vmul.f32 1.0, %v691
      %v693 = vrcp.pop %v647
      %v694 = vmul.f32 %v647, %v693
      %v695 = vsub.f32 1.0, %v694
      %v696 = vmul.f32 %v693, %v695
      %v697 = vadd.f32 %v693, %v696
      %vm698 = vweird.f32 %v647
      %vm699 = vweird.f32 %v693
      %vm700 = vmor %vm698, %vm699
      %v701 = vsel %vm700, %v693, %v697
      %v702 = vand.u32 2147483647, %v647
      %vm703 = vcmp.eq.f32.partialorder %v702, 8.507059e+37
      %v704 = vand.u32 %v647, 2147483648
      %v705 = vor.u32 1.1754944e-38, %v704
      %v706 = vsel %vm703, %v705, %v701
      %v707 = vmul.f32 1.0, %v706
      %v708 = vrcp.pop %v648
      %v709 = vmul.f32 %v648, %v708
      %v710 = vsub.f32 1.0, %v709
      %v711 = vmul.f32 %v708, %v710
      %v712 = vadd.f32 %v708, %v711
      %vm713 = vweird.f32 %v648
      %vm714 = vweird.f32 %v708
      %vm715 = vmor %vm713, %vm714
      %v716 = vsel %vm715, %v708, %v712
      %v717 = vand.u32 2147483647, %v648
      %vm718 = vcmp.eq.f32.partialorder %v717, 8.507059e+37
      %v719 = vand.u32 %v648, 2147483648
      %v720 = vor.u32 1.1754944e-38, %v719
      %v721 = vsel %vm718, %v720, %v716
      %v722 = vmul.f32 1.0, %v721
      %v723 = vrcp.pop %v649
      %v724 = vmul.f32 %v649, %v723
      %v725 = vsub.f32 1.0, %v724
      %v726 = vmul.f32 %v723, %v725
      %v727 = vadd.f32 %v723, %v726
      %vm728 = vweird.f32 %v649
      %vm729 = vweird.f32 %v723
      %vm730 = vmor %vm728, %vm729
      %v731 = vsel %vm730, %v723, %v727
      %v732 = vand.u32 2147483647, %v649
      %vm733 = vcmp.eq.f32.partialorder %v732, 8.507059e+37
      %v734 = vand.u32 %v649, 2147483648
      %v735 = vor.u32 1.1754944e-38, %v734
      %v736 = vsel %vm733, %v735, %v731
      %v737 = vmul.f32 1.0, %v736
      %v738 = vrcp.pop %v650
      %v739 = vmul.f32 %v650, %v738
      %v740 = vsub.f32 1.0, %v739
      %v741 = vmul.f32 %v738, %v740
      %v742 = vadd.f32 %v738, %v741
      %vm743 = vweird.f32 %v650
      %vm744 = vweird.f32 %v738
      %vm745 = vmor %vm743, %vm744
      %v746 = vsel %vm745, %v738, %v742
      %v747 = vand.u32 2147483647, %v650
      %vm748 = vcmp.eq.f32.partialorder %v747, 8.507059e+37
      %v749 = vand.u32 %v650, 2147483648
      %v750 = vor.u32 1.1754944e-38, %v749
      %v751 = vsel %vm748, %v750, %v746
      %v752 = vmul.f32 1.0, %v751
      %v753 = vrcp.pop %v651
      %v754 = vmul.f32 %v651, %v753
      %v755 = vsub.f32 1.0, %v754
      %v756 = vmul.f32 %v753, %v755
      %v757 = vadd.f32 %v753, %v756
      %vm758 = vweird.f32 %v651
      %vm759 = vweird.f32 %v753
      %vm760 = vmor %vm758, %vm759
      %v761 = vsel %vm760, %v753, %v757
      %v762 = vand.u32 2147483647, %v651
      %vm763 = vcmp.eq.f32.partialorder %v762, 8.507059e+37
      %v764 = vand.u32 %v651, 2147483648
      %v765 = vor.u32 1.1754944e-38, %v764
      %v766 = vsel %vm763, %v765, %v761
      %v767 = vmul.f32 1.0, %v766
      %v768 = vrcp.pop %v652
      %v769 = vmul.f32 %v652, %v768
      %v770 = vsub.f32 1.0, %v769
      %v771 = vmul.f32 %v768, %v770
      %v772 = vadd.f32 %v768, %v771
      %vm773 = vweird.f32 %v652
      %vm774 = vweird.f32 %v768
      %vm775 = vmor %vm773, %vm774
      %v776 = vsel %vm775, %v768, %v772
      %v777 = vand.u32 2147483647, %v652
      %vm778 = vcmp.eq.f32.partialorder %v777, 8.507059e+37
      %v779 = vand.u32 %v652, 2147483648
      %v780 = vor.u32 1.1754944e-38, %v779
      %v781 = vsel %vm778, %v780, %v776
      %v782 = vmul.f32 1.0, %v781
      %v783 = vrcp.pop %v653
      %v784 = vmul.f32 %v653, %v783
      %v785 = vsub.f32 1.0, %v784
      %v786 = vmul.f32 %v783, %v785
      %v787 = vadd.f32 %v783, %v786
      %vm788 = vweird.f32 %v653
      %vm789 = vweird.f32 %v783
      %vm790 = vmor %vm788, %vm789
      %v791 = vsel %vm790, %v783, %v787
      %v792 = vand.u32 2147483647, %v653
      %vm793 = vcmp.eq.f32.partialorder %v792, 8.507059e+37
      %v794 = vand.u32 %v653, 2147483648
      %v795 = vor.u32 1.1754944e-38, %v794
      %v796 = vsel %vm793, %v795, %v791
      %v797 = vmul.f32 1.0, %v796
      %v798 = vrcp.pop %v654
      %v799 = vmul.f32 %v654, %v798
      %v800 = vsub.f32 1.0, %v799
      %v801 = vmul.f32 %v798, %v800
      %v802 = vadd.f32 %v798, %v801
      %vm803 = vweird.f32 %v654
      %vm804 = vweird.f32 %v798
      %vm805 = vmor %vm803, %vm804
      %v806 = vsel %vm805, %v798, %v802
      %v807 = vand.u32 2147483647, %v654
      %vm808 = vcmp.eq.f32.partialorder %v807, 8.507059e+37
      %v809 = vand.u32 %v654, 2147483648
      %v810 = vor.u32 1.1754944e-38, %v809
      %v811 = vsel %vm808, %v810, %v806
      %v812 = vmul.f32 1.0, %v811
      %v813 = vrcp.pop %v655
      %v814 = vmul.f32 %v655, %v813
      %v815 = vsub.f32 1.0, %v814
      %v816 = vmul.f32 %v813, %v815
      %v817 = vadd.f32 %v813, %v816
      %vm818 = vweird.f32 %v655
      %vm819 = vweird.f32 %v813
      %vm820 = vmor %vm818, %vm819
      %v821 = vsel %vm820, %v813, %v817
      %v822 = vand.u32 2147483647, %v655
      %vm823 = vcmp.eq.f32.partialorder %v822, 8.507059e+37
      %v824 = vand.u32 %v655, 2147483648
      %v825 = vor.u32 1.1754944e-38, %v824
      %v826 = vsel %vm823, %v825, %v821
      %v827 = vmul.f32 1.0, %v826
      %v828 = vrcp.pop %v656
      %v829 = vmul.f32 %v656, %v828
      %v830 = vsub.f32 1.0, %v829
      %v831 = vmul.f32 %v828, %v830
      %v832 = vadd.f32 %v828, %v831
      %vm833 = vweird.f32 %v656
      %vm834 = vweird.f32 %v828
      %vm835 = vmor %vm833, %vm834
      %v836 = vsel %vm835, %v828, %v832
      %v837 = vand.u32 2147483647, %v656
      %vm838 = vcmp.eq.f32.partialorder %v837, 8.507059e+37
      %v839 = vand.u32 %v656, 2147483648
      %v840 = vor.u32 1.1754944e-38, %v839
      %v841 = vsel %vm838, %v840, %v836
      %v842 = vmul.f32 1.0, %v841
      %v843 = vrcp.pop %v657
      %v844 = vmul.f32 %v657, %v843
      %v845 = vsub.f32 1.0, %v844
      %v846 = vmul.f32 %v843, %v845
      %v847 = vadd.f32 %v843, %v846
      %vm848 = vweird.f32 %v657
      %vm849 = vweird.f32 %v843
      %vm850 = vmor %vm848, %vm849
      %v851 = vsel %vm850, %v843, %v847
      %v852 = vand.u32 2147483647, %v657
      %vm853 = vcmp.eq.f32.partialorder %v852, 8.507059e+37
      %v854 = vand.u32 %v657, 2147483648
      %v855 = vor.u32 1.1754944e-38, %v854
      %v856 = vsel %vm853, %v855, %v851
      %v857 = vmul.f32 1.0, %v856
      %v858 = vrcp.pop %v658
      %v859 = vmul.f32 %v658, %v858
      %v860 = vsub.f32 1.0, %v859
      %v861 = vmul.f32 %v858, %v860
      %v862 = vadd.f32 %v858, %v861
      %vm863 = vweird.f32 %v658
      %vm864 = vweird.f32 %v858
      %vm865 = vmor %vm863, %vm864
      %v866 = vsel %vm865, %v858, %v862
      %v867 = vand.u32 2147483647, %v658
      %vm868 = vcmp.eq.f32.partialorder %v867, 8.507059e+37
      %v869 = vand.u32 %v658, 2147483648
      %v870 = vor.u32 1.1754944e-38, %v869
      %v871 = vsel %vm868, %v870, %v866
      %v872 = vmul.f32 1.0, %v871
      %v873 = vrcp.pop %v659
      %v874 = vmul.f32 %v659, %v873
      %v875 = vsub.f32 1.0, %v874
      %v876 = vmul.f32 %v873, %v875
      %v877 = vadd.f32 %v873, %v876
      %vm878 = vweird.f32 %v659
      %vm879 = vweird.f32 %v873
      %vm880 = vmor %vm878, %vm879
      %v881 = vsel %vm880, %v873, %v877
      %v882 = vand.u32 2147483647, %v659
      %vm883 = vcmp.eq.f32.partialorder %v882, 8.507059e+37
      %v884 = vand.u32 %v659, 2147483648
      %v885 = vor.u32 1.1754944e-38, %v884
      %v886 = vsel %vm883, %v885, %v881
      %v887 = vmul.f32 1.0, %v886
      %v888 = vrcp.pop %v660
      %v889 = vmul.f32 %v660, %v888
      %v890 = vsub.f32 1.0, %v889
      %v891 = vmul.f32 %v888, %v890
      %v892 = vadd.f32 %v888, %v891
      %vm893 = vweird.f32 %v660
      %vm894 = vweird.f32 %v888
      %vm895 = vmor %vm893, %vm894
      %v896 = vsel %vm895, %v888, %v892
      %v897 = vand.u32 2147483647, %v660
      %vm898 = vcmp.eq.f32.partialorder %v897, 8.507059e+37
      %v899 = vand.u32 %v660, 2147483648
      %v900 = vor.u32 1.1754944e-38, %v899
      %v901 = vsel %vm898, %v900, %v896
      %v902 = vmul.f32 1.0, %v901
      %v903 = vrcp.pop %v661
      %v904 = vmul.f32 %v661, %v903
      %v905 = vsub.f32 1.0, %v904
      %v906 = vmul.f32 %v903, %v905
      %v907 = vadd.f32 %v903, %v906
      %vm908 = vweird.f32 %v661
      %vm909 = vweird.f32 %v903
      %vm910 = vmor %vm908, %vm909
      %v911 = vsel %vm910, %v903, %v907
      %v912 = vand.u32 2147483647, %v661
      %vm913 = vcmp.eq.f32.partialorder %v912, 8.507059e+37
      %v914 = vand.u32 %v661, 2147483648
      %v915 = vor.u32 1.1754944e-38, %v914
      %v916 = vsel %vm913, %v915, %v911
      %v917 = vmul.f32 1.0, %v916
      %v918 = vrcp.pop %v662
      %v919 = vmul.f32 %v662, %v918
      %v920 = vsub.f32 1.0, %v919
      %v921 = vmul.f32 %v918, %v920
      %v922 = vadd.f32 %v918, %v921
      %vm923 = vweird.f32 %v662
      %vm924 = vweird.f32 %v918
      %vm925 = vmor %vm923, %vm924
      %v926 = vsel %vm925, %v918, %v922
      %v927 = vand.u32 2147483647, %v662
      %vm928 = vcmp.eq.f32.partialorder %v927, 8.507059e+37
      %v929 = vand.u32 %v662, 2147483648
      %v930 = vor.u32 1.1754944e-38, %v929
      %v931 = vsel %vm928, %v930, %v926
      %v932 = vmul.f32 1.0, %v931
      %v933 = vrcp.pop %v663
      %v934 = vmul.f32 %v663, %v933
      %v935 = vsub.f32 1.0, %v934
      %v936 = vmul.f32 %v933, %v935
      %v937 = vadd.f32 %v933, %v936
      %vm938 = vweird.f32 %v663
      %vm939 = vweird.f32 %v933
      %vm940 = vmor %vm938, %vm939
      %v941 = vsel %vm940, %v933, %v937
      %v942 = vand.u32 2147483647, %v663
      %vm943 = vcmp.eq.f32.partialorder %v942, 8.507059e+37
      %v944 = vand.u32 %v663, 2147483648
      %v945 = vor.u32 1.1754944e-38, %v944
      %v946 = vsel %vm943, %v945, %v941
      %v947 = vmul.f32 1.0, %v946
      %v948 = vrcp.pop %v664
      %v949 = vmul.f32 %v664, %v948
      %v950 = vsub.f32 1.0, %v949
      %v951 = vmul.f32 %v948, %v950
      %v952 = vadd.f32 %v948, %v951
      %vm953 = vweird.f32 %v664
      %vm954 = vweird.f32 %v948
      %vm955 = vmor %vm953, %vm954
      %v956 = vsel %vm955, %v948, %v952
      %v957 = vand.u32 2147483647, %v664
      %vm958 = vcmp.eq.f32.partialorder %v957, 8.507059e+37
      %v959 = vand.u32 %v664, 2147483648
      %v960 = vor.u32 1.1754944e-38, %v959
      %v961 = vsel %vm958, %v960, %v956
      %v962 = vmul.f32 1.0, %v961
      %v963 = vrcp.pop %v665
      %v964 = vmul.f32 %v665, %v963
      %v965 = vsub.f32 1.0, %v964
      %v966 = vmul.f32 %v963, %v965
      %v967 = vadd.f32 %v963, %v966
      %vm968 = vweird.f32 %v665
      %vm969 = vweird.f32 %v963
      %vm970 = vmor %vm968, %vm969
      %v971 = vsel %vm970, %v963, %v967
      %v972 = vand.u32 2147483647, %v665
      %vm973 = vcmp.eq.f32.partialorder %v972, 8.507059e+37
      %v974 = vand.u32 %v665, 2147483648
      %v975 = vor.u32 1.1754944e-38, %v974
      %v976 = vsel %vm973, %v975, %v971
      %v977 = vmul.f32 1.0, %v976
      %v978 = vrcp.pop %v666
      %v979 = vmul.f32 %v666, %v978
      %v980 = vsub.f32 1.0, %v979
      %v981 = vmul.f32 %v978, %v980
      %v982 = vadd.f32 %v978, %v981
      %vm983 = vweird.f32 %v666
      %vm984 = vweird.f32 %v978
      %vm985 = vmor %vm983, %vm984
      %v986 = vsel %vm985, %v978, %v982
      %v987 = vand.u32 2147483647, %v666
      %vm988 = vcmp.eq.f32.partialorder %v987, 8.507059e+37
      %v989 = vand.u32 %v666, 2147483648
      %v990 = vor.u32 1.1754944e-38, %v989
      %v991 = vsel %vm988, %v990, %v986
      %v992 = vmul.f32 1.0, %v991
      %v993 = vrcp.pop %v667
      %v994 = vmul.f32 %v667, %v993
      %v995 = vsub.f32 1.0, %v994
      %v996 = vmul.f32 %v993, %v995
      %v997 = vadd.f32 %v993, %v996
      %vm998 = vweird.f32 %v667
      %vm999 = vweird.f32 %v993
      %vm1000 = vmor %vm998, %vm999
      %v1001 = vsel %vm1000, %v993, %v997
      %v1002 = vand.u32 2147483647, %v667
      %vm1003 = vcmp.eq.f32.partialorder %v1002, 8.507059e+37
      %v1004 = vand.u32 %v667, 2147483648
      %v1005 = vor.u32 1.1754944e-38, %v1004
      %v1006 = vsel %vm1003, %v1005, %v1001
      %v1007 = vmul.f32 1.0, %v1006
      %v1008 = vrcp.pop %v668
      %v1009 = vmul.f32 %v668, %v1008
      %v1010 = vsub.f32 1.0, %v1009
      %v1011 = vmul.f32 %v1008, %v1010
      %v1012 = vadd.f32 %v1008, %v1011
      %vm1013 = vweird.f32 %v668
      %vm1014 = vweird.f32 %v1008
      %vm1015 = vmor %vm1013, %vm1014
      %v1016 = vsel %vm1015, %v1008, %v1012
      %v1017 = vand.u32 2147483647, %v668
      %vm1018 = vcmp.eq.f32.partialorder %v1017, 8.507059e+37
      %v1019 = vand.u32 %v668, 2147483648
      %v1020 = vor.u32 1.1754944e-38, %v1019
      %v1021 = vsel %vm1018, %v1020, %v1016
      %v1022 = vmul.f32 1.0, %v1021
      %v1023 = vrcp.pop %v669
      %v1024 = vmul.f32 %v669, %v1023
      %v1025 = vsub.f32 1.0, %v1024
      %v1026 = vmul.f32 %v1023, %v1025
      %v1027 = vadd.f32 %v1023, %v1026
      %vm1028 = vweird.f32 %v669
      %vm1029 = vweird.f32 %v1023
      %vm1030 = vmor %vm1028, %vm1029
      %v1031 = vsel %vm1030, %v1023, %v1027
      %v1032 = vand.u32 2147483647, %v669
      %vm1033 = vcmp.eq.f32.partialorder %v1032, 8.507059e+37
      %v1034 = vand.u32 %v669, 2147483648
      %v1035 = vor.u32 1.1754944e-38, %v1034
      %v1036 = vsel %vm1033, %v1035, %v1031
      %v1037 = vmul.f32 1.0, %v1036
      %v1038 = vrcp.pop %v670
      %v1039 = vmul.f32 %v670, %v1038
      %v1040 = vsub.f32 1.0, %v1039
      %v1041 = vmul.f32 %v1038, %v1040
      %v1042 = vadd.f32 %v1038, %v1041
      %vm1043 = vweird.f32 %v670
      %vm1044 = vweird.f32 %v1038
      %vm1045 = vmor %vm1043, %vm1044
      %v1046 = vsel %vm1045, %v1038, %v1042
      %v1047 = vand.u32 2147483647, %v670
      %vm1048 = vcmp.eq.f32.partialorder %v1047, 8.507059e+37
      %v1049 = vand.u32 %v670, 2147483648
      %v1050 = vor.u32 1.1754944e-38, %v1049
      %v1051 = vsel %vm1048, %v1050, %v1046
      %v1052 = vmul.f32 1.0, %v1051
      %v1053 = vrcp.pop %v671
      %v1054 = vmul.f32 %v671, %v1053
      %v1055 = vsub.f32 1.0, %v1054
      %v1056 = vmul.f32 %v1053, %v1055
      %v1057 = vadd.f32 %v1053, %v1056
      %vm1058 = vweird.f32 %v671
      %vm1059 = vweird.f32 %v1053
      %vm1060 = vmor %vm1058, %vm1059
      %v1061 = vsel %vm1060, %v1053, %v1057
      %v1062 = vand.u32 2147483647, %v671
      %vm1063 = vcmp.eq.f32.partialorder %v1062, 8.507059e+37
      %v1064 = vand.u32 %v671, 2147483648
      %v1065 = vor.u32 1.1754944e-38, %v1064
      %v1066 = vsel %vm1063, %v1065, %v1061
      %v1067 = vmul.f32 1.0, %v1066
      %v1068 = vrcp.pop %v672
      %v1069 = vmul.f32 %v672, %v1068
      %v1070 = vsub.f32 1.0, %v1069
      %v1071 = vmul.f32 %v1068, %v1070
      %v1072 = vadd.f32 %v1068, %v1071
      %vm1073 = vweird.f32 %v672
      %vm1074 = vweird.f32 %v1068
      %vm1075 = vmor %vm1073, %vm1074
      %v1076 = vsel %vm1075, %v1068, %v1072
      %v1077 = vand.u32 2147483647, %v672
      %vm1078 = vcmp.eq.f32.partialorder %v1077, 8.507059e+37
      %v1079 = vand.u32 %v672, 2147483648
      %v1080 = vor.u32 1.1754944e-38, %v1079
      %v1081 = vsel %vm1078, %v1080, %v1076
      %v1082 = vmul.f32 1.0, %v1081
      %v1083 = vrcp.pop %v673
      %v1084 = vmul.f32 %v673, %v1083
      %v1085 = vsub.f32 1.0, %v1084
      %v1086 = vmul.f32 %v1083, %v1085
      %v1087 = vadd.f32 %v1083, %v1086
      %vm1088 = vweird.f32 %v673
      %vm1089 = vweird.f32 %v1083
      %vm1090 = vmor %vm1088, %vm1089
      %v1091 = vsel %vm1090, %v1083, %v1087
      %v1092 = vand.u32 2147483647, %v673
      %vm1093 = vcmp.eq.f32.partialorder %v1092, 8.507059e+37
      %v1094 = vand.u32 %v673, 2147483648
      %v1095 = vor.u32 1.1754944e-38, %v1094
      %v1096 = vsel %vm1093, %v1095, %v1091
      %v1097 = vmul.f32 1.0, %v1096
      %v1098 = vrcp.pop %v674
      %v1099 = vmul.f32 %v674, %v1098
      %v1100 = vsub.f32 1.0, %v1099
      %v1101 = vmul.f32 %v1098, %v1100
      %v1102 = vadd.f32 %v1098, %v1101
      %vm1103 = vweird.f32 %v674
      %vm1104 = vweird.f32 %v1098
      %vm1105 = vmor %vm1103, %vm1104
      %v1106 = vsel %vm1105, %v1098, %v1102
      %v1107 = vand.u32 2147483647, %v674
      %vm1108 = vcmp.eq.f32.partialorder %v1107, 8.507059e+37
      %v1109 = vand.u32 %v674, 2147483648
      %v1110 = vor.u32 1.1754944e-38, %v1109
      %v1111 = vsel %vm1108, %v1110, %v1106
      %v1112 = vmul.f32 1.0, %v1111
      %v1113 = vrcp.pop %v675
      %v1114 = vmul.f32 %v675, %v1113
      %v1115 = vsub.f32 1.0, %v1114
      %v1116 = vmul.f32 %v1113, %v1115
      %v1117 = vadd.f32 %v1113, %v1116
      %vm1118 = vweird.f32 %v675
      %vm1119 = vweird.f32 %v1113
      %vm1120 = vmor %vm1118, %vm1119
      %v1121 = vsel %vm1120, %v1113, %v1117
      %v1122 = vand.u32 2147483647, %v675
      %vm1123 = vcmp.eq.f32.partialorder %v1122, 8.507059e+37
      %v1124 = vand.u32 %v675, 2147483648
      %v1125 = vor.u32 1.1754944e-38, %v1124
      %v1126 = vsel %vm1123, %v1125, %v1121
      %v1127 = vmul.f32 1.0, %v1126
      %v1128 = vrcp.pop %v676
      %v1129 = vmul.f32 %v676, %v1128
      %v1130 = vsub.f32 1.0, %v1129
      %v1131 = vmul.f32 %v1128, %v1130
      %v1132 = vadd.f32 %v1128, %v1131
      %vm1133 = vweird.f32 %v676
      %vm1134 = vweird.f32 %v1128
      %vm1135 = vmor %vm1133, %vm1134
      %v1136 = vsel %vm1135, %v1128, %v1132
      %v1137 = vand.u32 2147483647, %v676
      %vm1138 = vcmp.eq.f32.partialorder %v1137, 8.507059e+37
      %v1139 = vand.u32 %v676, 2147483648
      %v1140 = vor.u32 1.1754944e-38, %v1139
      %v1141 = vsel %vm1138, %v1140, %v1136
      %v1142 = vmul.f32 1.0, %v1141
      %v1143 = vrcp.pop %v677
      %v1144 = vmul.f32 %v677, %v1143
      %v1145 = vsub.f32 1.0, %v1144
      %v1146 = vmul.f32 %v1143, %v1145
      %v1147 = vadd.f32 %v1143, %v1146
      %vm1148 = vweird.f32 %v677
      %vm1149 = vweird.f32 %v1143
      %vm1150 = vmor %vm1148, %vm1149
      %v1151 = vsel %vm1150, %v1143, %v1147
      %v1152 = vand.u32 2147483647, %v677
      %vm1153 = vcmp.eq.f32.partialorder %v1152, 8.507059e+37
      %v1154 = vand.u32 %v677, 2147483648
      %v1155 = vor.u32 1.1754944e-38, %v1154
      %v1156 = vsel %vm1153, %v1155, %v1151
      %v1157 = vmul.f32 1.0, %v1156
      %v1158 = vmul.f32 %v692, 2.0
      %v1159 = vmul.f32 %v707, 2.0
      %v1160 = vmul.f32 %v722, 2.0
      %v1161 = vmul.f32 %v737, 2.0
      %v1162 = vmul.f32 %v752, 2.0
      %v1163 = vmul.f32 %v767, 2.0
      %v1164 = vmul.f32 %v782, 2.0
      %v1165 = vmul.f32 %v797, 2.0
      %v1166 = vmul.f32 %v812, 2.0
      %v1167 = vmul.f32 %v827, 2.0
      %v1168 = vmul.f32 %v842, 2.0
      %v1169 = vmul.f32 %v857, 2.0
      %v1170 = vmul.f32 %v872, 2.0
      %v1171 = vmul.f32 %v887, 2.0
      %v1172 = vmul.f32 %v902, 2.0
      %v1173 = vmul.f32 %v917, 2.0
      %v1174 = vmul.f32 %v932, 2.0
      %v1175 = vmul.f32 %v947, 2.0
      %v1176 = vmul.f32 %v962, 2.0
      %v1177 = vmul.f32 %v977, 2.0
      %v1178 = vmul.f32 %v992, 2.0
      %v1179 = vmul.f32 %v1007, 2.0
      %v1180 = vmul.f32 %v1022, 2.0
      %v1181 = vmul.f32 %v1037, 2.0
      %v1182 = vmul.f32 %v1052, 2.0
      %v1183 = vmul.f32 %v1067, 2.0
      %v1184 = vmul.f32 %v1082, 2.0
      %v1185 = vmul.f32 %v1097, 2.0
      %v1186 = vmul.f32 %v1112, 2.0
      %v1187 = vmul.f32 %v1127, 2.0
      %v1188 = vmul.f32 %v1142, 2.0
      %v1189 = vmul.f32 %v1157, 2.0
      %v1190 = vlaneseq
      %v1191 = vand.u32 %v1190, 127
      %vm1192 = vcmp.lt.s32.totalorder %v1191, 2
      %v1193 = vsub.f32 %v1158, 0.5
      %v1194 = vsub.f32 %v1159, 0.5
      %v1195 = vsub.f32 %v1160, 0.5
      %v1196 = vsub.f32 %v1161, 0.5
      %v1197 = vsub.f32 %v1162, 0.5
      %v1198 = vsub.f32 %v1163, 0.5
      %v1199 = vsub.f32 %v1164, 0.5
      %v1200 = vsub.f32 %v1165, 0.5
      %v1201 = vsub.f32 %v1166, 0.5
      %v1202 = vsub.f32 %v1167, 0.5
      %v1203 = vsub.f32 %v1168, 0.5
      %v1204 = vsub.f32 %v1169, 0.5
      %v1205 = vsub.f32 %v1170, 0.5
      %v1206 = vsub.f32 %v1171, 0.5
      %v1207 = vsub.f32 %v1172, 0.5
      %v1208 = vsub.f32 %v1173, 0.5
      %v1209 = vsub.f32 %v1174, 0.5
      %v1210 = vsub.f32 %v1175, 0.5
      %v1211 = vsub.f32 %v1176, 0.5
      %v1212 = vsub.f32 %v1177, 0.5
      %v1213 = vsub.f32 %v1178, 0.5
      %v1214 = vsub.f32 %v1179, 0.5
      %v1215 = vsub.f32 %v1180, 0.5
      %v1216 = vsub.f32 %v1181, 0.5
      %v1217 = vsub.f32 %v1182, 0.5
      %v1218 = vsub.f32 %v1183, 0.5
      %v1219 = vsub.f32 %v1184, 0.5
      %v1220 = vsub.f32 %v1185, 0.5
      %v1221 = vsub.f32 %v1186, 0.5
      %v1222 = vsub.f32 %v1187, 0.5
      %v1223 = vsub.f32 %v1188, 0.5
      %v1224 = vsub.f32 %v1189, 0.5
      %v1225 = vmul.f32 %v1158, %v1158
      %v1226 = vmul.f32 %v1159, %v1159
      %v1227 = vmul.f32 %v1160, %v1160
      %v1228 = vmul.f32 %v1161, %v1161
      %v1229 = vmul.f32 %v1162, %v1162
      %v1230 = vmul.f32 %v1163, %v1163
      %v1231 = vmul.f32 %v1164, %v1164
      %v1232 = vmul.f32 %v1165, %v1165
      %v1233 = vmul.f32 %v1166, %v1166
      %v1234 = vmul.f32 %v1167, %v1167
      %v1235 = vmul.f32 %v1168, %v1168
      %v1236 = vmul.f32 %v1169, %v1169
      %v1237 = vmul.f32 %v1170, %v1170
      %v1238 = vmul.f32 %v1171, %v1171
      %v1239 = vmul.f32 %v1172, %v1172
      %v1240 = vmul.f32 %v1173, %v1173
      %v1241 = vmul.f32 %v1174, %v1174
      %v1242 = vmul.f32 %v1175, %v1175
      %v1243 = vmul.f32 %v1176, %v1176
      %v1244 = vmul.f32 %v1177, %v1177
      %v1245 = vmul.f32 %v1178, %v1178
      %v1246 = vmul.f32 %v1179, %v1179
      %v1247 = vmul.f32 %v1180, %v1180
      %v1248 = vmul.f32 %v1181, %v1181
      %v1249 = vmul.f32 %v1182, %v1182
      %v1250 = vmul.f32 %v1183, %v1183
      %v1251 = vmul.f32 %v1184, %v1184
      %v1252 = vmul.f32 %v1185, %v1185
      %v1253 = vmul.f32 %v1186, %v1186
      %v1254 = vmul.f32 %v1187, %v1187
      %v1255 = vmul.f32 %v1188, %v1188
      %v1256 = vmul.f32 %v1189, %v1189
      %v1257 = vld [vmem:[%s3] sm:$0x1]
      %v1259 = vperm.slane %v1257, 0
      %v1261 = vmul.f32 %v1225, %v1259
      %v1262 = vmul.f32 %v1226, %v1259
      %v1263 = vmul.f32 %v1227, %v1259
      %v1264 = vmul.f32 %v1228, %v1259
      %v1265 = vmul.f32 %v1229, %v1259
      %v1266 = vmul.f32 %v1230, %v1259
      %v1267 = vmul.f32 %v1231, %v1259
      %v1268 = vmul.f32 %v1232, %v1259
      %v1269 = vmul.f32 %v1233, %v1259
      %v1270 = vmul.f32 %v1234, %v1259
      %v1271 = vmul.f32 %v1235, %v1259
      %v1272 = vmul.f32 %v1236, %v1259
      %v1273 = vmul.f32 %v1237, %v1259
      %v1274 = vmul.f32 %v1238, %v1259
      %v1275 = vmul.f32 %v1239, %v1259
      %v1276 = vmul.f32 %v1240, %v1259
      %v1277 = vmul.f32 %v1241, %v1259
      %v1278 = vmul.f32 %v1242, %v1259
      %v1279 = vmul.f32 %v1243, %v1259
      %v1280 = vmul.f32 %v1244, %v1259
      %v1281 = vmul.f32 %v1245, %v1259
      %v1282 = vmul.f32 %v1246, %v1259
      %v1283 = vmul.f32 %v1247, %v1259
      %v1284 = vmul.f32 %v1248, %v1259
      %v1285 = vmul.f32 %v1249, %v1259
      %v1286 = vmul.f32 %v1250, %v1259
      %v1287 = vmul.f32 %v1251, %v1259
      %v1288 = vmul.f32 %v1252, %v1259
      %v1289 = vmul.f32 %v1253, %v1259
      %v1290 = vmul.f32 %v1254, %v1259
      %v1291 = vmul.f32 %v1255, %v1259
      %v1292 = vmul.f32 %v1256, %v1259
      %v1293 = vsel %vm1192, %v1193, %v1261
      %v1294 = vsel %vm1192, %v1194, %v1262
      %v1295 = vsel %vm1192, %v1195, %v1263
      %v1296 = vsel %vm1192, %v1196, %v1264
      %v1297 = vsel %vm1192, %v1197, %v1265
      %v1298 = vsel %vm1192, %v1198, %v1266
      %v1299 = vsel %vm1192, %v1199, %v1267
      %v1300 = vsel %vm1192, %v1200, %v1268
      %v1301 = vsel %vm1192, %v1201, %v1269
      %v1302 = vsel %vm1192, %v1202, %v1270
      %v1303 = vsel %vm1192, %v1203, %v1271
      %v1304 = vsel %vm1192, %v1204, %v1272
      %v1305 = vsel %vm1192, %v1205, %v1273
      %v1306 = vsel %vm1192, %v1206, %v1274
      %v1307 = vsel %vm1192, %v1207, %v1275
      %v1308 = vsel %vm1192, %v1208, %v1276
      %v1309 = vsel %vm1192, %v1209, %v1277
      %v1310 = vsel %vm1192, %v1210, %v1278
      %v1311 = vsel %vm1192, %v1211, %v1279
      %v1312 = vsel %vm1192, %v1212, %v1280
      %v1313 = vsel %vm1192, %v1213, %v1281
      %v1314 = vsel %vm1192, %v1214, %v1282
      %v1315 = vsel %vm1192, %v1215, %v1283
      %v1316 = vsel %vm1192, %v1216, %v1284
      %v1317 = vsel %vm1192, %v1217, %v1285
      %v1318 = vsel %vm1192, %v1218, %v1286
      %v1319 = vsel %vm1192, %v1219, %v1287
      %v1320 = vsel %vm1192, %v1220, %v1288
      %v1321 = vsel %vm1192, %v1221, %v1289
      %v1322 = vsel %vm1192, %v1222, %v1290
      %v1323 = vsel %vm1192, %v1223, %v1291
      %v1324 = vsel %vm1192, %v1224, %v1292
      %vm1325 = vcmask 31744
      %1326 = vst.msk [vmem:[%s235] sm:$0xff] %vm1325, %v1293
      %1327 = vst.msk [vmem:[%s235 + $0x8] sm:$0xff] %vm1325, %v1294
      %1328 = vst.msk [vmem:[%s235 + $0x10] sm:$0xff] %vm1325, %v1295
      %1329 = vst.msk [vmem:[%s235 + $0x18] sm:$0xff] %vm1325, %v1296
      %1330 = vst.msk [vmem:[%s235 + $0x20] sm:$0xff] %vm1325, %v1297
      %1331 = vst.msk [vmem:[%s235 + $0x28] sm:$0xff] %vm1325, %v1298
      %1332 = vst.msk [vmem:[%s235 + $0x30] sm:$0xff] %vm1325, %v1299
      %1333 = vst.msk [vmem:[%s235 + $0x38] sm:$0xff] %vm1325, %v1300
      %1334 = vst.msk [vmem:[%s235 + $0x40] sm:$0xff] %vm1325, %v1301
      %1335 = vst.msk [vmem:[%s235 + $0x48] sm:$0xff] %vm1325, %v1302
      %1336 = vst.msk [vmem:[%s235 + $0x50] sm:$0xff] %vm1325, %v1303
      %1337 = vst.msk [vmem:[%s235 + $0x58] sm:$0xff] %vm1325, %v1304
      %1338 = vst.msk [vmem:[%s235 + $0x60] sm:$0xff] %vm1325, %v1305
      %1339 = vst.msk [vmem:[%s235 + $0x68] sm:$0xff] %vm1325, %v1306
      %1340 = vst.msk [vmem:[%s235 + $0x70] sm:$0xff] %vm1325, %v1307
      %1341 = vst.msk [vmem:[%s235 + $0x78] sm:$0xff] %vm1325, %v1308
      %1342 = vst.msk [vmem:[%s235 + $0x80] sm:$0xff] %vm1325, %v1309
      %1343 = vst.msk [vmem:[%s235 + $0x88] sm:$0xff] %vm1325, %v1310
      %1344 = vst.msk [vmem:[%s235 + $0x90] sm:$0xff] %vm1325, %v1311
      %1345 = vst.msk [vmem:[%s235 + $0x98] sm:$0xff] %vm1325, %v1312
      %1346 = vst.msk [vmem:[%s235 + $0xa0] sm:$0xff] %vm1325, %v1313
      %1347 = vst.msk [vmem:[%s235 + $0xa8] sm:$0xff] %vm1325, %v1314
      %1348 = vst.msk [vmem:[%s235 + $0xb0] sm:$0xff] %vm1325, %v1315
      %1349 = vst.msk [vmem:[%s235 + $0xb8] sm:$0xff] %vm1325, %v1316
      %1350 = vst.msk [vmem:[%s235 + $0xc0] sm:$0xff] %vm1325, %v1317
      %1351 = vst.msk [vmem:[%s235 + $0xc8] sm:$0xff] %vm1325, %v1318
      %1352 = vst.msk [vmem:[%s235 + $0xd0] sm:$0xff] %vm1325, %v1319
      %1353 = vst.msk [vmem:[%s235 + $0xd8] sm:$0xff] %vm1325, %v1320
      %1354 = vst.msk [vmem:[%s235 + $0xe0] sm:$0xff] %vm1325, %v1321
      %1355 = vst.msk [vmem:[%s235 + $0xe8] sm:$0xff] %vm1325, %v1322
      %1356 = vst.msk [vmem:[%s235 + $0xf0] sm:$0xff] %vm1325, %v1323
      %1357 = vst.msk [vmem:[%s235 + $0xf8] sm:$0xff] %vm1325, %v1324
      %s1358 = scalar_lea.vmem %s1, 8
      %v1359 = vld [vmem:[%s1358] sm:$0xff]
      %s1360 = scalar_lea.vmem %s2, 1
      %v1361 = vld [vmem:[%s1360] sm:$0x1]
      %v1363 = vperm.slane %v1361, 0
      %1365 = vmatpush.msra.mxu0 0.0
      %1366 = vmatpush.msra.mxu0 0.0
      %1367 = vmatpush.msra.mxu0 0.0
      %1368 = vmatpush.msra.mxu0 0.0
      %1369 = vmatpush.msra.mxu0 0.0
      %1370 = vmatpush.msra.mxu0 0.0
      %1371 = vmatpush.msra.mxu0 0.0
      %1372 = vmatpush.msra.mxu0 0.0
      %1373 = vmatpush.msra.mxu0 0.0
      %1374 = vmatpush.msra.mxu0 0.0
      %1375 = vmatpush.msra.mxu0 0.0
      %1376 = vmatpush.msra.mxu0 0.0
      %1377 = vmatpush.msra.mxu0 0.0
      %1378 = vmatpush.msra.mxu0 0.0
      %1379 = vmatpush.msra.mxu0 0.0
      %1380 = vmatpush.msra.mxu0 %v1359
      %1381 = vmatmul.f32.gmra.mxu0 %v310
      %v1382 = vpop.f32.mrf.mxu0
      %v1383 = vadd.f32 %v1363, %v1382
      %1384 = vmatmul.f32.gmra.mxu0 %v313
      %v1385 = vpop.f32.mrf.mxu0
      %v1386 = vadd.f32 %v1363, %v1385
      %1387 = vmatmul.f32.gmra.mxu0 %v316
      %v1388 = vpop.f32.mrf.mxu0
      %v1389 = vadd.f32 %v1363, %v1388
      %1390 = vmatmul.f32.gmra.mxu0 %v319
      %v1391 = vpop.f32.mrf.mxu0
      %v1392 = vadd.f32 %v1363, %v1391
      %1393 = vmatmul.f32.gmra.mxu0 %v322
      %v1394 = vpop.f32.mrf.mxu0
      %v1395 = vadd.f32 %v1363, %v1394
      %1396 = vmatmul.f32.gmra.mxu0 %v325
      %v1397 = vpop.f32.mrf.mxu0
      %v1398 = vadd.f32 %v1363, %v1397
      %1399 = vmatmul.f32.gmra.mxu0 %v328
      %v1400 = vpop.f32.mrf.mxu0
      %v1401 = vadd.f32 %v1363, %v1400
      %1402 = vmatmul.f32.gmra.mxu0 %v331
      %v1403 = vpop.f32.mrf.mxu0
      %v1404 = vadd.f32 %v1363, %v1403
      %1405 = vmatmul.f32.gmra.mxu0 %v334
      %v1406 = vpop.f32.mrf.mxu0
      %v1407 = vadd.f32 %v1363, %v1406
      %1408 = vmatmul.f32.gmra.mxu0 %v337
      %v1409 = vpop.f32.mrf.mxu0
      %v1410 = vadd.f32 %v1363, %v1409
      %1411 = vmatmul.f32.gmra.mxu0 %v340
      %v1412 = vpop.f32.mrf.mxu0
      %v1413 = vadd.f32 %v1363, %v1412
      %1414 = vmatmul.f32.gmra.mxu0 %v343
      %v1415 = vpop.f32.mrf.mxu0
      %v1416 = vadd.f32 %v1363, %v1415
      %1417 = vmatmul.f32.gmra.mxu0 %v346
      %v1418 = vpop.f32.mrf.mxu0
      %v1419 = vadd.f32 %v1363, %v1418
      %1420 = vmatmul.f32.gmra.mxu0 %v349
      %v1421 = vpop.f32.mrf.mxu0
      %v1422 = vadd.f32 %v1363, %v1421
      %1423 = vmatmul.f32.gmra.mxu0 %v352
      %v1424 = vpop.f32.mrf.mxu0
      %v1425 = vadd.f32 %v1363, %v1424
      %1426 = vmatmul.f32.gmra.mxu0 %v355
      %v1427 = vpop.f32.mrf.mxu0
      %v1428 = vadd.f32 %v1363, %v1427
      %1429 = vmatmul.f32.gmra.mxu0 %v358
      %v1430 = vpop.f32.mrf.mxu0
      %v1431 = vadd.f32 %v1363, %v1430
      %1432 = vmatmul.f32.gmra.mxu0 %v361
      %v1433 = vpop.f32.mrf.mxu0
      %v1434 = vadd.f32 %v1363, %v1433
      %1435 = vmatmul.f32.gmra.mxu0 %v364
      %v1436 = vpop.f32.mrf.mxu0
      %v1437 = vadd.f32 %v1363, %v1436
      %1438 = vmatmul.f32.gmra.mxu0 %v367
      %v1439 = vpop.f32.mrf.mxu0
      %v1440 = vadd.f32 %v1363, %v1439
      %1441 = vmatmul.f32.gmra.mxu0 %v370
      %v1442 = vpop.f32.mrf.mxu0
      %v1443 = vadd.f32 %v1363, %v1442
      %1444 = vmatmul.f32.gmra.mxu0 %v373
      %v1445 = vpop.f32.mrf.mxu0
      %v1446 = vadd.f32 %v1363, %v1445
      %1447 = vmatmul.f32.gmra.mxu0 %v376
      %v1448 = vpop.f32.mrf.mxu0
      %v1449 = vadd.f32 %v1363, %v1448
      %1450 = vmatmul.f32.gmra.mxu0 %v379
      %v1451 = vpop.f32.mrf.mxu0
      %v1452 = vadd.f32 %v1363, %v1451
      %1453 = vmatmul.f32.gmra.mxu0 %v382
      %v1454 = vpop.f32.mrf.mxu0
      %v1455 = vadd.f32 %v1363, %v1454
      %1456 = vmatmul.f32.gmra.mxu0 %v385
      %v1457 = vpop.f32.mrf.mxu0
      %v1458 = vadd.f32 %v1363, %v1457
      %1459 = vmatmul.f32.gmra.mxu0 %v388
      %v1460 = vpop.f32.mrf.mxu0
      %v1461 = vadd.f32 %v1363, %v1460
      %1462 = vmatmul.f32.gmra.mxu0 %v391
      %v1463 = vpop.f32.mrf.mxu0
      %v1464 = vadd.f32 %v1363, %v1463
      %1465 = vmatmul.f32.gmra.mxu0 %v394
      %v1466 = vpop.f32.mrf.mxu0
      %v1467 = vadd.f32 %v1363, %v1466
      %1468 = vmatmul.f32.gmra.mxu0 %v397
      %v1469 = vpop.f32.mrf.mxu0
      %v1470 = vadd.f32 %v1363, %v1469
      %1471 = vmatmul.f32.gmra.mxu0 %v400
      %v1472 = vpop.f32.mrf.mxu0
      %v1473 = vadd.f32 %v1363, %v1472
      %1474 = vmatmul.f32.gmra.mxu0 %v403
      %v1475 = vpop.f32.mrf.mxu0
      %v1476 = vadd.f32 %v1363, %v1475
      %1477 = vdwg.mxu0
      %s1478 = scalar_lea.vmem %s235, 256
      %1479 = vst.msk [vmem:[%s1478] sm:$0xff] %vm308, %v1383
      %1480 = vst.msk [vmem:[%s1478 + $0x8] sm:$0xff] %vm308, %v1386
      %1481 = vst.msk [vmem:[%s1478 + $0x10] sm:$0xff] %vm308, %v1389
      %1482 = vst.msk [vmem:[%s1478 + $0x18] sm:$0xff] %vm308, %v1392
      %1483 = vst.msk [vmem:[%s1478 + $0x20] sm:$0xff] %vm308, %v1395
      %1484 = vst.msk [vmem:[%s1478 + $0x28] sm:$0xff] %vm308, %v1398
      %1485 = vst.msk [vmem:[%s1478 + $0x30] sm:$0xff] %vm308, %v1401
      %1486 = vst.msk [vmem:[%s1478 + $0x38] sm:$0xff] %vm308, %v1404
      %1487 = vst.msk [vmem:[%s1478 + $0x40] sm:$0xff] %vm308, %v1407
      %1488 = vst.msk [vmem:[%s1478 + $0x48] sm:$0xff] %vm308, %v1410
      %1489 = vst.msk [vmem:[%s1478 + $0x50] sm:$0xff] %vm308, %v1413
      %1490 = vst.msk [vmem:[%s1478 + $0x58] sm:$0xff] %vm308, %v1416
      %1491 = vst.msk [vmem:[%s1478 + $0x60] sm:$0xff] %vm308, %v1419
      %1492 = vst.msk [vmem:[%s1478 + $0x68] sm:$0xff] %vm308, %v1422
      %1493 = vst.msk [vmem:[%s1478 + $0x70] sm:$0xff] %vm308, %v1425
      %1494 = vst.msk [vmem:[%s1478 + $0x78] sm:$0xff] %vm308, %v1428
      %1495 = vst.msk [vmem:[%s1478 + $0x80] sm:$0xff] %vm308, %v1431
      %1496 = vst.msk [vmem:[%s1478 + $0x88] sm:$0xff] %vm308, %v1434
      %1497 = vst.msk [vmem:[%s1478 + $0x90] sm:$0xff] %vm308, %v1437
      %1498 = vst.msk [vmem:[%s1478 + $0x98] sm:$0xff] %vm308, %v1440
      %1499 = vst.msk [vmem:[%s1478 + $0xa0] sm:$0xff] %vm308, %v1443
      %1500 = vst.msk [vmem:[%s1478 + $0xa8] sm:$0xff] %vm308, %v1446
      %1501 = vst.msk [vmem:[%s1478 + $0xb0] sm:$0xff] %vm308, %v1449
      %1502 = vst.msk [vmem:[%s1478 + $0xb8] sm:$0xff] %vm308, %v1452
      %1503 = vst.msk [vmem:[%s1478 + $0xc0] sm:$0xff] %vm308, %v1455
      %1504 = vst.msk [vmem:[%s1478 + $0xc8] sm:$0xff] %vm308, %v1458
      %1505 = vst.msk [vmem:[%s1478 + $0xd0] sm:$0xff] %vm308, %v1461
      %1506 = vst.msk [vmem:[%s1478 + $0xd8] sm:$0xff] %vm308, %v1464
      %1507 = vst.msk [vmem:[%s1478 + $0xe0] sm:$0xff] %vm308, %v1467
      %1508 = vst.msk [vmem:[%s1478 + $0xe8] sm:$0xff] %vm308, %v1470
      %1509 = vst.msk [vmem:[%s1478 + $0xf0] sm:$0xff] %vm308, %v1473
      %1510 = vst.msk [vmem:[%s1478 + $0xf8] sm:$0xff] %vm308, %v1476
      %v1511 = vxor.u32 %v1383, 2147483648
      %v1512 = vxor.u32 %v1386, 2147483648
      %v1513 = vxor.u32 %v1389, 2147483648
      %v1514 = vxor.u32 %v1392, 2147483648
      %v1515 = vxor.u32 %v1395, 2147483648
      %v1516 = vxor.u32 %v1398, 2147483648
      %v1517 = vxor.u32 %v1401, 2147483648
      %v1518 = vxor.u32 %v1404, 2147483648
      %v1519 = vxor.u32 %v1407, 2147483648
      %v1520 = vxor.u32 %v1410, 2147483648
      %v1521 = vxor.u32 %v1413, 2147483648
      %v1522 = vxor.u32 %v1416, 2147483648
      %v1523 = vxor.u32 %v1419, 2147483648
      %v1524 = vxor.u32 %v1422, 2147483648
      %v1525 = vxor.u32 %v1425, 2147483648
      %v1526 = vxor.u32 %v1428, 2147483648
      %v1527 = vxor.u32 %v1431, 2147483648
      %v1528 = vxor.u32 %v1434, 2147483648
      %v1529 = vxor.u32 %v1437, 2147483648
      %v1530 = vxor.u32 %v1440, 2147483648
      %v1531 = vxor.u32 %v1443, 2147483648
      %v1532 = vxor.u32 %v1446, 2147483648
      %v1533 = vxor.u32 %v1449, 2147483648
      %v1534 = vxor.u32 %v1452, 2147483648
      %v1535 = vxor.u32 %v1455, 2147483648
      %v1536 = vxor.u32 %v1458, 2147483648
      %v1537 = vxor.u32 %v1461, 2147483648
      %v1538 = vxor.u32 %v1464, 2147483648
      %v1539 = vxor.u32 %v1467, 2147483648
      %v1540 = vxor.u32 %v1470, 2147483648
      %v1541 = vxor.u32 %v1473, 2147483648
      %v1542 = vxor.u32 %v1476, 2147483648
      %v1543 = vmul.f32 %v1511, 1.442695
      %v1544 = vpow.pop %v1543
      %v1545 = vmul.f32 %v1512, 1.442695
      %v1546 = vpow.pop %v1545
      %v1547 = vmul.f32 %v1513, 1.442695
      %v1548 = vpow.pop %v1547
      %v1549 = vmul.f32 %v1514, 1.442695
      %v1550 = vpow.pop %v1549
      %v1551 = vmul.f32 %v1515, 1.442695
      %v1552 = vpow.pop %v1551
      %v1553 = vmul.f32 %v1516, 1.442695
      %v1554 = vpow.pop %v1553
      %v1555 = vmul.f32 %v1517, 1.442695
      %v1556 = vpow.pop %v1555
      %v1557 = vmul.f32 %v1518, 1.442695
      %v1558 = vpow.pop %v1557
      %v1559 = vmul.f32 %v1519, 1.442695
      %v1560 = vpow.pop %v1559
      %v1561 = vmul.f32 %v1520, 1.442695
      %v1562 = vpow.pop %v1561
      %v1563 = vmul.f32 %v1521, 1.442695
      %v1564 = vpow.pop %v1563
      %v1565 = vmul.f32 %v1522, 1.442695
      %v1566 = vpow.pop %v1565
      %v1567 = vmul.f32 %v1523, 1.442695
      %v1568 = vpow.pop %v1567
      %v1569 = vmul.f32 %v1524, 1.442695
      %v1570 = vpow.pop %v1569
      %v1571 = vmul.f32 %v1525, 1.442695
      %v1572 = vpow.pop %v1571
      %v1573 = vmul.f32 %v1526, 1.442695
      %v1574 = vpow.pop %v1573
      %v1575 = vmul.f32 %v1527, 1.442695
      %v1576 = vpow.pop %v1575
      %v1577 = vmul.f32 %v1528, 1.442695
      %v1578 = vpow.pop %v1577
      %v1579 = vmul.f32 %v1529, 1.442695
      %v1580 = vpow.pop %v1579
      %v1581 = vmul.f32 %v1530, 1.442695
      %v1582 = vpow.pop %v1581
      %v1583 = vmul.f32 %v1531, 1.442695
      %v1584 = vpow.pop %v1583
      %v1585 = vmul.f32 %v1532, 1.442695
      %v1586 = vpow.pop %v1585
      %v1587 = vmul.f32 %v1533, 1.442695
      %v1588 = vpow.pop %v1587
      %v1589 = vmul.f32 %v1534, 1.442695
      %v1590 = vpow.pop %v1589
      %v1591 = vmul.f32 %v1535, 1.442695
      %v1592 = vpow.pop %v1591
      %v1593 = vmul.f32 %v1536, 1.442695
      %v1594 = vpow.pop %v1593
      %v1595 = vmul.f32 %v1537, 1.442695
      %v1596 = vpow.pop %v1595
      %v1597 = vmul.f32 %v1538, 1.442695
      %v1598 = vpow.pop %v1597
      %v1599 = vmul.f32 %v1539, 1.442695
      %v1600 = vpow.pop %v1599
      %v1601 = vmul.f32 %v1540, 1.442695
      %v1602 = vpow.pop %v1601
      %v1603 = vmul.f32 %v1541, 1.442695
      %v1604 = vpow.pop %v1603
      %v1605 = vmul.f32 %v1542, 1.442695
      %v1606 = vpow.pop %v1605
      %v1607 = vadd.f32 %v1544, 1.0
      %v1608 = vadd.f32 %v1546, 1.0
      %v1609 = vadd.f32 %v1548, 1.0
      %v1610 = vadd.f32 %v1550, 1.0
      %v1611 = vadd.f32 %v1552, 1.0
      %v1612 = vadd.f32 %v1554, 1.0
      %v1613 = vadd.f32 %v1556, 1.0
      %v1614 = vadd.f32 %v1558, 1.0
      %v1615 = vadd.f32 %v1560, 1.0
      %v1616 = vadd.f32 %v1562, 1.0
      %v1617 = vadd.f32 %v1564, 1.0
      %v1618 = vadd.f32 %v1566, 1.0
      %v1619 = vadd.f32 %v1568, 1.0
      %v1620 = vadd.f32 %v1570, 1.0
      %v1621 = vadd.f32 %v1572, 1.0
      %v1622 = vadd.f32 %v1574, 1.0
      %v1623 = vadd.f32 %v1576, 1.0
      %v1624 = vadd.f32 %v1578, 1.0
      %v1625 = vadd.f32 %v1580, 1.0
      %v1626 = vadd.f32 %v1582, 1.0
      %v1627 = vadd.f32 %v1584, 1.0
      %v1628 = vadd.f32 %v1586, 1.0
      %v1629 = vadd.f32 %v1588, 1.0
      %v1630 = vadd.f32 %v1590, 1.0
      %v1631 = vadd.f32 %v1592, 1.0
      %v1632 = vadd.f32 %v1594, 1.0
      %v1633 = vadd.f32 %v1596, 1.0
      %v1634 = vadd.f32 %v1598, 1.0
      %v1635 = vadd.f32 %v1600, 1.0
      %v1636 = vadd.f32 %v1602, 1.0
      %v1637 = vadd.f32 %v1604, 1.0
      %v1638 = vadd.f32 %v1606, 1.0
      %v1639 = vrcp.pop %v1607
      %v1640 = vmul.f32 %v1607, %v1639
      %v1641 = vsub.f32 1.0, %v1640
      %v1642 = vmul.f32 %v1639, %v1641
      %v1643 = vadd.f32 %v1639, %v1642
      %vm1644 = vweird.f32 %v1607
      %vm1645 = vweird.f32 %v1639
      %vm1646 = vmor %vm1644, %vm1645
      %v1647 = vsel %vm1646, %v1639, %v1643
      %v1648 = vand.u32 2147483647, %v1607
      %vm1649 = vcmp.eq.f32.partialorder %v1648, 8.507059e+37
      %v1650 = vand.u32 %v1607, 2147483648
      %v1651 = vor.u32 1.1754944e-38, %v1650
      %v1652 = vsel %vm1649, %v1651, %v1647
      %v1653 = vmul.f32 1.0, %v1652
      %v1654 = vrcp.pop %v1608
      %v1655 = vmul.f32 %v1608, %v1654
      %v1656 = vsub.f32 1.0, %v1655
      %v1657 = vmul.f32 %v1654, %v1656
      %v1658 = vadd.f32 %v1654, %v1657
      %vm1659 = vweird.f32 %v1608
      %vm1660 = vweird.f32 %v1654
      %vm1661 = vmor %vm1659, %vm1660
      %v1662 = vsel %vm1661, %v1654, %v1658
      %v1663 = vand.u32 2147483647, %v1608
      %vm1664 = vcmp.eq.f32.partialorder %v1663, 8.507059e+37
      %v1665 = vand.u32 %v1608, 2147483648
      %v1666 = vor.u32 1.1754944e-38, %v1665
      %v1667 = vsel %vm1664, %v1666, %v1662
      %v1668 = vmul.f32 1.0, %v1667
      %v1669 = vrcp.pop %v1609
      %v1670 = vmul.f32 %v1609, %v1669
      %v1671 = vsub.f32 1.0, %v1670
      %v1672 = vmul.f32 %v1669, %v1671
      %v1673 = vadd.f32 %v1669, %v1672
      %vm1674 = vweird.f32 %v1609
      %vm1675 = vweird.f32 %v1669
      %vm1676 = vmor %vm1674, %vm1675
      %v1677 = vsel %vm1676, %v1669, %v1673
      %v1678 = vand.u32 2147483647, %v1609
      %vm1679 = vcmp.eq.f32.partialorder %v1678, 8.507059e+37
      %v1680 = vand.u32 %v1609, 2147483648
      %v1681 = vor.u32 1.1754944e-38, %v1680
      %v1682 = vsel %vm1679, %v1681, %v1677
      %v1683 = vmul.f32 1.0, %v1682
      %v1684 = vrcp.pop %v1610
      %v1685 = vmul.f32 %v1610, %v1684
      %v1686 = vsub.f32 1.0, %v1685
      %v1687 = vmul.f32 %v1684, %v1686
      %v1688 = vadd.f32 %v1684, %v1687
      %vm1689 = vweird.f32 %v1610
      %vm1690 = vweird.f32 %v1684
      %vm1691 = vmor %vm1689, %vm1690
      %v1692 = vsel %vm1691, %v1684, %v1688
      %v1693 = vand.u32 2147483647, %v1610
      %vm1694 = vcmp.eq.f32.partialorder %v1693, 8.507059e+37
      %v1695 = vand.u32 %v1610, 2147483648
      %v1696 = vor.u32 1.1754944e-38, %v1695
      %v1697 = vsel %vm1694, %v1696, %v1692
      %v1698 = vmul.f32 1.0, %v1697
      %v1699 = vrcp.pop %v1611
      %v1700 = vmul.f32 %v1611, %v1699
      %v1701 = vsub.f32 1.0, %v1700
      %v1702 = vmul.f32 %v1699, %v1701
      %v1703 = vadd.f32 %v1699, %v1702
      %vm1704 = vweird.f32 %v1611
      %vm1705 = vweird.f32 %v1699
      %vm1706 = vmor %vm1704, %vm1705
      %v1707 = vsel %vm1706, %v1699, %v1703
      %v1708 = vand.u32 2147483647, %v1611
      %vm1709 = vcmp.eq.f32.partialorder %v1708, 8.507059e+37
      %v1710 = vand.u32 %v1611, 2147483648
      %v1711 = vor.u32 1.1754944e-38, %v1710
      %v1712 = vsel %vm1709, %v1711, %v1707
      %v1713 = vmul.f32 1.0, %v1712
      %v1714 = vrcp.pop %v1612
      %v1715 = vmul.f32 %v1612, %v1714
      %v1716 = vsub.f32 1.0, %v1715
      %v1717 = vmul.f32 %v1714, %v1716
      %v1718 = vadd.f32 %v1714, %v1717
      %vm1719 = vweird.f32 %v1612
      %vm1720 = vweird.f32 %v1714
      %vm1721 = vmor %vm1719, %vm1720
      %v1722 = vsel %vm1721, %v1714, %v1718
      %v1723 = vand.u32 2147483647, %v1612
      %vm1724 = vcmp.eq.f32.partialorder %v1723, 8.507059e+37
      %v1725 = vand.u32 %v1612, 2147483648
      %v1726 = vor.u32 1.1754944e-38, %v1725
      %v1727 = vsel %vm1724, %v1726, %v1722
      %v1728 = vmul.f32 1.0, %v1727
      %v1729 = vrcp.pop %v1613
      %v1730 = vmul.f32 %v1613, %v1729
      %v1731 = vsub.f32 1.0, %v1730
      %v1732 = vmul.f32 %v1729, %v1731
      %v1733 = vadd.f32 %v1729, %v1732
      %vm1734 = vweird.f32 %v1613
      %vm1735 = vweird.f32 %v1729
      %vm1736 = vmor %vm1734, %vm1735
      %v1737 = vsel %vm1736, %v1729, %v1733
      %v1738 = vand.u32 2147483647, %v1613
      %vm1739 = vcmp.eq.f32.partialorder %v1738, 8.507059e+37
      %v1740 = vand.u32 %v1613, 2147483648
      %v1741 = vor.u32 1.1754944e-38, %v1740
      %v1742 = vsel %vm1739, %v1741, %v1737
      %v1743 = vmul.f32 1.0, %v1742
      %v1744 = vrcp.pop %v1614
      %v1745 = vmul.f32 %v1614, %v1744
      %v1746 = vsub.f32 1.0, %v1745
      %v1747 = vmul.f32 %v1744, %v1746
      %v1748 = vadd.f32 %v1744, %v1747
      %vm1749 = vweird.f32 %v1614
      %vm1750 = vweird.f32 %v1744
      %vm1751 = vmor %vm1749, %vm1750
      %v1752 = vsel %vm1751, %v1744, %v1748
      %v1753 = vand.u32 2147483647, %v1614
      %vm1754 = vcmp.eq.f32.partialorder %v1753, 8.507059e+37
      %v1755 = vand.u32 %v1614, 2147483648
      %v1756 = vor.u32 1.1754944e-38, %v1755
      %v1757 = vsel %vm1754, %v1756, %v1752
      %v1758 = vmul.f32 1.0, %v1757
      %v1759 = vrcp.pop %v1615
      %v1760 = vmul.f32 %v1615, %v1759
      %v1761 = vsub.f32 1.0, %v1760
      %v1762 = vmul.f32 %v1759, %v1761
      %v1763 = vadd.f32 %v1759, %v1762
      %vm1764 = vweird.f32 %v1615
      %vm1765 = vweird.f32 %v1759
      %vm1766 = vmor %vm1764, %vm1765
      %v1767 = vsel %vm1766, %v1759, %v1763
      %v1768 = vand.u32 2147483647, %v1615
      %vm1769 = vcmp.eq.f32.partialorder %v1768, 8.507059e+37
      %v1770 = vand.u32 %v1615, 2147483648
      %v1771 = vor.u32 1.1754944e-38, %v1770
      %v1772 = vsel %vm1769, %v1771, %v1767
      %v1773 = vmul.f32 1.0, %v1772
      %v1774 = vrcp.pop %v1616
      %v1775 = vmul.f32 %v1616, %v1774
      %v1776 = vsub.f32 1.0, %v1775
      %v1777 = vmul.f32 %v1774, %v1776
      %v1778 = vadd.f32 %v1774, %v1777
      %vm1779 = vweird.f32 %v1616
      %vm1780 = vweird.f32 %v1774
      %vm1781 = vmor %vm1779, %vm1780
      %v1782 = vsel %vm1781, %v1774, %v1778
      %v1783 = vand.u32 2147483647, %v1616
      %vm1784 = vcmp.eq.f32.partialorder %v1783, 8.507059e+37
      %v1785 = vand.u32 %v1616, 2147483648
      %v1786 = vor.u32 1.1754944e-38, %v1785
      %v1787 = vsel %vm1784, %v1786, %v1782
      %v1788 = vmul.f32 1.0, %v1787
      %v1789 = vrcp.pop %v1617
      %v1790 = vmul.f32 %v1617, %v1789
      %v1791 = vsub.f32 1.0, %v1790
      %v1792 = vmul.f32 %v1789, %v1791
      %v1793 = vadd.f32 %v1789, %v1792
      %vm1794 = vweird.f32 %v1617
      %vm1795 = vweird.f32 %v1789
      %vm1796 = vmor %vm1794, %vm1795
      %v1797 = vsel %vm1796, %v1789, %v1793
      %v1798 = vand.u32 2147483647, %v1617
      %vm1799 = vcmp.eq.f32.partialorder %v1798, 8.507059e+37
      %v1800 = vand.u32 %v1617, 2147483648
      %v1801 = vor.u32 1.1754944e-38, %v1800
      %v1802 = vsel %vm1799, %v1801, %v1797
      %v1803 = vmul.f32 1.0, %v1802
      %v1804 = vrcp.pop %v1618
      %v1805 = vmul.f32 %v1618, %v1804
      %v1806 = vsub.f32 1.0, %v1805
      %v1807 = vmul.f32 %v1804, %v1806
      %v1808 = vadd.f32 %v1804, %v1807
      %vm1809 = vweird.f32 %v1618
      %vm1810 = vweird.f32 %v1804
      %vm1811 = vmor %vm1809, %vm1810
      %v1812 = vsel %vm1811, %v1804, %v1808
      %v1813 = vand.u32 2147483647, %v1618
      %vm1814 = vcmp.eq.f32.partialorder %v1813, 8.507059e+37
      %v1815 = vand.u32 %v1618, 2147483648
      %v1816 = vor.u32 1.1754944e-38, %v1815
      %v1817 = vsel %vm1814, %v1816, %v1812
      %v1818 = vmul.f32 1.0, %v1817
      %v1819 = vrcp.pop %v1619
      %v1820 = vmul.f32 %v1619, %v1819
      %v1821 = vsub.f32 1.0, %v1820
      %v1822 = vmul.f32 %v1819, %v1821
      %v1823 = vadd.f32 %v1819, %v1822
      %vm1824 = vweird.f32 %v1619
      %vm1825 = vweird.f32 %v1819
      %vm1826 = vmor %vm1824, %vm1825
      %v1827 = vsel %vm1826, %v1819, %v1823
      %v1828 = vand.u32 2147483647, %v1619
      %vm1829 = vcmp.eq.f32.partialorder %v1828, 8.507059e+37
      %v1830 = vand.u32 %v1619, 2147483648
      %v1831 = vor.u32 1.1754944e-38, %v1830
      %v1832 = vsel %vm1829, %v1831, %v1827
      %v1833 = vmul.f32 1.0, %v1832
      %v1834 = vrcp.pop %v1620
      %v1835 = vmul.f32 %v1620, %v1834
      %v1836 = vsub.f32 1.0, %v1835
      %v1837 = vmul.f32 %v1834, %v1836
      %v1838 = vadd.f32 %v1834, %v1837
      %vm1839 = vweird.f32 %v1620
      %vm1840 = vweird.f32 %v1834
      %vm1841 = vmor %vm1839, %vm1840
      %v1842 = vsel %vm1841, %v1834, %v1838
      %v1843 = vand.u32 2147483647, %v1620
      %vm1844 = vcmp.eq.f32.partialorder %v1843, 8.507059e+37
      %v1845 = vand.u32 %v1620, 2147483648
      %v1846 = vor.u32 1.1754944e-38, %v1845
      %v1847 = vsel %vm1844, %v1846, %v1842
      %v1848 = vmul.f32 1.0, %v1847
      %v1849 = vrcp.pop %v1621
      %v1850 = vmul.f32 %v1621, %v1849
      %v1851 = vsub.f32 1.0, %v1850
      %v1852 = vmul.f32 %v1849, %v1851
      %v1853 = vadd.f32 %v1849, %v1852
      %vm1854 = vweird.f32 %v1621
      %vm1855 = vweird.f32 %v1849
      %vm1856 = vmor %vm1854, %vm1855
      %v1857 = vsel %vm1856, %v1849, %v1853
      %v1858 = vand.u32 2147483647, %v1621
      %vm1859 = vcmp.eq.f32.partialorder %v1858, 8.507059e+37
      %v1860 = vand.u32 %v1621, 2147483648
      %v1861 = vor.u32 1.1754944e-38, %v1860
      %v1862 = vsel %vm1859, %v1861, %v1857
      %v1863 = vmul.f32 1.0, %v1862
      %v1864 = vrcp.pop %v1622
      %v1865 = vmul.f32 %v1622, %v1864
      %v1866 = vsub.f32 1.0, %v1865
      %v1867 = vmul.f32 %v1864, %v1866
      %v1868 = vadd.f32 %v1864, %v1867
      %vm1869 = vweird.f32 %v1622
      %vm1870 = vweird.f32 %v1864
      %vm1871 = vmor %vm1869, %vm1870
      %v1872 = vsel %vm1871, %v1864, %v1868
      %v1873 = vand.u32 2147483647, %v1622
      %vm1874 = vcmp.eq.f32.partialorder %v1873, 8.507059e+37
      %v1875 = vand.u32 %v1622, 2147483648
      %v1876 = vor.u32 1.1754944e-38, %v1875
      %v1877 = vsel %vm1874, %v1876, %v1872
      %v1878 = vmul.f32 1.0, %v1877
      %v1879 = vrcp.pop %v1623
      %v1880 = vmul.f32 %v1623, %v1879
      %v1881 = vsub.f32 1.0, %v1880
      %v1882 = vmul.f32 %v1879, %v1881
      %v1883 = vadd.f32 %v1879, %v1882
      %vm1884 = vweird.f32 %v1623
      %vm1885 = vweird.f32 %v1879
      %vm1886 = vmor %vm1884, %vm1885
      %v1887 = vsel %vm1886, %v1879, %v1883
      %v1888 = vand.u32 2147483647, %v1623
      %vm1889 = vcmp.eq.f32.partialorder %v1888, 8.507059e+37
      %v1890 = vand.u32 %v1623, 2147483648
      %v1891 = vor.u32 1.1754944e-38, %v1890
      %v1892 = vsel %vm1889, %v1891, %v1887
      %v1893 = vmul.f32 1.0, %v1892
      %v1894 = vrcp.pop %v1624
      %v1895 = vmul.f32 %v1624, %v1894
      %v1896 = vsub.f32 1.0, %v1895
      %v1897 = vmul.f32 %v1894, %v1896
      %v1898 = vadd.f32 %v1894, %v1897
      %vm1899 = vweird.f32 %v1624
      %vm1900 = vweird.f32 %v1894
      %vm1901 = vmor %vm1899, %vm1900
      %v1902 = vsel %vm1901, %v1894, %v1898
      %v1903 = vand.u32 2147483647, %v1624
      %vm1904 = vcmp.eq.f32.partialorder %v1903, 8.507059e+37
      %v1905 = vand.u32 %v1624, 2147483648
      %v1906 = vor.u32 1.1754944e-38, %v1905
      %v1907 = vsel %vm1904, %v1906, %v1902
      %v1908 = vmul.f32 1.0, %v1907
      %v1909 = vrcp.pop %v1625
      %v1910 = vmul.f32 %v1625, %v1909
      %v1911 = vsub.f32 1.0, %v1910
      %v1912 = vmul.f32 %v1909, %v1911
      %v1913 = vadd.f32 %v1909, %v1912
      %vm1914 = vweird.f32 %v1625
      %vm1915 = vweird.f32 %v1909
      %vm1916 = vmor %vm1914, %vm1915
      %v1917 = vsel %vm1916, %v1909, %v1913
      %v1918 = vand.u32 2147483647, %v1625
      %vm1919 = vcmp.eq.f32.partialorder %v1918, 8.507059e+37
      %v1920 = vand.u32 %v1625, 2147483648
      %v1921 = vor.u32 1.1754944e-38, %v1920
      %v1922 = vsel %vm1919, %v1921, %v1917
      %v1923 = vmul.f32 1.0, %v1922
      %v1924 = vrcp.pop %v1626
      %v1925 = vmul.f32 %v1626, %v1924
      %v1926 = vsub.f32 1.0, %v1925
      %v1927 = vmul.f32 %v1924, %v1926
      %v1928 = vadd.f32 %v1924, %v1927
      %vm1929 = vweird.f32 %v1626
      %vm1930 = vweird.f32 %v1924
      %vm1931 = vmor %vm1929, %vm1930
      %v1932 = vsel %vm1931, %v1924, %v1928
      %v1933 = vand.u32 2147483647, %v1626
      %vm1934 = vcmp.eq.f32.partialorder %v1933, 8.507059e+37
      %v1935 = vand.u32 %v1626, 2147483648
      %v1936 = vor.u32 1.1754944e-38, %v1935
      %v1937 = vsel %vm1934, %v1936, %v1932
      %v1938 = vmul.f32 1.0, %v1937
      %v1939 = vrcp.pop %v1627
      %v1940 = vmul.f32 %v1627, %v1939
      %v1941 = vsub.f32 1.0, %v1940
      %v1942 = vmul.f32 %v1939, %v1941
      %v1943 = vadd.f32 %v1939, %v1942
      %vm1944 = vweird.f32 %v1627
      %vm1945 = vweird.f32 %v1939
      %vm1946 = vmor %vm1944, %vm1945
      %v1947 = vsel %vm1946, %v1939, %v1943
      %v1948 = vand.u32 2147483647, %v1627
      %vm1949 = vcmp.eq.f32.partialorder %v1948, 8.507059e+37
      %v1950 = vand.u32 %v1627, 2147483648
      %v1951 = vor.u32 1.1754944e-38, %v1950
      %v1952 = vsel %vm1949, %v1951, %v1947
      %v1953 = vmul.f32 1.0, %v1952
      %v1954 = vrcp.pop %v1628
      %v1955 = vmul.f32 %v1628, %v1954
      %v1956 = vsub.f32 1.0, %v1955
      %v1957 = vmul.f32 %v1954, %v1956
      %v1958 = vadd.f32 %v1954, %v1957
      %vm1959 = vweird.f32 %v1628
      %vm1960 = vweird.f32 %v1954
      %vm1961 = vmor %vm1959, %vm1960
      %v1962 = vsel %vm1961, %v1954, %v1958
      %v1963 = vand.u32 2147483647, %v1628
      %vm1964 = vcmp.eq.f32.partialorder %v1963, 8.507059e+37
      %v1965 = vand.u32 %v1628, 2147483648
      %v1966 = vor.u32 1.1754944e-38, %v1965
      %v1967 = vsel %vm1964, %v1966, %v1962
      %v1968 = vmul.f32 1.0, %v1967
      %v1969 = vrcp.pop %v1629
      %v1970 = vmul.f32 %v1629, %v1969
      %v1971 = vsub.f32 1.0, %v1970
      %v1972 = vmul.f32 %v1969, %v1971
      %v1973 = vadd.f32 %v1969, %v1972
      %vm1974 = vweird.f32 %v1629
      %vm1975 = vweird.f32 %v1969
      %vm1976 = vmor %vm1974, %vm1975
      %v1977 = vsel %vm1976, %v1969, %v1973
      %v1978 = vand.u32 2147483647, %v1629
      %vm1979 = vcmp.eq.f32.partialorder %v1978, 8.507059e+37
      %v1980 = vand.u32 %v1629, 2147483648
      %v1981 = vor.u32 1.1754944e-38, %v1980
      %v1982 = vsel %vm1979, %v1981, %v1977
      %v1983 = vmul.f32 1.0, %v1982
      %v1984 = vrcp.pop %v1630
      %v1985 = vmul.f32 %v1630, %v1984
      %v1986 = vsub.f32 1.0, %v1985
      %v1987 = vmul.f32 %v1984, %v1986
      %v1988 = vadd.f32 %v1984, %v1987
      %vm1989 = vweird.f32 %v1630
      %vm1990 = vweird.f32 %v1984
      %vm1991 = vmor %vm1989, %vm1990
      %v1992 = vsel %vm1991, %v1984, %v1988
      %v1993 = vand.u32 2147483647, %v1630
      %vm1994 = vcmp.eq.f32.partialorder %v1993, 8.507059e+37
      %v1995 = vand.u32 %v1630, 2147483648
      %v1996 = vor.u32 1.1754944e-38, %v1995
      %v1997 = vsel %vm1994, %v1996, %v1992
      %v1998 = vmul.f32 1.0, %v1997
      %v1999 = vrcp.pop %v1631
      %v2000 = vmul.f32 %v1631, %v1999
      %v2001 = vsub.f32 1.0, %v2000
      %v2002 = vmul.f32 %v1999, %v2001
      %v2003 = vadd.f32 %v1999, %v2002
      %vm2004 = vweird.f32 %v1631
      %vm2005 = vweird.f32 %v1999
      %vm2006 = vmor %vm2004, %vm2005
      %v2007 = vsel %vm2006, %v1999, %v2003
      %v2008 = vand.u32 2147483647, %v1631
      %vm2009 = vcmp.eq.f32.partialorder %v2008, 8.507059e+37
      %v2010 = vand.u32 %v1631, 2147483648
      %v2011 = vor.u32 1.1754944e-38, %v2010
      %v2012 = vsel %vm2009, %v2011, %v2007
      %v2013 = vmul.f32 1.0, %v2012
      %v2014 = vrcp.pop %v1632
      %v2015 = vmul.f32 %v1632, %v2014
      %v2016 = vsub.f32 1.0, %v2015
      %v2017 = vmul.f32 %v2014, %v2016
      %v2018 = vadd.f32 %v2014, %v2017
      %vm2019 = vweird.f32 %v1632
      %vm2020 = vweird.f32 %v2014
      %vm2021 = vmor %vm2019, %vm2020
      %v2022 = vsel %vm2021, %v2014, %v2018
      %v2023 = vand.u32 2147483647, %v1632
      %vm2024 = vcmp.eq.f32.partialorder %v2023, 8.507059e+37
      %v2025 = vand.u32 %v1632, 2147483648
      %v2026 = vor.u32 1.1754944e-38, %v2025
      %v2027 = vsel %vm2024, %v2026, %v2022
      %v2028 = vmul.f32 1.0, %v2027
      %v2029 = vrcp.pop %v1633
      %v2030 = vmul.f32 %v1633, %v2029
      %v2031 = vsub.f32 1.0, %v2030
      %v2032 = vmul.f32 %v2029, %v2031
      %v2033 = vadd.f32 %v2029, %v2032
      %vm2034 = vweird.f32 %v1633
      %vm2035 = vweird.f32 %v2029
      %vm2036 = vmor %vm2034, %vm2035
      %v2037 = vsel %vm2036, %v2029, %v2033
      %v2038 = vand.u32 2147483647, %v1633
      %vm2039 = vcmp.eq.f32.partialorder %v2038, 8.507059e+37
      %v2040 = vand.u32 %v1633, 2147483648
      %v2041 = vor.u32 1.1754944e-38, %v2040
      %v2042 = vsel %vm2039, %v2041, %v2037
      %v2043 = vmul.f32 1.0, %v2042
      %v2044 = vrcp.pop %v1634
      %v2045 = vmul.f32 %v1634, %v2044
      %v2046 = vsub.f32 1.0, %v2045
      %v2047 = vmul.f32 %v2044, %v2046
      %v2048 = vadd.f32 %v2044, %v2047
      %vm2049 = vweird.f32 %v1634
      %vm2050 = vweird.f32 %v2044
      %vm2051 = vmor %vm2049, %vm2050
      %v2052 = vsel %vm2051, %v2044, %v2048
      %v2053 = vand.u32 2147483647, %v1634
      %vm2054 = vcmp.eq.f32.partialorder %v2053, 8.507059e+37
      %v2055 = vand.u32 %v1634, 2147483648
      %v2056 = vor.u32 1.1754944e-38, %v2055
      %v2057 = vsel %vm2054, %v2056, %v2052
      %v2058 = vmul.f32 1.0, %v2057
      %v2059 = vrcp.pop %v1635
      %v2060 = vmul.f32 %v1635, %v2059
      %v2061 = vsub.f32 1.0, %v2060
      %v2062 = vmul.f32 %v2059, %v2061
      %v2063 = vadd.f32 %v2059, %v2062
      %vm2064 = vweird.f32 %v1635
      %vm2065 = vweird.f32 %v2059
      %vm2066 = vmor %vm2064, %vm2065
      %v2067 = vsel %vm2066, %v2059, %v2063
      %v2068 = vand.u32 2147483647, %v1635
      %vm2069 = vcmp.eq.f32.partialorder %v2068, 8.507059e+37
      %v2070 = vand.u32 %v1635, 2147483648
      %v2071 = vor.u32 1.1754944e-38, %v2070
      %v2072 = vsel %vm2069, %v2071, %v2067
      %v2073 = vmul.f32 1.0, %v2072
      %v2074 = vrcp.pop %v1636
      %v2075 = vmul.f32 %v1636, %v2074
      %v2076 = vsub.f32 1.0, %v2075
      %v2077 = vmul.f32 %v2074, %v2076
      %v2078 = vadd.f32 %v2074, %v2077
      %vm2079 = vweird.f32 %v1636
      %vm2080 = vweird.f32 %v2074
      %vm2081 = vmor %vm2079, %vm2080
      %v2082 = vsel %vm2081, %v2074, %v2078
      %v2083 = vand.u32 2147483647, %v1636
      %vm2084 = vcmp.eq.f32.partialorder %v2083, 8.507059e+37
      %v2085 = vand.u32 %v1636, 2147483648
      %v2086 = vor.u32 1.1754944e-38, %v2085
      %v2087 = vsel %vm2084, %v2086, %v2082
      %v2088 = vmul.f32 1.0, %v2087
      %v2089 = vrcp.pop %v1637
      %v2090 = vmul.f32 %v1637, %v2089
      %v2091 = vsub.f32 1.0, %v2090
      %v2092 = vmul.f32 %v2089, %v2091
      %v2093 = vadd.f32 %v2089, %v2092
      %vm2094 = vweird.f32 %v1637
      %vm2095 = vweird.f32 %v2089
      %vm2096 = vmor %vm2094, %vm2095
      %v2097 = vsel %vm2096, %v2089, %v2093
      %v2098 = vand.u32 2147483647, %v1637
      %vm2099 = vcmp.eq.f32.partialorder %v2098, 8.507059e+37
      %v2100 = vand.u32 %v1637, 2147483648
      %v2101 = vor.u32 1.1754944e-38, %v2100
      %v2102 = vsel %vm2099, %v2101, %v2097
      %v2103 = vmul.f32 1.0, %v2102
      %v2104 = vrcp.pop %v1638
      %v2105 = vmul.f32 %v1638, %v2104
      %v2106 = vsub.f32 1.0, %v2105
      %v2107 = vmul.f32 %v2104, %v2106
      %v2108 = vadd.f32 %v2104, %v2107
      %vm2109 = vweird.f32 %v1638
      %vm2110 = vweird.f32 %v2104
      %vm2111 = vmor %vm2109, %vm2110
      %v2112 = vsel %vm2111, %v2104, %v2108
      %v2113 = vand.u32 2147483647, %v1638
      %vm2114 = vcmp.eq.f32.partialorder %v2113, 8.507059e+37
      %v2115 = vand.u32 %v1638, 2147483648
      %v2116 = vor.u32 1.1754944e-38, %v2115
      %v2117 = vsel %vm2114, %v2116, %v2112
      %v2118 = vmul.f32 1.0, %v2117
      %v2119 = vmul.f32 %v1653, 2.0
      %v2120 = vmul.f32 %v1668, 2.0
      %v2121 = vmul.f32 %v1683, 2.0
      %v2122 = vmul.f32 %v1698, 2.0
      %v2123 = vmul.f32 %v1713, 2.0
      %v2124 = vmul.f32 %v1728, 2.0
      %v2125 = vmul.f32 %v1743, 2.0
      %v2126 = vmul.f32 %v1758, 2.0
      %v2127 = vmul.f32 %v1773, 2.0
      %v2128 = vmul.f32 %v1788, 2.0
      %v2129 = vmul.f32 %v1803, 2.0
      %v2130 = vmul.f32 %v1818, 2.0
      %v2131 = vmul.f32 %v1833, 2.0
      %v2132 = vmul.f32 %v1848, 2.0
      %v2133 = vmul.f32 %v1863, 2.0
      %v2134 = vmul.f32 %v1878, 2.0
      %v2135 = vmul.f32 %v1893, 2.0
      %v2136 = vmul.f32 %v1908, 2.0
      %v2137 = vmul.f32 %v1923, 2.0
      %v2138 = vmul.f32 %v1938, 2.0
      %v2139 = vmul.f32 %v1953, 2.0
      %v2140 = vmul.f32 %v1968, 2.0
      %v2141 = vmul.f32 %v1983, 2.0
      %v2142 = vmul.f32 %v1998, 2.0
      %v2143 = vmul.f32 %v2013, 2.0
      %v2144 = vmul.f32 %v2028, 2.0
      %v2145 = vmul.f32 %v2043, 2.0
      %v2146 = vmul.f32 %v2058, 2.0
      %v2147 = vmul.f32 %v2073, 2.0
      %v2148 = vmul.f32 %v2088, 2.0
      %v2149 = vmul.f32 %v2103, 2.0
      %v2150 = vmul.f32 %v2118, 2.0
      %v2151 = vsub.f32 %v2119, 0.5
      %v2152 = vsub.f32 %v2120, 0.5
      %v2153 = vsub.f32 %v2121, 0.5
      %v2154 = vsub.f32 %v2122, 0.5
      %v2155 = vsub.f32 %v2123, 0.5
      %v2156 = vsub.f32 %v2124, 0.5
      %v2157 = vsub.f32 %v2125, 0.5
      %v2158 = vsub.f32 %v2126, 0.5
      %v2159 = vsub.f32 %v2127, 0.5
      %v2160 = vsub.f32 %v2128, 0.5
      %v2161 = vsub.f32 %v2129, 0.5
      %v2162 = vsub.f32 %v2130, 0.5
      %v2163 = vsub.f32 %v2131, 0.5
      %v2164 = vsub.f32 %v2132, 0.5
      %v2165 = vsub.f32 %v2133, 0.5
      %v2166 = vsub.f32 %v2134, 0.5
      %v2167 = vsub.f32 %v2135, 0.5
      %v2168 = vsub.f32 %v2136, 0.5
      %v2169 = vsub.f32 %v2137, 0.5
      %v2170 = vsub.f32 %v2138, 0.5
      %v2171 = vsub.f32 %v2139, 0.5
      %v2172 = vsub.f32 %v2140, 0.5
      %v2173 = vsub.f32 %v2141, 0.5
      %v2174 = vsub.f32 %v2142, 0.5
      %v2175 = vsub.f32 %v2143, 0.5
      %v2176 = vsub.f32 %v2144, 0.5
      %v2177 = vsub.f32 %v2145, 0.5
      %v2178 = vsub.f32 %v2146, 0.5
      %v2179 = vsub.f32 %v2147, 0.5
      %v2180 = vsub.f32 %v2148, 0.5
      %v2181 = vsub.f32 %v2149, 0.5
      %v2182 = vsub.f32 %v2150, 0.5
      %v2183 = vmul.f32 %v2119, %v2119
      %v2184 = vmul.f32 %v2120, %v2120
      %v2185 = vmul.f32 %v2121, %v2121
      %v2186 = vmul.f32 %v2122, %v2122
      %v2187 = vmul.f32 %v2123, %v2123
      %v2188 = vmul.f32 %v2124, %v2124
      %v2189 = vmul.f32 %v2125, %v2125
      %v2190 = vmul.f32 %v2126, %v2126
      %v2191 = vmul.f32 %v2127, %v2127
      %v2192 = vmul.f32 %v2128, %v2128
      %v2193 = vmul.f32 %v2129, %v2129
      %v2194 = vmul.f32 %v2130, %v2130
      %v2195 = vmul.f32 %v2131, %v2131
      %v2196 = vmul.f32 %v2132, %v2132
      %v2197 = vmul.f32 %v2133, %v2133
      %v2198 = vmul.f32 %v2134, %v2134
      %v2199 = vmul.f32 %v2135, %v2135
      %v2200 = vmul.f32 %v2136, %v2136
      %v2201 = vmul.f32 %v2137, %v2137
      %v2202 = vmul.f32 %v2138, %v2138
      %v2203 = vmul.f32 %v2139, %v2139
      %v2204 = vmul.f32 %v2140, %v2140
      %v2205 = vmul.f32 %v2141, %v2141
      %v2206 = vmul.f32 %v2142, %v2142
      %v2207 = vmul.f32 %v2143, %v2143
      %v2208 = vmul.f32 %v2144, %v2144
      %v2209 = vmul.f32 %v2145, %v2145
      %v2210 = vmul.f32 %v2146, %v2146
      %v2211 = vmul.f32 %v2147, %v2147
      %v2212 = vmul.f32 %v2148, %v2148
      %v2213 = vmul.f32 %v2149, %v2149
      %v2214 = vmul.f32 %v2150, %v2150
      %s2215 = scalar_lea.vmem %s3, 1
      %v2216 = vld [vmem:[%s2215] sm:$0x1]
      %v2218 = vperm.slane %v2216, 0
      %v2220 = vmul.f32 %v2183, %v2218
      %v2221 = vmul.f32 %v2184, %v2218
      %v2222 = vmul.f32 %v2185, %v2218
      %v2223 = vmul.f32 %v2186, %v2218
      %v2224 = vmul.f32 %v2187, %v2218
      %v2225 = vmul.f32 %v2188, %v2218
      %v2226 = vmul.f32 %v2189, %v2218
      %v2227 = vmul.f32 %v2190, %v2218
      %v2228 = vmul.f32 %v2191, %v2218
      %v2229 = vmul.f32 %v2192, %v2218
      %v2230 = vmul.f32 %v2193, %v2218
      %v2231 = vmul.f32 %v2194, %v2218
      %v2232 = vmul.f32 %v2195, %v2218
      %v2233 = vmul.f32 %v2196, %v2218
      %v2234 = vmul.f32 %v2197, %v2218
      %v2235 = vmul.f32 %v2198, %v2218
      %v2236 = vmul.f32 %v2199, %v2218
      %v2237 = vmul.f32 %v2200, %v2218
      %v2238 = vmul.f32 %v2201, %v2218
      %v2239 = vmul.f32 %v2202, %v2218
      %v2240 = vmul.f32 %v2203, %v2218
      %v2241 = vmul.f32 %v2204, %v2218
      %v2242 = vmul.f32 %v2205, %v2218
      %v2243 = vmul.f32 %v2206, %v2218
      %v2244 = vmul.f32 %v2207, %v2218
      %v2245 = vmul.f32 %v2208, %v2218
      %v2246 = vmul.f32 %v2209, %v2218
      %v2247 = vmul.f32 %v2210, %v2218
      %v2248 = vmul.f32 %v2211, %v2218
      %v2249 = vmul.f32 %v2212, %v2218
      %v2250 = vmul.f32 %v2213, %v2218
      %v2251 = vmul.f32 %v2214, %v2218
      %v2252 = vsel %vm1192, %v2151, %v2220
      %v2253 = vsel %vm1192, %v2152, %v2221
      %v2254 = vsel %vm1192, %v2153, %v2222
      %v2255 = vsel %vm1192, %v2154, %v2223
      %v2256 = vsel %vm1192, %v2155, %v2224
      %v2257 = vsel %vm1192, %v2156, %v2225
      %v2258 = vsel %vm1192, %v2157, %v2226
      %v2259 = vsel %vm1192, %v2158, %v2227
      %v2260 = vsel %vm1192, %v2159, %v2228
      %v2261 = vsel %vm1192, %v2160, %v2229
      %v2262 = vsel %vm1192, %v2161, %v2230
      %v2263 = vsel %vm1192, %v2162, %v2231
      %v2264 = vsel %vm1192, %v2163, %v2232
      %v2265 = vsel %vm1192, %v2164, %v2233
      %v2266 = vsel %vm1192, %v2165, %v2234
      %v2267 = vsel %vm1192, %v2166, %v2235
      %v2268 = vsel %vm1192, %v2167, %v2236
      %v2269 = vsel %vm1192, %v2168, %v2237
      %v2270 = vsel %vm1192, %v2169, %v2238
      %v2271 = vsel %vm1192, %v2170, %v2239
      %v2272 = vsel %vm1192, %v2171, %v2240
      %v2273 = vsel %vm1192, %v2172, %v2241
      %v2274 = vsel %vm1192, %v2173, %v2242
      %v2275 = vsel %vm1192, %v2174, %v2243
      %v2276 = vsel %vm1192, %v2175, %v2244
      %v2277 = vsel %vm1192, %v2176, %v2245
      %v2278 = vsel %vm1192, %v2177, %v2246
      %v2279 = vsel %vm1192, %v2178, %v2247
      %v2280 = vsel %vm1192, %v2179, %v2248
      %v2281 = vsel %vm1192, %v2180, %v2249
      %v2282 = vsel %vm1192, %v2181, %v2250
      %v2283 = vsel %vm1192, %v2182, %v2251
      %2284 = vst.msk [vmem:[%s1478] sm:$0xff] %vm1325, %v2252
      %2285 = vst.msk [vmem:[%s1478 + $0x8] sm:$0xff] %vm1325, %v2253
      %2286 = vst.msk [vmem:[%s1478 + $0x10] sm:$0xff] %vm1325, %v2254
      %2287 = vst.msk [vmem:[%s1478 + $0x18] sm:$0xff] %vm1325, %v2255
      %2288 = vst.msk [vmem:[%s1478 + $0x20] sm:$0xff] %vm1325, %v2256
      %2289 = vst.msk [vmem:[%s1478 + $0x28] sm:$0xff] %vm1325, %v2257
      %2290 = vst.msk [vmem:[%s1478 + $0x30] sm:$0xff] %vm1325, %v2258
      %2291 = vst.msk [vmem:[%s1478 + $0x38] sm:$0xff] %vm1325, %v2259
      %2292 = vst.msk [vmem:[%s1478 + $0x40] sm:$0xff] %vm1325, %v2260
      %2293 = vst.msk [vmem:[%s1478 + $0x48] sm:$0xff] %vm1325, %v2261
      %2294 = vst.msk [vmem:[%s1478 + $0x50] sm:$0xff] %vm1325, %v2262
      %2295 = vst.msk [vmem:[%s1478 + $0x58] sm:$0xff] %vm1325, %v2263
      %2296 = vst.msk [vmem:[%s1478 + $0x60] sm:$0xff] %vm1325, %v2264
      %2297 = vst.msk [vmem:[%s1478 + $0x68] sm:$0xff] %vm1325, %v2265
      %2298 = vst.msk [vmem:[%s1478 + $0x70] sm:$0xff] %vm1325, %v2266
      %2299 = vst.msk [vmem:[%s1478 + $0x78] sm:$0xff] %vm1325, %v2267
      %2300 = vst.msk [vmem:[%s1478 + $0x80] sm:$0xff] %vm1325, %v2268
      %2301 = vst.msk [vmem:[%s1478 + $0x88] sm:$0xff] %vm1325, %v2269
      %2302 = vst.msk [vmem:[%s1478 + $0x90] sm:$0xff] %vm1325, %v2270
      %2303 = vst.msk [vmem:[%s1478 + $0x98] sm:$0xff] %vm1325, %v2271
      %2304 = vst.msk [vmem:[%s1478 + $0xa0] sm:$0xff] %vm1325, %v2272
      %2305 = vst.msk [vmem:[%s1478 + $0xa8] sm:$0xff] %vm1325, %v2273
      %2306 = vst.msk [vmem:[%s1478 + $0xb0] sm:$0xff] %vm1325, %v2274
      %2307 = vst.msk [vmem:[%s1478 + $0xb8] sm:$0xff] %vm1325, %v2275
      %2308 = vst.msk [vmem:[%s1478 + $0xc0] sm:$0xff] %vm1325, %v2276
      %2309 = vst.msk [vmem:[%s1478 + $0xc8] sm:$0xff] %vm1325, %v2277
      %2310 = vst.msk [vmem:[%s1478 + $0xd0] sm:$0xff] %vm1325, %v2278
      %2311 = vst.msk [vmem:[%s1478 + $0xd8] sm:$0xff] %vm1325, %v2279
      %2312 = vst.msk [vmem:[%s1478 + $0xe0] sm:$0xff] %vm1325, %v2280
      %2313 = vst.msk [vmem:[%s1478 + $0xe8] sm:$0xff] %vm1325, %v2281
      %2314 = vst.msk [vmem:[%s1478 + $0xf0] sm:$0xff] %vm1325, %v2282
      %2315 = vst.msk [vmem:[%s1478 + $0xf8] sm:$0xff] %vm1325, %v2283
      %s2316 = scalar_lea.vmem %s1, 16
      %v2317 = vld [vmem:[%s2316] sm:$0xff]
      %s2318 = scalar_lea.vmem %s2, 2
      %v2319 = vld [vmem:[%s2318] sm:$0x1]
      %v2321 = vperm.slane %v2319, 0
      %2323 = vmatpush.msra.mxu0 0.0
      %2324 = vmatpush.msra.mxu0 0.0
      %2325 = vmatpush.msra.mxu0 0.0
      %2326 = vmatpush.msra.mxu0 0.0
      %2327 = vmatpush.msra.mxu0 0.0
      %2328 = vmatpush.msra.mxu0 0.0
      %2329 = vmatpush.msra.mxu0 0.0
      %2330 = vmatpush.msra.mxu0 0.0
      %2331 = vmatpush.msra.mxu0 0.0
      %2332 = vmatpush.msra.mxu0 0.0
      %2333 = vmatpush.msra.mxu0 0.0
      %2334 = vmatpush.msra.mxu0 0.0
      %2335 = vmatpush.msra.mxu0 0.0
      %2336 = vmatpush.msra.mxu0 0.0
      %2337 = vmatpush.msra.mxu0 0.0
      %2338 = vmatpush.msra.mxu0 %v2317
      %2339 = vmatmul.f32.gmra.mxu0 %v310
      %v2340 = vpop.f32.mrf.mxu0
      %v2341 = vadd.f32 %v2321, %v2340
      %2342 = vmatmul.f32.gmra.mxu0 %v313
      %v2343 = vpop.f32.mrf.mxu0
      %v2344 = vadd.f32 %v2321, %v2343
      %2345 = vmatmul.f32.gmra.mxu0 %v316
      %v2346 = vpop.f32.mrf.mxu0
      %v2347 = vadd.f32 %v2321, %v2346
      %2348 = vmatmul.f32.gmra.mxu0 %v319
      %v2349 = vpop.f32.mrf.mxu0
      %v2350 = vadd.f32 %v2321, %v2349
      %2351 = vmatmul.f32.gmra.mxu0 %v322
      %v2352 = vpop.f32.mrf.mxu0
      %v2353 = vadd.f32 %v2321, %v2352
      %2354 = vmatmul.f32.gmra.mxu0 %v325
      %v2355 = vpop.f32.mrf.mxu0
      %v2356 = vadd.f32 %v2321, %v2355
      %2357 = vmatmul.f32.gmra.mxu0 %v328
      %v2358 = vpop.f32.mrf.mxu0
      %v2359 = vadd.f32 %v2321, %v2358
      %2360 = vmatmul.f32.gmra.mxu0 %v331
      %v2361 = vpop.f32.mrf.mxu0
      %v2362 = vadd.f32 %v2321, %v2361
      %2363 = vmatmul.f32.gmra.mxu0 %v334
      %v2364 = vpop.f32.mrf.mxu0
      %v2365 = vadd.f32 %v2321, %v2364
      %2366 = vmatmul.f32.gmra.mxu0 %v337
      %v2367 = vpop.f32.mrf.mxu0
      %v2368 = vadd.f32 %v2321, %v2367
      %2369 = vmatmul.f32.gmra.mxu0 %v340
      %v2370 = vpop.f32.mrf.mxu0
      %v2371 = vadd.f32 %v2321, %v2370
      %2372 = vmatmul.f32.gmra.mxu0 %v343
      %v2373 = vpop.f32.mrf.mxu0
      %v2374 = vadd.f32 %v2321, %v2373
      %2375 = vmatmul.f32.gmra.mxu0 %v346
      %v2376 = vpop.f32.mrf.mxu0
      %v2377 = vadd.f32 %v2321, %v2376
      %2378 = vmatmul.f32.gmra.mxu0 %v349
      %v2379 = vpop.f32.mrf.mxu0
      %v2380 = vadd.f32 %v2321, %v2379
      %2381 = vmatmul.f32.gmra.mxu0 %v352
      %v2382 = vpop.f32.mrf.mxu0
      %v2383 = vadd.f32 %v2321, %v2382
      %2384 = vmatmul.f32.gmra.mxu0 %v355
      %v2385 = vpop.f32.mrf.mxu0
      %v2386 = vadd.f32 %v2321, %v2385
      %2387 = vmatmul.f32.gmra.mxu0 %v358
      %v2388 = vpop.f32.mrf.mxu0
      %v2389 = vadd.f32 %v2321, %v2388
      %2390 = vmatmul.f32.gmra.mxu0 %v361
      %v2391 = vpop.f32.mrf.mxu0
      %v2392 = vadd.f32 %v2321, %v2391
      %2393 = vmatmul.f32.gmra.mxu0 %v364
      %v2394 = vpop.f32.mrf.mxu0
      %v2395 = vadd.f32 %v2321, %v2394
      %2396 = vmatmul.f32.gmra.mxu0 %v367
      %v2397 = vpop.f32.mrf.mxu0
      %v2398 = vadd.f32 %v2321, %v2397
      %2399 = vmatmul.f32.gmra.mxu0 %v370
      %v2400 = vpop.f32.mrf.mxu0
      %v2401 = vadd.f32 %v2321, %v2400
      %2402 = vmatmul.f32.gmra.mxu0 %v373
      %v2403 = vpop.f32.mrf.mxu0
      %v2404 = vadd.f32 %v2321, %v2403
      %2405 = vmatmul.f32.gmra.mxu0 %v376
      %v2406 = vpop.f32.mrf.mxu0
      %v2407 = vadd.f32 %v2321, %v2406
      %2408 = vmatmul.f32.gmra.mxu0 %v379
      %v2409 = vpop.f32.mrf.mxu0
      %v2410 = vadd.f32 %v2321, %v2409
      %2411 = vmatmul.f32.gmra.mxu0 %v382
      %v2412 = vpop.f32.mrf.mxu0
      %v2413 = vadd.f32 %v2321, %v2412
      %2414 = vmatmul.f32.gmra.mxu0 %v385
      %v2415 = vpop.f32.mrf.mxu0
      %v2416 = vadd.f32 %v2321, %v2415
      %2417 = vmatmul.f32.gmra.mxu0 %v388
      %v2418 = vpop.f32.mrf.mxu0
      %v2419 = vadd.f32 %v2321, %v2418
      %2420 = vmatmul.f32.gmra.mxu0 %v391
      %v2421 = vpop.f32.mrf.mxu0
      %v2422 = vadd.f32 %v2321, %v2421
      %2423 = vmatmul.f32.gmra.mxu0 %v394
      %v2424 = vpop.f32.mrf.mxu0
      %v2425 = vadd.f32 %v2321, %v2424
      %2426 = vmatmul.f32.gmra.mxu0 %v397
      %v2427 = vpop.f32.mrf.mxu0
      %v2428 = vadd.f32 %v2321, %v2427
      %2429 = vmatmul.f32.gmra.mxu0 %v400
      %v2430 = vpop.f32.mrf.mxu0
      %v2431 = vadd.f32 %v2321, %v2430
      %2432 = vmatmul.f32.gmra.mxu0 %v403
      %v2433 = vpop.f32.mrf.mxu0
      %v2434 = vadd.f32 %v2321, %v2433
      %2435 = vdwg.mxu0
      %s2436 = scalar_lea.vmem %s235, 512
      %2437 = vst.msk [vmem:[%s2436] sm:$0xff] %vm308, %v2341
      %2438 = vst.msk [vmem:[%s2436 + $0x8] sm:$0xff] %vm308, %v2344
      %2439 = vst.msk [vmem:[%s2436 + $0x10] sm:$0xff] %vm308, %v2347
      %2440 = vst.msk [vmem:[%s2436 + $0x18] sm:$0xff] %vm308, %v2350
      %2441 = vst.msk [vmem:[%s2436 + $0x20] sm:$0xff] %vm308, %v2353
      %2442 = vst.msk [vmem:[%s2436 + $0x28] sm:$0xff] %vm308, %v2356
      %2443 = vst.msk [vmem:[%s2436 + $0x30] sm:$0xff] %vm308, %v2359
      %2444 = vst.msk [vmem:[%s2436 + $0x38] sm:$0xff] %vm308, %v2362
      %2445 = vst.msk [vmem:[%s2436 + $0x40] sm:$0xff] %vm308, %v2365
      %2446 = vst.msk [vmem:[%s2436 + $0x48] sm:$0xff] %vm308, %v2368
      %2447 = vst.msk [vmem:[%s2436 + $0x50] sm:$0xff] %vm308, %v2371
      %2448 = vst.msk [vmem:[%s2436 + $0x58] sm:$0xff] %vm308, %v2374
      %2449 = vst.msk [vmem:[%s2436 + $0x60] sm:$0xff] %vm308, %v2377
      %2450 = vst.msk [vmem:[%s2436 + $0x68] sm:$0xff] %vm308, %v2380
      %2451 = vst.msk [vmem:[%s2436 + $0x70] sm:$0xff] %vm308, %v2383
      %2452 = vst.msk [vmem:[%s2436 + $0x78] sm:$0xff] %vm308, %v2386
      %2453 = vst.msk [vmem:[%s2436 + $0x80] sm:$0xff] %vm308, %v2389
      %2454 = vst.msk [vmem:[%s2436 + $0x88] sm:$0xff] %vm308, %v2392
      %2455 = vst.msk [vmem:[%s2436 + $0x90] sm:$0xff] %vm308, %v2395
      %2456 = vst.msk [vmem:[%s2436 + $0x98] sm:$0xff] %vm308, %v2398
      %2457 = vst.msk [vmem:[%s2436 + $0xa0] sm:$0xff] %vm308, %v2401
      %2458 = vst.msk [vmem:[%s2436 + $0xa8] sm:$0xff] %vm308, %v2404
      %2459 = vst.msk [vmem:[%s2436 + $0xb0] sm:$0xff] %vm308, %v2407
      %2460 = vst.msk [vmem:[%s2436 + $0xb8] sm:$0xff] %vm308, %v2410
      %2461 = vst.msk [vmem:[%s2436 + $0xc0] sm:$0xff] %vm308, %v2413
      %2462 = vst.msk [vmem:[%s2436 + $0xc8] sm:$0xff] %vm308, %v2416
      %2463 = vst.msk [vmem:[%s2436 + $0xd0] sm:$0xff] %vm308, %v2419
      %2464 = vst.msk [vmem:[%s2436 + $0xd8] sm:$0xff] %vm308, %v2422
      %2465 = vst.msk [vmem:[%s2436 + $0xe0] sm:$0xff] %vm308, %v2425
      %2466 = vst.msk [vmem:[%s2436 + $0xe8] sm:$0xff] %vm308, %v2428
      %2467 = vst.msk [vmem:[%s2436 + $0xf0] sm:$0xff] %vm308, %v2431
      %2468 = vst.msk [vmem:[%s2436 + $0xf8] sm:$0xff] %vm308, %v2434
      %v2469 = vxor.u32 %v2341, 2147483648
      %v2470 = vxor.u32 %v2344, 2147483648
      %v2471 = vxor.u32 %v2347, 2147483648
      %v2472 = vxor.u32 %v2350, 2147483648
      %v2473 = vxor.u32 %v2353, 2147483648
      %v2474 = vxor.u32 %v2356, 2147483648
      %v2475 = vxor.u32 %v2359, 2147483648
      %v2476 = vxor.u32 %v2362, 2147483648
      %v2477 = vxor.u32 %v2365, 2147483648
      %v2478 = vxor.u32 %v2368, 2147483648
      %v2479 = vxor.u32 %v2371, 2147483648
      %v2480 = vxor.u32 %v2374, 2147483648
      %v2481 = vxor.u32 %v2377, 2147483648
      %v2482 = vxor.u32 %v2380, 2147483648
      %v2483 = vxor.u32 %v2383, 2147483648
      %v2484 = vxor.u32 %v2386, 2147483648
      %v2485 = vxor.u32 %v2389, 2147483648
      %v2486 = vxor.u32 %v2392, 2147483648
      %v2487 = vxor.u32 %v2395, 2147483648
      %v2488 = vxor.u32 %v2398, 2147483648
      %v2489 = vxor.u32 %v2401, 2147483648
      %v2490 = vxor.u32 %v2404, 2147483648
      %v2491 = vxor.u32 %v2407, 2147483648
      %v2492 = vxor.u32 %v2410, 2147483648
      %v2493 = vxor.u32 %v2413, 2147483648
      %v2494 = vxor.u32 %v2416, 2147483648
      %v2495 = vxor.u32 %v2419, 2147483648
      %v2496 = vxor.u32 %v2422, 2147483648
      %v2497 = vxor.u32 %v2425, 2147483648
      %v2498 = vxor.u32 %v2428, 2147483648
      %v2499 = vxor.u32 %v2431, 2147483648
      %v2500 = vxor.u32 %v2434, 2147483648
      %v2501 = vmul.f32 %v2469, 1.442695
      %v2502 = vpow.pop %v2501
      %v2503 = vmul.f32 %v2470, 1.442695
      %v2504 = vpow.pop %v2503
      %v2505 = vmul.f32 %v2471, 1.442695
      %v2506 = vpow.pop %v2505
      %v2507 = vmul.f32 %v2472, 1.442695
      %v2508 = vpow.pop %v2507
      %v2509 = vmul.f32 %v2473, 1.442695
      %v2510 = vpow.pop %v2509
      %v2511 = vmul.f32 %v2474, 1.442695
      %v2512 = vpow.pop %v2511
      %v2513 = vmul.f32 %v2475, 1.442695
      %v2514 = vpow.pop %v2513
      %v2515 = vmul.f32 %v2476, 1.442695
      %v2516 = vpow.pop %v2515
      %v2517 = vmul.f32 %v2477, 1.442695
      %v2518 = vpow.pop %v2517
      %v2519 = vmul.f32 %v2478, 1.442695
      %v2520 = vpow.pop %v2519
      %v2521 = vmul.f32 %v2479, 1.442695
      %v2522 = vpow.pop %v2521
      %v2523 = vmul.f32 %v2480, 1.442695
      %v2524 = vpow.pop %v2523
      %v2525 = vmul.f32 %v2481, 1.442695
      %v2526 = vpow.pop %v2525
      %v2527 = vmul.f32 %v2482, 1.442695
      %v2528 = vpow.pop %v2527
      %v2529 = vmul.f32 %v2483, 1.442695
      %v2530 = vpow.pop %v2529
      %v2531 = vmul.f32 %v2484, 1.442695
      %v2532 = vpow.pop %v2531
      %v2533 = vmul.f32 %v2485, 1.442695
      %v2534 = vpow.pop %v2533
      %v2535 = vmul.f32 %v2486, 1.442695
      %v2536 = vpow.pop %v2535
      %v2537 = vmul.f32 %v2487, 1.442695
      %v2538 = vpow.pop %v2537
      %v2539 = vmul.f32 %v2488, 1.442695
      %v2540 = vpow.pop %v2539
      %v2541 = vmul.f32 %v2489, 1.442695
      %v2542 = vpow.pop %v2541
      %v2543 = vmul.f32 %v2490, 1.442695
      %v2544 = vpow.pop %v2543
      %v2545 = vmul.f32 %v2491, 1.442695
      %v2546 = vpow.pop %v2545
      %v2547 = vmul.f32 %v2492, 1.442695
      %v2548 = vpow.pop %v2547
      %v2549 = vmul.f32 %v2493, 1.442695
      %v2550 = vpow.pop %v2549
      %v2551 = vmul.f32 %v2494, 1.442695
      %v2552 = vpow.pop %v2551
      %v2553 = vmul.f32 %v2495, 1.442695
      %v2554 = vpow.pop %v2553
      %v2555 = vmul.f32 %v2496, 1.442695
      %v2556 = vpow.pop %v2555
      %v2557 = vmul.f32 %v2497, 1.442695
      %v2558 = vpow.pop %v2557
      %v2559 = vmul.f32 %v2498, 1.442695
      %v2560 = vpow.pop %v2559
      %v2561 = vmul.f32 %v2499, 1.442695
      %v2562 = vpow.pop %v2561
      %v2563 = vmul.f32 %v2500, 1.442695
      %v2564 = vpow.pop %v2563
      %v2565 = vadd.f32 %v2502, 1.0
      %v2566 = vadd.f32 %v2504, 1.0
      %v2567 = vadd.f32 %v2506, 1.0
      %v2568 = vadd.f32 %v2508, 1.0
      %v2569 = vadd.f32 %v2510, 1.0
      %v2570 = vadd.f32 %v2512, 1.0
      %v2571 = vadd.f32 %v2514, 1.0
      %v2572 = vadd.f32 %v2516, 1.0
      %v2573 = vadd.f32 %v2518, 1.0
      %v2574 = vadd.f32 %v2520, 1.0
      %v2575 = vadd.f32 %v2522, 1.0
      %v2576 = vadd.f32 %v2524, 1.0
      %v2577 = vadd.f32 %v2526, 1.0
      %v2578 = vadd.f32 %v2528, 1.0
      %v2579 = vadd.f32 %v2530, 1.0
      %v2580 = vadd.f32 %v2532, 1.0
      %v2581 = vadd.f32 %v2534, 1.0
      %v2582 = vadd.f32 %v2536, 1.0
      %v2583 = vadd.f32 %v2538, 1.0
      %v2584 = vadd.f32 %v2540, 1.0
      %v2585 = vadd.f32 %v2542, 1.0
      %v2586 = vadd.f32 %v2544, 1.0
      %v2587 = vadd.f32 %v2546, 1.0
      %v2588 = vadd.f32 %v2548, 1.0
      %v2589 = vadd.f32 %v2550, 1.0
      %v2590 = vadd.f32 %v2552, 1.0
      %v2591 = vadd.f32 %v2554, 1.0
      %v2592 = vadd.f32 %v2556, 1.0
      %v2593 = vadd.f32 %v2558, 1.0
      %v2594 = vadd.f32 %v2560, 1.0
      %v2595 = vadd.f32 %v2562, 1.0
      %v2596 = vadd.f32 %v2564, 1.0
      %v2597 = vrcp.pop %v2565
      %v2598 = vmul.f32 %v2565, %v2597
      %v2599 = vsub.f32 1.0, %v2598
      %v2600 = vmul.f32 %v2597, %v2599
      %v2601 = vadd.f32 %v2597, %v2600
      %vm2602 = vweird.f32 %v2565
      %vm2603 = vweird.f32 %v2597
      %vm2604 = vmor %vm2602, %vm2603
      %v2605 = vsel %vm2604, %v2597, %v2601
      %v2606 = vand.u32 2147483647, %v2565
      %vm2607 = vcmp.eq.f32.partialorder %v2606, 8.507059e+37
      %v2608 = vand.u32 %v2565, 2147483648
      %v2609 = vor.u32 1.1754944e-38, %v2608
      %v2610 = vsel %vm2607, %v2609, %v2605
      %v2611 = vmul.f32 1.0, %v2610
      %v2612 = vrcp.pop %v2566
      %v2613 = vmul.f32 %v2566, %v2612
      %v2614 = vsub.f32 1.0, %v2613
      %v2615 = vmul.f32 %v2612, %v2614
      %v2616 = vadd.f32 %v2612, %v2615
      %vm2617 = vweird.f32 %v2566
      %vm2618 = vweird.f32 %v2612
      %vm2619 = vmor %vm2617, %vm2618
      %v2620 = vsel %vm2619, %v2612, %v2616
      %v2621 = vand.u32 2147483647, %v2566
      %vm2622 = vcmp.eq.f32.partialorder %v2621, 8.507059e+37
      %v2623 = vand.u32 %v2566, 2147483648
      %v2624 = vor.u32 1.1754944e-38, %v2623
      %v2625 = vsel %vm2622, %v2624, %v2620
      %v2626 = vmul.f32 1.0, %v2625
      %v2627 = vrcp.pop %v2567
      %v2628 = vmul.f32 %v2567, %v2627
      %v2629 = vsub.f32 1.0, %v2628
      %v2630 = vmul.f32 %v2627, %v2629
      %v2631 = vadd.f32 %v2627, %v2630
      %vm2632 = vweird.f32 %v2567
      %vm2633 = vweird.f32 %v2627
      %vm2634 = vmor %vm2632, %vm2633
      %v2635 = vsel %vm2634, %v2627, %v2631
      %v2636 = vand.u32 2147483647, %v2567
      %vm2637 = vcmp.eq.f32.partialorder %v2636, 8.507059e+37
      %v2638 = vand.u32 %v2567, 2147483648
      %v2639 = vor.u32 1.1754944e-38, %v2638
      %v2640 = vsel %vm2637, %v2639, %v2635
      %v2641 = vmul.f32 1.0, %v2640
      %v2642 = vrcp.pop %v2568
      %v2643 = vmul.f32 %v2568, %v2642
      %v2644 = vsub.f32 1.0, %v2643
      %v2645 = vmul.f32 %v2642, %v2644
      %v2646 = vadd.f32 %v2642, %v2645
      %vm2647 = vweird.f32 %v2568
      %vm2648 = vweird.f32 %v2642
      %vm2649 = vmor %vm2647, %vm2648
      %v2650 = vsel %vm2649, %v2642, %v2646
      %v2651 = vand.u32 2147483647, %v2568
      %vm2652 = vcmp.eq.f32.partialorder %v2651, 8.507059e+37
      %v2653 = vand.u32 %v2568, 2147483648
      %v2654 = vor.u32 1.1754944e-38, %v2653
      %v2655 = vsel %vm2652, %v2654, %v2650
      %v2656 = vmul.f32 1.0, %v2655
      %v2657 = vrcp.pop %v2569
      %v2658 = vmul.f32 %v2569, %v2657
      %v2659 = vsub.f32 1.0, %v2658
      %v2660 = vmul.f32 %v2657, %v2659
      %v2661 = vadd.f32 %v2657, %v2660
      %vm2662 = vweird.f32 %v2569
      %vm2663 = vweird.f32 %v2657
      %vm2664 = vmor %vm2662, %vm2663
      %v2665 = vsel %vm2664, %v2657, %v2661
      %v2666 = vand.u32 2147483647, %v2569
      %vm2667 = vcmp.eq.f32.partialorder %v2666, 8.507059e+37
      %v2668 = vand.u32 %v2569, 2147483648
      %v2669 = vor.u32 1.1754944e-38, %v2668
      %v2670 = vsel %vm2667, %v2669, %v2665
      %v2671 = vmul.f32 1.0, %v2670
      %v2672 = vrcp.pop %v2570
      %v2673 = vmul.f32 %v2570, %v2672
      %v2674 = vsub.f32 1.0, %v2673
      %v2675 = vmul.f32 %v2672, %v2674
      %v2676 = vadd.f32 %v2672, %v2675
      %vm2677 = vweird.f32 %v2570
      %vm2678 = vweird.f32 %v2672
      %vm2679 = vmor %vm2677, %vm2678
      %v2680 = vsel %vm2679, %v2672, %v2676
      %v2681 = vand.u32 2147483647, %v2570
      %vm2682 = vcmp.eq.f32.partialorder %v2681, 8.507059e+37
      %v2683 = vand.u32 %v2570, 2147483648
      %v2684 = vor.u32 1.1754944e-38, %v2683
      %v2685 = vsel %vm2682, %v2684, %v2680
      %v2686 = vmul.f32 1.0, %v2685
      %v2687 = vrcp.pop %v2571
      %v2688 = vmul.f32 %v2571, %v2687
      %v2689 = vsub.f32 1.0, %v2688
      %v2690 = vmul.f32 %v2687, %v2689
      %v2691 = vadd.f32 %v2687, %v2690
      %vm2692 = vweird.f32 %v2571
      %vm2693 = vweird.f32 %v2687
      %vm2694 = vmor %vm2692, %vm2693
      %v2695 = vsel %vm2694, %v2687, %v2691
      %v2696 = vand.u32 2147483647, %v2571
      %vm2697 = vcmp.eq.f32.partialorder %v2696, 8.507059e+37
      %v2698 = vand.u32 %v2571, 2147483648
      %v2699 = vor.u32 1.1754944e-38, %v2698
      %v2700 = vsel %vm2697, %v2699, %v2695
      %v2701 = vmul.f32 1.0, %v2700
      %v2702 = vrcp.pop %v2572
      %v2703 = vmul.f32 %v2572, %v2702
      %v2704 = vsub.f32 1.0, %v2703
      %v2705 = vmul.f32 %v2702, %v2704
      %v2706 = vadd.f32 %v2702, %v2705
      %vm2707 = vweird.f32 %v2572
      %vm2708 = vweird.f32 %v2702
      %vm2709 = vmor %vm2707, %vm2708
      %v2710 = vsel %vm2709, %v2702, %v2706
      %v2711 = vand.u32 2147483647, %v2572
      %vm2712 = vcmp.eq.f32.partialorder %v2711, 8.507059e+37
      %v2713 = vand.u32 %v2572, 2147483648
      %v2714 = vor.u32 1.1754944e-38, %v2713
      %v2715 = vsel %vm2712, %v2714, %v2710
      %v2716 = vmul.f32 1.0, %v2715
      %v2717 = vrcp.pop %v2573
      %v2718 = vmul.f32 %v2573, %v2717
      %v2719 = vsub.f32 1.0, %v2718
      %v2720 = vmul.f32 %v2717, %v2719
      %v2721 = vadd.f32 %v2717, %v2720
      %vm2722 = vweird.f32 %v2573
      %vm2723 = vweird.f32 %v2717
      %vm2724 = vmor %vm2722, %vm2723
      %v2725 = vsel %vm2724, %v2717, %v2721
      %v2726 = vand.u32 2147483647, %v2573
      %vm2727 = vcmp.eq.f32.partialorder %v2726, 8.507059e+37
      %v2728 = vand.u32 %v2573, 2147483648
      %v2729 = vor.u32 1.1754944e-38, %v2728
      %v2730 = vsel %vm2727, %v2729, %v2725
      %v2731 = vmul.f32 1.0, %v2730
      %v2732 = vrcp.pop %v2574
      %v2733 = vmul.f32 %v2574, %v2732
      %v2734 = vsub.f32 1.0, %v2733
      %v2735 = vmul.f32 %v2732, %v2734
      %v2736 = vadd.f32 %v2732, %v2735
      %vm2737 = vweird.f32 %v2574
      %vm2738 = vweird.f32 %v2732
      %vm2739 = vmor %vm2737, %vm2738
      %v2740 = vsel %vm2739, %v2732, %v2736
      %v2741 = vand.u32 2147483647, %v2574
      %vm2742 = vcmp.eq.f32.partialorder %v2741, 8.507059e+37
      %v2743 = vand.u32 %v2574, 2147483648
      %v2744 = vor.u32 1.1754944e-38, %v2743
      %v2745 = vsel %vm2742, %v2744, %v2740
      %v2746 = vmul.f32 1.0, %v2745
      %v2747 = vrcp.pop %v2575
      %v2748 = vmul.f32 %v2575, %v2747
      %v2749 = vsub.f32 1.0, %v2748
      %v2750 = vmul.f32 %v2747, %v2749
      %v2751 = vadd.f32 %v2747, %v2750
      %vm2752 = vweird.f32 %v2575
      %vm2753 = vweird.f32 %v2747
      %vm2754 = vmor %vm2752, %vm2753
      %v2755 = vsel %vm2754, %v2747, %v2751
      %v2756 = vand.u32 2147483647, %v2575
      %vm2757 = vcmp.eq.f32.partialorder %v2756, 8.507059e+37
      %v2758 = vand.u32 %v2575, 2147483648
      %v2759 = vor.u32 1.1754944e-38, %v2758
      %v2760 = vsel %vm2757, %v2759, %v2755
      %v2761 = vmul.f32 1.0, %v2760
      %v2762 = vrcp.pop %v2576
      %v2763 = vmul.f32 %v2576, %v2762
      %v2764 = vsub.f32 1.0, %v2763
      %v2765 = vmul.f32 %v2762, %v2764
      %v2766 = vadd.f32 %v2762, %v2765
      %vm2767 = vweird.f32 %v2576
      %vm2768 = vweird.f32 %v2762
      %vm2769 = vmor %vm2767, %vm2768
      %v2770 = vsel %vm2769, %v2762, %v2766
      %v2771 = vand.u32 2147483647, %v2576
      %vm2772 = vcmp.eq.f32.partialorder %v2771, 8.507059e+37
      %v2773 = vand.u32 %v2576, 2147483648
      %v2774 = vor.u32 1.1754944e-38, %v2773
      %v2775 = vsel %vm2772, %v2774, %v2770
      %v2776 = vmul.f32 1.0, %v2775
      %v2777 = vrcp.pop %v2577
      %v2778 = vmul.f32 %v2577, %v2777
      %v2779 = vsub.f32 1.0, %v2778
      %v2780 = vmul.f32 %v2777, %v2779
      %v2781 = vadd.f32 %v2777, %v2780
      %vm2782 = vweird.f32 %v2577
      %vm2783 = vweird.f32 %v2777
      %vm2784 = vmor %vm2782, %vm2783
      %v2785 = vsel %vm2784, %v2777, %v2781
      %v2786 = vand.u32 2147483647, %v2577
      %vm2787 = vcmp.eq.f32.partialorder %v2786, 8.507059e+37
      %v2788 = vand.u32 %v2577, 2147483648
      %v2789 = vor.u32 1.1754944e-38, %v2788
      %v2790 = vsel %vm2787, %v2789, %v2785
      %v2791 = vmul.f32 1.0, %v2790
      %v2792 = vrcp.pop %v2578
      %v2793 = vmul.f32 %v2578, %v2792
      %v2794 = vsub.f32 1.0, %v2793
      %v2795 = vmul.f32 %v2792, %v2794
      %v2796 = vadd.f32 %v2792, %v2795
      %vm2797 = vweird.f32 %v2578
      %vm2798 = vweird.f32 %v2792
      %vm2799 = vmor %vm2797, %vm2798
      %v2800 = vsel %vm2799, %v2792, %v2796
      %v2801 = vand.u32 2147483647, %v2578
      %vm2802 = vcmp.eq.f32.partialorder %v2801, 8.507059e+37
      %v2803 = vand.u32 %v2578, 2147483648
      %v2804 = vor.u32 1.1754944e-38, %v2803
      %v2805 = vsel %vm2802, %v2804, %v2800
      %v2806 = vmul.f32 1.0, %v2805
      %v2807 = vrcp.pop %v2579
      %v2808 = vmul.f32 %v2579, %v2807
      %v2809 = vsub.f32 1.0, %v2808
      %v2810 = vmul.f32 %v2807, %v2809
      %v2811 = vadd.f32 %v2807, %v2810
      %vm2812 = vweird.f32 %v2579
      %vm2813 = vweird.f32 %v2807
      %vm2814 = vmor %vm2812, %vm2813
      %v2815 = vsel %vm2814, %v2807, %v2811
      %v2816 = vand.u32 2147483647, %v2579
      %vm2817 = vcmp.eq.f32.partialorder %v2816, 8.507059e+37
      %v2818 = vand.u32 %v2579, 2147483648
      %v2819 = vor.u32 1.1754944e-38, %v2818
      %v2820 = vsel %vm2817, %v2819, %v2815
      %v2821 = vmul.f32 1.0, %v2820
      %v2822 = vrcp.pop %v2580
      %v2823 = vmul.f32 %v2580, %v2822
      %v2824 = vsub.f32 1.0, %v2823
      %v2825 = vmul.f32 %v2822, %v2824
      %v2826 = vadd.f32 %v2822, %v2825
      %vm2827 = vweird.f32 %v2580
      %vm2828 = vweird.f32 %v2822
      %vm2829 = vmor %vm2827, %vm2828
      %v2830 = vsel %vm2829, %v2822, %v2826
      %v2831 = vand.u32 2147483647, %v2580
      %vm2832 = vcmp.eq.f32.partialorder %v2831, 8.507059e+37
      %v2833 = vand.u32 %v2580, 2147483648
      %v2834 = vor.u32 1.1754944e-38, %v2833
      %v2835 = vsel %vm2832, %v2834, %v2830
      %v2836 = vmul.f32 1.0, %v2835
      %v2837 = vrcp.pop %v2581
      %v2838 = vmul.f32 %v2581, %v2837
      %v2839 = vsub.f32 1.0, %v2838
      %v2840 = vmul.f32 %v2837, %v2839
      %v2841 = vadd.f32 %v2837, %v2840
      %vm2842 = vweird.f32 %v2581
      %vm2843 = vweird.f32 %v2837
      %vm2844 = vmor %vm2842, %vm2843
      %v2845 = vsel %vm2844, %v2837, %v2841
      %v2846 = vand.u32 2147483647, %v2581
      %vm2847 = vcmp.eq.f32.partialorder %v2846, 8.507059e+37
      %v2848 = vand.u32 %v2581, 2147483648
      %v2849 = vor.u32 1.1754944e-38, %v2848
      %v2850 = vsel %vm2847, %v2849, %v2845
      %v2851 = vmul.f32 1.0, %v2850
      %v2852 = vrcp.pop %v2582
      %v2853 = vmul.f32 %v2582, %v2852
      %v2854 = vsub.f32 1.0, %v2853
      %v2855 = vmul.f32 %v2852, %v2854
      %v2856 = vadd.f32 %v2852, %v2855
      %vm2857 = vweird.f32 %v2582
      %vm2858 = vweird.f32 %v2852
      %vm2859 = vmor %vm2857, %vm2858
      %v2860 = vsel %vm2859, %v2852, %v2856
      %v2861 = vand.u32 2147483647, %v2582
      %vm2862 = vcmp.eq.f32.partialorder %v2861, 8.507059e+37
      %v2863 = vand.u32 %v2582, 2147483648
      %v2864 = vor.u32 1.1754944e-38, %v2863
      %v2865 = vsel %vm2862, %v2864, %v2860
      %v2866 = vmul.f32 1.0, %v2865
      %v2867 = vrcp.pop %v2583
      %v2868 = vmul.f32 %v2583, %v2867
      %v2869 = vsub.f32 1.0, %v2868
      %v2870 = vmul.f32 %v2867, %v2869
      %v2871 = vadd.f32 %v2867, %v2870
      %vm2872 = vweird.f32 %v2583
      %vm2873 = vweird.f32 %v2867
      %vm2874 = vmor %vm2872, %vm2873
      %v2875 = vsel %vm2874, %v2867, %v2871
      %v2876 = vand.u32 2147483647, %v2583
      %vm2877 = vcmp.eq.f32.partialorder %v2876, 8.507059e+37
      %v2878 = vand.u32 %v2583, 2147483648
      %v2879 = vor.u32 1.1754944e-38, %v2878
      %v2880 = vsel %vm2877, %v2879, %v2875
      %v2881 = vmul.f32 1.0, %v2880
      %v2882 = vrcp.pop %v2584
      %v2883 = vmul.f32 %v2584, %v2882
      %v2884 = vsub.f32 1.0, %v2883
      %v2885 = vmul.f32 %v2882, %v2884
      %v2886 = vadd.f32 %v2882, %v2885
      %vm2887 = vweird.f32 %v2584
      %vm2888 = vweird.f32 %v2882
      %vm2889 = vmor %vm2887, %vm2888
      %v2890 = vsel %vm2889, %v2882, %v2886
      %v2891 = vand.u32 2147483647, %v2584
      %vm2892 = vcmp.eq.f32.partialorder %v2891, 8.507059e+37
      %v2893 = vand.u32 %v2584, 2147483648
      %v2894 = vor.u32 1.1754944e-38, %v2893
      %v2895 = vsel %vm2892, %v2894, %v2890
      %v2896 = vmul.f32 1.0, %v2895
      %v2897 = vrcp.pop %v2585
      %v2898 = vmul.f32 %v2585, %v2897
      %v2899 = vsub.f32 1.0, %v2898
      %v2900 = vmul.f32 %v2897, %v2899
      %v2901 = vadd.f32 %v2897, %v2900
      %vm2902 = vweird.f32 %v2585
      %vm2903 = vweird.f32 %v2897
      %vm2904 = vmor %vm2902, %vm2903
      %v2905 = vsel %vm2904, %v2897, %v2901
      %v2906 = vand.u32 2147483647, %v2585
      %vm2907 = vcmp.eq.f32.partialorder %v2906, 8.507059e+37
      %v2908 = vand.u32 %v2585, 2147483648
      %v2909 = vor.u32 1.1754944e-38, %v2908
      %v2910 = vsel %vm2907, %v2909, %v2905
      %v2911 = vmul.f32 1.0, %v2910
      %v2912 = vrcp.pop %v2586
      %v2913 = vmul.f32 %v2586, %v2912
      %v2914 = vsub.f32 1.0, %v2913
      %v2915 = vmul.f32 %v2912, %v2914
      %v2916 = vadd.f32 %v2912, %v2915
      %vm2917 = vweird.f32 %v2586
      %vm2918 = vweird.f32 %v2912
      %vm2919 = vmor %vm2917, %vm2918
      %v2920 = vsel %vm2919, %v2912, %v2916
      %v2921 = vand.u32 2147483647, %v2586
      %vm2922 = vcmp.eq.f32.partialorder %v2921, 8.507059e+37
      %v2923 = vand.u32 %v2586, 2147483648
      %v2924 = vor.u32 1.1754944e-38, %v2923
      %v2925 = vsel %vm2922, %v2924, %v2920
      %v2926 = vmul.f32 1.0, %v2925
      %v2927 = vrcp.pop %v2587
      %v2928 = vmul.f32 %v2587, %v2927
      %v2929 = vsub.f32 1.0, %v2928
      %v2930 = vmul.f32 %v2927, %v2929
      %v2931 = vadd.f32 %v2927, %v2930
      %vm2932 = vweird.f32 %v2587
      %vm2933 = vweird.f32 %v2927
      %vm2934 = vmor %vm2932, %vm2933
      %v2935 = vsel %vm2934, %v2927, %v2931
      %v2936 = vand.u32 2147483647, %v2587
      %vm2937 = vcmp.eq.f32.partialorder %v2936, 8.507059e+37
      %v2938 = vand.u32 %v2587, 2147483648
      %v2939 = vor.u32 1.1754944e-38, %v2938
      %v2940 = vsel %vm2937, %v2939, %v2935
      %v2941 = vmul.f32 1.0, %v2940
      %v2942 = vrcp.pop %v2588
      %v2943 = vmul.f32 %v2588, %v2942
      %v2944 = vsub.f32 1.0, %v2943
      %v2945 = vmul.f32 %v2942, %v2944
      %v2946 = vadd.f32 %v2942, %v2945
      %vm2947 = vweird.f32 %v2588
      %vm2948 = vweird.f32 %v2942
      %vm2949 = vmor %vm2947, %vm2948
      %v2950 = vsel %vm2949, %v2942, %v2946
      %v2951 = vand.u32 2147483647, %v2588
      %vm2952 = vcmp.eq.f32.partialorder %v2951, 8.507059e+37
      %v2953 = vand.u32 %v2588, 2147483648
      %v2954 = vor.u32 1.1754944e-38, %v2953
      %v2955 = vsel %vm2952, %v2954, %v2950
      %v2956 = vmul.f32 1.0, %v2955
      %v2957 = vrcp.pop %v2589
      %v2958 = vmul.f32 %v2589, %v2957
      %v2959 = vsub.f32 1.0, %v2958
      %v2960 = vmul.f32 %v2957, %v2959
      %v2961 = vadd.f32 %v2957, %v2960
      %vm2962 = vweird.f32 %v2589
      %vm2963 = vweird.f32 %v2957
      %vm2964 = vmor %vm2962, %vm2963
      %v2965 = vsel %vm2964, %v2957, %v2961
      %v2966 = vand.u32 2147483647, %v2589
      %vm2967 = vcmp.eq.f32.partialorder %v2966, 8.507059e+37
      %v2968 = vand.u32 %v2589, 2147483648
      %v2969 = vor.u32 1.1754944e-38, %v2968
      %v2970 = vsel %vm2967, %v2969, %v2965
      %v2971 = vmul.f32 1.0, %v2970
      %v2972 = vrcp.pop %v2590
      %v2973 = vmul.f32 %v2590, %v2972
      %v2974 = vsub.f32 1.0, %v2973
      %v2975 = vmul.f32 %v2972, %v2974
      %v2976 = vadd.f32 %v2972, %v2975
      %vm2977 = vweird.f32 %v2590
      %vm2978 = vweird.f32 %v2972
      %vm2979 = vmor %vm2977, %vm2978
      %v2980 = vsel %vm2979, %v2972, %v2976
      %v2981 = vand.u32 2147483647, %v2590
      %vm2982 = vcmp.eq.f32.partialorder %v2981, 8.507059e+37
      %v2983 = vand.u32 %v2590, 2147483648
      %v2984 = vor.u32 1.1754944e-38, %v2983
      %v2985 = vsel %vm2982, %v2984, %v2980
      %v2986 = vmul.f32 1.0, %v2985
      %v2987 = vrcp.pop %v2591
      %v2988 = vmul.f32 %v2591, %v2987
      %v2989 = vsub.f32 1.0, %v2988
      %v2990 = vmul.f32 %v2987, %v2989
      %v2991 = vadd.f32 %v2987, %v2990
      %vm2992 = vweird.f32 %v2591
      %vm2993 = vweird.f32 %v2987
      %vm2994 = vmor %vm2992, %vm2993
      %v2995 = vsel %vm2994, %v2987, %v2991
      %v2996 = vand.u32 2147483647, %v2591
      %vm2997 = vcmp.eq.f32.partialorder %v2996, 8.507059e+37
      %v2998 = vand.u32 %v2591, 2147483648
      %v2999 = vor.u32 1.1754944e-38, %v2998
      %v3000 = vsel %vm2997, %v2999, %v2995
      %v3001 = vmul.f32 1.0, %v3000
      %v3002 = vrcp.pop %v2592
      %v3003 = vmul.f32 %v2592, %v3002
      %v3004 = vsub.f32 1.0, %v3003
      %v3005 = vmul.f32 %v3002, %v3004
      %v3006 = vadd.f32 %v3002, %v3005
      %vm3007 = vweird.f32 %v2592
      %vm3008 = vweird.f32 %v3002
      %vm3009 = vmor %vm3007, %vm3008
      %v3010 = vsel %vm3009, %v3002, %v3006
      %v3011 = vand.u32 2147483647, %v2592
      %vm3012 = vcmp.eq.f32.partialorder %v3011, 8.507059e+37
      %v3013 = vand.u32 %v2592, 2147483648
      %v3014 = vor.u32 1.1754944e-38, %v3013
      %v3015 = vsel %vm3012, %v3014, %v3010
      %v3016 = vmul.f32 1.0, %v3015
      %v3017 = vrcp.pop %v2593
      %v3018 = vmul.f32 %v2593, %v3017
      %v3019 = vsub.f32 1.0, %v3018
      %v3020 = vmul.f32 %v3017, %v3019
      %v3021 = vadd.f32 %v3017, %v3020
      %vm3022 = vweird.f32 %v2593
      %vm3023 = vweird.f32 %v3017
      %vm3024 = vmor %vm3022, %vm3023
      %v3025 = vsel %vm3024, %v3017, %v3021
      %v3026 = vand.u32 2147483647, %v2593
      %vm3027 = vcmp.eq.f32.partialorder %v3026, 8.507059e+37
      %v3028 = vand.u32 %v2593, 2147483648
      %v3029 = vor.u32 1.1754944e-38, %v3028
      %v3030 = vsel %vm3027, %v3029, %v3025
      %v3031 = vmul.f32 1.0, %v3030
      %v3032 = vrcp.pop %v2594
      %v3033 = vmul.f32 %v2594, %v3032
      %v3034 = vsub.f32 1.0, %v3033
      %v3035 = vmul.f32 %v3032, %v3034
      %v3036 = vadd.f32 %v3032, %v3035
      %vm3037 = vweird.f32 %v2594
      %vm3038 = vweird.f32 %v3032
      %vm3039 = vmor %vm3037, %vm3038
      %v3040 = vsel %vm3039, %v3032, %v3036
      %v3041 = vand.u32 2147483647, %v2594
      %vm3042 = vcmp.eq.f32.partialorder %v3041, 8.507059e+37
      %v3043 = vand.u32 %v2594, 2147483648
      %v3044 = vor.u32 1.1754944e-38, %v3043
      %v3045 = vsel %vm3042, %v3044, %v3040
      %v3046 = vmul.f32 1.0, %v3045
      %v3047 = vrcp.pop %v2595
      %v3048 = vmul.f32 %v2595, %v3047
      %v3049 = vsub.f32 1.0, %v3048
      %v3050 = vmul.f32 %v3047, %v3049
      %v3051 = vadd.f32 %v3047, %v3050
      %vm3052 = vweird.f32 %v2595
      %vm3053 = vweird.f32 %v3047
      %vm3054 = vmor %vm3052, %vm3053
      %v3055 = vsel %vm3054, %v3047, %v3051
      %v3056 = vand.u32 2147483647, %v2595
      %vm3057 = vcmp.eq.f32.partialorder %v3056, 8.507059e+37
      %v3058 = vand.u32 %v2595, 2147483648
      %v3059 = vor.u32 1.1754944e-38, %v3058
      %v3060 = vsel %vm3057, %v3059, %v3055
      %v3061 = vmul.f32 1.0, %v3060
      %v3062 = vrcp.pop %v2596
      %v3063 = vmul.f32 %v2596, %v3062
      %v3064 = vsub.f32 1.0, %v3063
      %v3065 = vmul.f32 %v3062, %v3064
      %v3066 = vadd.f32 %v3062, %v3065
      %vm3067 = vweird.f32 %v2596
      %vm3068 = vweird.f32 %v3062
      %vm3069 = vmor %vm3067, %vm3068
      %v3070 = vsel %vm3069, %v3062, %v3066
      %v3071 = vand.u32 2147483647, %v2596
      %vm3072 = vcmp.eq.f32.partialorder %v3071, 8.507059e+37
      %v3073 = vand.u32 %v2596, 2147483648
      %v3074 = vor.u32 1.1754944e-38, %v3073
      %v3075 = vsel %vm3072, %v3074, %v3070
      %v3076 = vmul.f32 1.0, %v3075
      %v3077 = vmul.f32 %v2611, 2.0
      %v3078 = vmul.f32 %v2626, 2.0
      %v3079 = vmul.f32 %v2641, 2.0
      %v3080 = vmul.f32 %v2656, 2.0
      %v3081 = vmul.f32 %v2671, 2.0
      %v3082 = vmul.f32 %v2686, 2.0
      %v3083 = vmul.f32 %v2701, 2.0
      %v3084 = vmul.f32 %v2716, 2.0
      %v3085 = vmul.f32 %v2731, 2.0
      %v3086 = vmul.f32 %v2746, 2.0
      %v3087 = vmul.f32 %v2761, 2.0
      %v3088 = vmul.f32 %v2776, 2.0
      %v3089 = vmul.f32 %v2791, 2.0
      %v3090 = vmul.f32 %v2806, 2.0
      %v3091 = vmul.f32 %v2821, 2.0
      %v3092 = vmul.f32 %v2836, 2.0
      %v3093 = vmul.f32 %v2851, 2.0
      %v3094 = vmul.f32 %v2866, 2.0
      %v3095 = vmul.f32 %v2881, 2.0
      %v3096 = vmul.f32 %v2896, 2.0
      %v3097 = vmul.f32 %v2911, 2.0
      %v3098 = vmul.f32 %v2926, 2.0
      %v3099 = vmul.f32 %v2941, 2.0
      %v3100 = vmul.f32 %v2956, 2.0
      %v3101 = vmul.f32 %v2971, 2.0
      %v3102 = vmul.f32 %v2986, 2.0
      %v3103 = vmul.f32 %v3001, 2.0
      %v3104 = vmul.f32 %v3016, 2.0
      %v3105 = vmul.f32 %v3031, 2.0
      %v3106 = vmul.f32 %v3046, 2.0
      %v3107 = vmul.f32 %v3061, 2.0
      %v3108 = vmul.f32 %v3076, 2.0
      %v3109 = vsub.f32 %v3077, 0.5
      %v3110 = vsub.f32 %v3078, 0.5
      %v3111 = vsub.f32 %v3079, 0.5
      %v3112 = vsub.f32 %v3080, 0.5
      %v3113 = vsub.f32 %v3081, 0.5
      %v3114 = vsub.f32 %v3082, 0.5
      %v3115 = vsub.f32 %v3083, 0.5
      %v3116 = vsub.f32 %v3084, 0.5
      %v3117 = vsub.f32 %v3085, 0.5
      %v3118 = vsub.f32 %v3086, 0.5
      %v3119 = vsub.f32 %v3087, 0.5
      %v3120 = vsub.f32 %v3088, 0.5
      %v3121 = vsub.f32 %v3089, 0.5
      %v3122 = vsub.f32 %v3090, 0.5
      %v3123 = vsub.f32 %v3091, 0.5
      %v3124 = vsub.f32 %v3092, 0.5
      %v3125 = vsub.f32 %v3093, 0.5
      %v3126 = vsub.f32 %v3094, 0.5
      %v3127 = vsub.f32 %v3095, 0.5
      %v3128 = vsub.f32 %v3096, 0.5
      %v3129 = vsub.f32 %v3097, 0.5
      %v3130 = vsub.f32 %v3098, 0.5
      %v3131 = vsub.f32 %v3099, 0.5
      %v3132 = vsub.f32 %v3100, 0.5
      %v3133 = vsub.f32 %v3101, 0.5
      %v3134 = vsub.f32 %v3102, 0.5
      %v3135 = vsub.f32 %v3103, 0.5
      %v3136 = vsub.f32 %v3104, 0.5
      %v3137 = vsub.f32 %v3105, 0.5
      %v3138 = vsub.f32 %v3106, 0.5
      %v3139 = vsub.f32 %v3107, 0.5
      %v3140 = vsub.f32 %v3108, 0.5
      %v3141 = vmul.f32 %v3077, %v3077
      %v3142 = vmul.f32 %v3078, %v3078
      %v3143 = vmul.f32 %v3079, %v3079
      %v3144 = vmul.f32 %v3080, %v3080
      %v3145 = vmul.f32 %v3081, %v3081
      %v3146 = vmul.f32 %v3082, %v3082
      %v3147 = vmul.f32 %v3083, %v3083
      %v3148 = vmul.f32 %v3084, %v3084
      %v3149 = vmul.f32 %v3085, %v3085
      %v3150 = vmul.f32 %v3086, %v3086
      %v3151 = vmul.f32 %v3087, %v3087
      %v3152 = vmul.f32 %v3088, %v3088
      %v3153 = vmul.f32 %v3089, %v3089
      %v3154 = vmul.f32 %v3090, %v3090
      %v3155 = vmul.f32 %v3091, %v3091
      %v3156 = vmul.f32 %v3092, %v3092
      %v3157 = vmul.f32 %v3093, %v3093
      %v3158 = vmul.f32 %v3094, %v3094
      %v3159 = vmul.f32 %v3095, %v3095
      %v3160 = vmul.f32 %v3096, %v3096
      %v3161 = vmul.f32 %v3097, %v3097
      %v3162 = vmul.f32 %v3098, %v3098
      %v3163 = vmul.f32 %v3099, %v3099
      %v3164 = vmul.f32 %v3100, %v3100
      %v3165 = vmul.f32 %v3101, %v3101
      %v3166 = vmul.f32 %v3102, %v3102
      %v3167 = vmul.f32 %v3103, %v3103
      %v3168 = vmul.f32 %v3104, %v3104
      %v3169 = vmul.f32 %v3105, %v3105
      %v3170 = vmul.f32 %v3106, %v3106
      %v3171 = vmul.f32 %v3107, %v3107
      %v3172 = vmul.f32 %v3108, %v3108
      %s3173 = scalar_lea.vmem %s3, 2
      %v3174 = vld [vmem:[%s3173] sm:$0x1]
      %v3176 = vperm.slane %v3174, 0
      %v3178 = vmul.f32 %v3141, %v3176
      %v3179 = vmul.f32 %v3142, %v3176
      %v3180 = vmul.f32 %v3143, %v3176
      %v3181 = vmul.f32 %v3144, %v3176
      %v3182 = vmul.f32 %v3145, %v3176
      %v3183 = vmul.f32 %v3146, %v3176
      %v3184 = vmul.f32 %v3147, %v3176
      %v3185 = vmul.f32 %v3148, %v3176
      %v3186 = vmul.f32 %v3149, %v3176
      %v3187 = vmul.f32 %v3150, %v3176
      %v3188 = vmul.f32 %v3151, %v3176
      %v3189 = vmul.f32 %v3152, %v3176
      %v3190 = vmul.f32 %v3153, %v3176
      %v3191 = vmul.f32 %v3154, %v3176
      %v3192 = vmul.f32 %v3155, %v3176
      %v3193 = vmul.f32 %v3156, %v3176
      %v3194 = vmul.f32 %v3157, %v3176
      %v3195 = vmul.f32 %v3158, %v3176
      %v3196 = vmul.f32 %v3159, %v3176
      %v3197 = vmul.f32 %v3160, %v3176
      %v3198 = vmul.f32 %v3161, %v3176
      %v3199 = vmul.f32 %v3162, %v3176
      %v3200 = vmul.f32 %v3163, %v3176
      %v3201 = vmul.f32 %v3164, %v3176
      %v3202 = vmul.f32 %v3165, %v3176
      %v3203 = vmul.f32 %v3166, %v3176
      %v3204 = vmul.f32 %v3167, %v3176
      %v3205 = vmul.f32 %v3168, %v3176
      %v3206 = vmul.f32 %v3169, %v3176
      %v3207 = vmul.f32 %v3170, %v3176
      %v3208 = vmul.f32 %v3171, %v3176
      %v3209 = vmul.f32 %v3172, %v3176
      %v3210 = vsel %vm1192, %v3109, %v3178
      %v3211 = vsel %vm1192, %v3110, %v3179
      %v3212 = vsel %vm1192, %v3111, %v3180
      %v3213 = vsel %vm1192, %v3112, %v3181
      %v3214 = vsel %vm1192, %v3113, %v3182
      %v3215 = vsel %vm1192, %v3114, %v3183
      %v3216 = vsel %vm1192, %v3115, %v3184
      %v3217 = vsel %vm1192, %v3116, %v3185
      %v3218 = vsel %vm1192, %v3117, %v3186
      %v3219 = vsel %vm1192, %v3118, %v3187
      %v3220 = vsel %vm1192, %v3119, %v3188
      %v3221 = vsel %vm1192, %v3120, %v3189
      %v3222 = vsel %vm1192, %v3121, %v3190
      %v3223 = vsel %vm1192, %v3122, %v3191
      %v3224 = vsel %vm1192, %v3123, %v3192
      %v3225 = vsel %vm1192, %v3124, %v3193
      %v3226 = vsel %vm1192, %v3125, %v3194
      %v3227 = vsel %vm1192, %v3126, %v3195
      %v3228 = vsel %vm1192, %v3127, %v3196
      %v3229 = vsel %vm1192, %v3128, %v3197
      %v3230 = vsel %vm1192, %v3129, %v3198
      %v3231 = vsel %vm1192, %v3130, %v3199
      %v3232 = vsel %vm1192, %v3131, %v3200
      %v3233 = vsel %vm1192, %v3132, %v3201
      %v3234 = vsel %vm1192, %v3133, %v3202
      %v3235 = vsel %vm1192, %v3134, %v3203
      %v3236 = vsel %vm1192, %v3135, %v3204
      %v3237 = vsel %vm1192, %v3136, %v3205
      %v3238 = vsel %vm1192, %v3137, %v3206
      %v3239 = vsel %vm1192, %v3138, %v3207
      %v3240 = vsel %vm1192, %v3139, %v3208
      %v3241 = vsel %vm1192, %v3140, %v3209
      %3242 = vst.msk [vmem:[%s2436] sm:$0xff] %vm1325, %v3210
      %3243 = vst.msk [vmem:[%s2436 + $0x8] sm:$0xff] %vm1325, %v3211
      %3244 = vst.msk [vmem:[%s2436 + $0x10] sm:$0xff] %vm1325, %v3212
      %3245 = vst.msk [vmem:[%s2436 + $0x18] sm:$0xff] %vm1325, %v3213
      %3246 = vst.msk [vmem:[%s2436 + $0x20] sm:$0xff] %vm1325, %v3214
      %3247 = vst.msk [vmem:[%s2436 + $0x28] sm:$0xff] %vm1325, %v3215
      %3248 = vst.msk [vmem:[%s2436 + $0x30] sm:$0xff] %vm1325, %v3216
      %3249 = vst.msk [vmem:[%s2436 + $0x38] sm:$0xff] %vm1325, %v3217
      %3250 = vst.msk [vmem:[%s2436 + $0x40] sm:$0xff] %vm1325, %v3218
      %3251 = vst.msk [vmem:[%s2436 + $0x48] sm:$0xff] %vm1325, %v3219
      %3252 = vst.msk [vmem:[%s2436 + $0x50] sm:$0xff] %vm1325, %v3220
      %3253 = vst.msk [vmem:[%s2436 + $0x58] sm:$0xff] %vm1325, %v3221
      %3254 = vst.msk [vmem:[%s2436 + $0x60] sm:$0xff] %vm1325, %v3222
      %3255 = vst.msk [vmem:[%s2436 + $0x68] sm:$0xff] %vm1325, %v3223
      %3256 = vst.msk [vmem:[%s2436 + $0x70] sm:$0xff] %vm1325, %v3224
      %3257 = vst.msk [vmem:[%s2436 + $0x78] sm:$0xff] %vm1325, %v3225
      %3258 = vst.msk [vmem:[%s2436 + $0x80] sm:$0xff] %vm1325, %v3226
      %3259 = vst.msk [vmem:[%s2436 + $0x88] sm:$0xff] %vm1325, %v3227
      %3260 = vst.msk [vmem:[%s2436 + $0x90] sm:$0xff] %vm1325, %v3228
      %3261 = vst.msk [vmem:[%s2436 + $0x98] sm:$0xff] %vm1325, %v3229
      %3262 = vst.msk [vmem:[%s2436 + $0xa0] sm:$0xff] %vm1325, %v3230
      %3263 = vst.msk [vmem:[%s2436 + $0xa8] sm:$0xff] %vm1325, %v3231
      %3264 = vst.msk [vmem:[%s2436 + $0xb0] sm:$0xff] %vm1325, %v3232
      %3265 = vst.msk [vmem:[%s2436 + $0xb8] sm:$0xff] %vm1325, %v3233
      %3266 = vst.msk [vmem:[%s2436 + $0xc0] sm:$0xff] %vm1325, %v3234
      %3267 = vst.msk [vmem:[%s2436 + $0xc8] sm:$0xff] %vm1325, %v3235
      %3268 = vst.msk [vmem:[%s2436 + $0xd0] sm:$0xff] %vm1325, %v3236
      %3269 = vst.msk [vmem:[%s2436 + $0xd8] sm:$0xff] %vm1325, %v3237
      %3270 = vst.msk [vmem:[%s2436 + $0xe0] sm:$0xff] %vm1325, %v3238
      %3271 = vst.msk [vmem:[%s2436 + $0xe8] sm:$0xff] %vm1325, %v3239
      %3272 = vst.msk [vmem:[%s2436 + $0xf0] sm:$0xff] %vm1325, %v3240
      %3273 = vst.msk [vmem:[%s2436 + $0xf8] sm:$0xff] %vm1325, %v3241
      %s3274 = smul.u32 32, %s20
      %p3275 = scmp.lt.s32.totalorder %s19, 1
      %s3276 = scalar_select %p3275, %s19, 1
      %p3277 = scmp.lt.s32.totalorder %s3274, 31
      %s3278 = scalar_select %p3277, %s3274, 31
      %s3279 = smul.addr %s3276, 96
      %s3280 = sadd.s32 %s3278, %s3279
      %s3281 = smul.addr %s3280, 8
      %s3282 = scalar_lea.vmem %s4, %s3281
      // Predicated region
      $region37: #{head_forward.3} parent=35 // pred_check
        %p3283 = pneg %p138
      $region38: #{head_forward.3} parent=35 // pred_check_branch
        %3285 = sbr.rel (%p3283) target = $region40
      $region39: #{head_forward.3} parent=35 // pred_region
        %s3286 = smul.u32 32, %s20
      $region40: #{head_forward.3} parent=35 // pred_fallthru
        _
    $region36: #{head_forward.3} parent=5 // pred_fallthru
      _
    %p3287 = scmp.le.s32.totalorder 2, %s10
    // Predicated region
    $region41: #{head_forward.3} parent=5 // pred_check
      %p3288 = pneg %p3287
    $region42: #{head_forward.3} parent=5 // pred_check_branch
      %3290 = sbr.rel (%p3288) target = $region44
    $region43: #{head_forward.3} parent=5 // pred_region
      %s3291 = ssub.s32 %s10, 2
      // Predicated region
      $region45: #{head_forward.3} parent=43 // pred_check
        %p3292 = pneg %p144
      $region46: #{head_forward.3} parent=43 // pred_check_branch
        %3294 = sbr.rel (%p3292) target = $region48
      $region47: #{head_forward.3} parent=43 // pred_region
        %s3295 = smul.u32 32, %s22
        %p3296 = scmp.lt.s32.totalorder %s21, 1
        %s3297 = scalar_select %p3296, %s21, 1
        %p3298 = scmp.lt.s32.totalorder %s3295, 31
        %s3299 = scalar_select %p3298, %s3295, 31
        %s3300 = smul.addr %s3297, 96
        %s3301 = sadd.s32 %s3299, %s3300
        %s3302 = smul.addr %s3301, 8
        %s3303 = scalar_lea.vmem %s4, %s3302
      $region48: #{head_forward.3} parent=43 // pred_fallthru
        _
    $region44: #{head_forward.3} parent=5 // pred_fallthru
      _
  $region6: #{head_forward.3} parent=0 // loop_footer
    %s14 = sadd.s32 1, %s10
  $region7: #{head_forward.3} parent=0 // loop_footer_branch
    %9 = sbr.rel target = $region3
  $region8: #{head_forward.3} parent=0 // loop_exit
    _

</llo_original>
